<compile_context>
chip_gen: v7x
topology: tpu7x:2x2x1
jax: 0.10.0
libtpu: 0.0.40
codegen_flags: <defaults>
</compile_context>

<pallas_src>
import jax
import jax.numpy as jnp
from jax import lax
from jax.experimental import pallas as pl
from jax.experimental.pallas import tpu as pltpu

LRELU_SLOPE = 0.1
DILATIONS = (1, 3, 5)                    # convs1 dilations; convs2 always dilation=1
KSIZE = 3                                # kernel_size=3, "same" padding == dilation
HALO = sum(d + 1 for d in DILATIONS)     # = 12: halo consumed by the fused 3 stages


def _leaky_relu(x):
    return jnp.where(x >= 0, x, LRELU_SLOPE * x)


def _round_up(x, m):
    return (x + m - 1) // m * m


def _conv3_taps(a, w, b, d):
    """Dilated K=3 'valid' conv on a slab.

    a: [L, C] f32 (already activated + boundary-masked), w: [3, C, C] bf16,
    b: [1, C] f32, dilation d.  Returns [L - 2d, C] f32 = conv output at slab
    rows [d, L - d).  Taps are static slices of `a` (no zero-concat copies)
    feeding three MXU matmuls with f32 accumulation.
    """
    L = a.shape[0]
    a16 = a.astype(jnp.bfloat16)
    y = (jnp.dot(a16[0:L - 2 * d], w[0], preferred_element_type=jnp.float32)
         + jnp.dot(a16[d:L - d], w[1], preferred_element_type=jnp.float32)
         + jnp.dot(a16[2 * d:L], w[2], preferred_element_type=jnp.float32))
    return y + b


def _make_kernel(tile_t, t_true, n_tiles):
    P = tile_t + 2 * HALO

    def kernel(x_hbm, w1_ref, b1_ref, w2_ref, b2_ref, o_ref, xbuf, sem):
        b = pl.program_id(0)
        j = pl.program_id(1)
        slot = j % 2

        def copy_in(jj, slot_):
            return pltpu.make_async_copy(
                x_hbm.at[b, pl.ds(jj * tile_t, P)],   # [P, Cp] haloed tile
                xbuf.at[slot_],
                sem.at[slot_])

        # First tile of this batch row: fetch it ourselves.
        @pl.when(j == 0)
        def _():
            copy_in(0, 0).start()

        # Prefetch the next tile of the same batch row into the other slot
        # while computing on the current one (manual double buffering).  The
        # T-tile grid axis is "arbitrary" (sequential per core) so this chain
        # is valid even when B is sharded across TensorCores.
        @pl.when(j + 1 < n_tiles)
        def _():
            copy_in(j + 1, 1 - slot).start()

        copy_in(j, slot).wait()

        h = xbuf[slot]                                        # [P, Cp] f32
        # Global time index of each slab row.  Rows outside [0, T) must act as
        # conv-input zeros to reproduce per-stage 'same' zero padding exactly
        # (also handles the T-padding of the last tile).
        rows = lax.broadcasted_iota(jnp.int32, (P, 1), 0) + (j * tile_t - HALO)
        mask = jnp.logical_and(rows >= 0, rows < t_true).astype(jnp.float32)

        off = 0                                               # margin consumed per side
        for l, d in enumerate(DILATIONS):                     # unrolled: 3 residual stages
            L = P - 2 * off
            a1 = _leaky_relu(h) * mask[off:P - off]
            y1 = _conv3_taps(a1, w1_ref[l], b1_ref[l], d)     # [L-2d, Cp]
            a2 = _leaky_relu(y1) * mask[off + d:P - off - d]
            y2 = _conv3_taps(a2, w2_ref[l], b2_ref[l], 1)     # [L-2d-2, Cp]
            h = y2 + h[d + 1:L - (d + 1)]                     # residual add (f32)
            off += d + 1
        # off == HALO; h is exactly the [tile_t, Cp] output tile.
        o_ref[...] = h.astype(o_ref.dtype)

    return kernel


def resblock1(x_nct, w1, b1, w2, b2, *, tile_t=256):
    """ResBlock1 forward.

    x_nct: [B, C, T] (PyTorch NCT layout).
    w1/w2: [3, C_out, C_in, K] stacked effective conv weights, b1/b2: [3, C].
    """
    B, C, T = x_nct.shape
    orig_dtype = x_nct.dtype

    Cp = _round_up(max(C, 128), 128)                          # lane-dense channels
    tile_t = _round_up(max(8, min(tile_t, _round_up(T, 8))), 8)
    NT = -(-T // tile_t)
    Tp = NT * tile_t
    P = tile_t + 2 * HALO

    # TODO(synk): in the full vocoder, keep activations in [B, T, C] end-to-end
    # so these boundary transposes (one extra HBM pass each) disappear.
    x = jnp.transpose(x_nct, (0, 2, 1)).astype(jnp.float32)   # [B, T, C]
    x = jnp.pad(x, ((0, 0), (HALO, HALO + (Tp - T)), (0, Cp - C)))

    def prep_w(w):   # [3, C_out, C_in, K] -> [3, K, C_in, C_out], padded, bf16
        wk = jnp.transpose(w, (0, 3, 2, 1))
        wk = jnp.pad(wk, ((0, 0), (0, 0), (0, Cp - C), (0, Cp - C)))
        return wk.astype(jnp.bfloat16)

    def prep_b(b):   # [3, C] -> [3, 1, Cp] f32
        return jnp.pad(b, ((0, 0), (0, Cp - C))).astype(jnp.float32)[:, None, :]

    w1k, w2k = prep_w(w1), prep_w(w2)
    b1k, b2k = prep_b(b1), prep_b(b2)

    # VMEM budget: manual input double-buffer + auto output double-buffer +
    # single-copy bf16 weights + intermediate slabs, with 2x headroom.
    est = (2 * P * Cp * 4 + 2 * tile_t * Cp * 4
           + 2 * w1k.size + 2 * w2k.size + 4 * (b1k.size + b2k.size)
           + 8 * P * Cp * 4)
    vmem_limit = int(min(max(2 * est, 32 * 1024 * 1024), 96 * 1024 * 1024))

    kernel = _make_kernel(tile_t, T, NT)

    out = pl.pallas_call(
        kernel,
        out_shape=jax.ShapeDtypeStruct((B, Tp, Cp), jnp.float32),
        grid_spec=pltpu.PrefetchScalarGridSpec(
            num_scalar_prefetch=0,
            grid=(B, NT),
            in_specs=[
                pl.BlockSpec(memory_space=pl.ANY),                   # x: HBM, manual DMA
                pl.BlockSpec(memory_space=pltpu.MemorySpace.VMEM),   # w1: single resident copy
                pl.BlockSpec(memory_space=pltpu.MemorySpace.VMEM),   # b1
                pl.BlockSpec(memory_space=pltpu.MemorySpace.VMEM),   # w2
                pl.BlockSpec(memory_space=pltpu.MemorySpace.VMEM),   # b2
            ],
            out_specs=pl.BlockSpec((None, tile_t, Cp), lambda b, j: (b, j, 0)),
            scratch_shapes=[
                pltpu.VMEM((2, P, Cp), jnp.float32),   # haloed input double buffer
                pltpu.SemaphoreType.DMA((2,)),
            ],
        ),
        compiler_params=pltpu.CompilerParams(
            # B shards across TensorCores (v7x megacore); the T-tile axis must
            # stay sequential per core because of the manual prefetch chain.
            dimension_semantics=("parallel", "arbitrary"),
            vmem_limit_bytes=vmem_limit,
        ),
    )(x, w1k, b1k, w2k, b2k)

    out = out[:, :T, :C].astype(orig_dtype)
    return jnp.transpose(out, (0, 2, 1))                      # back to [B, C, T]


def resblock1_reference(x, w1, b1, w2, b2):
    """Pure-JAX f32 reference mirroring the PyTorch forward (NCT layout)."""
    def conv(x, w, b, d):
        y = lax.conv_general_dilated(
            x, w, window_strides=(1,), padding=[(d, d)], rhs_dilation=(d,),
            dimension_numbers=("NCH", "OIH", "NCH"))
        return y + b[None, :, None]

    for l, d in enumerate(DILATIONS):
        xt = _leaky_relu(x)
        xt = conv(xt, w1[l], b1[l], d)
        xt = _leaky_relu(xt)
        xt = conv(xt, w2[l], b2[l], 1)
        x = xt + x
    return x


if __name__ == "__main__":
    # Small shapes consistent with ResBlock1(channels) applied to (N, C, T).
    # T is deliberately not a multiple of tile_t and C < 128 so the T tiling,
    # halo/boundary masking and channel padding paths are all exercised.
    B, C, T = 2, 64, 300
    key = jax.random.PRNGKey(0)
    kx, kw1, kw2, kb1, kb2 = jax.random.split(key, 5)

    x = jax.random.normal(kx, (B, C, T), jnp.float32)
    # weight_norm(Conv1d) with init_weights: effective weight ~ N(0, 0.01)
    # (weight_norm is a reparametrization; the effective weight is what matters).
    w1 = 0.01 * jax.random.normal(kw1, (3, C, C, KSIZE), jnp.float32)  # convs1
    w2 = 0.01 * jax.random.normal(kw2, (3, C, C, KSIZE), jnp.float32)  # convs2
    b1 = 0.01 * jax.random.normal(kb1, (3, C), jnp.float32)
    b2 = 0.01 * jax.random.normal(kb2, (3, C), jnp.float32)

    out = resblock1(x, w1, b1, w2, b2, tile_t=128)
    out = jax.block_until_ready(out)

    ref = resblock1_reference(x, w1, b1, w2, b2)
    assert out.shape == (B, C, T)
    # bf16 matmul inputs (f32 accumulation) -> looser tolerance vs f32 reference.
    max_err = float(jnp.max(jnp.abs(out - ref)))
    assert jnp.allclose(out, ref, atol=1e-2, rtol=1e-2), f"mismatch vs reference: {max_err}"
    print("KERNEL_OK")
</pallas_src>

<mosaic_0001>
module attributes {stable_mosaic.version = 11 : i64} {
  func.func @kernel(%arg0: i32, %arg1: i32, %arg2: memref<2x408x128xf32, #tpu.memory_space<any>>, %arg3: memref<3x3x128x128xbf16, #tpu.memory_space<vmem>>, %arg4: memref<3x1x128xf32, #tpu.memory_space<vmem>>, %arg5: memref<3x3x128x128xbf16, #tpu.memory_space<vmem>>, %arg6: memref<3x1x128xf32, #tpu.memory_space<vmem>>, %arg7: memref<1x128x128xf32, #tpu.memory_space<vmem>>, %arg8: memref<2x152x128xf32, #tpu.memory_space<vmem>>, %arg9: memref<2x!tpu.dma_semaphore, #tpu.memory_space<semaphore_mem>>) attributes {dimension_semantics = [#tpu.dimension_semantics<parallel>, #tpu.dimension_semantics<arbitrary>], iteration_bounds = array<i64: 2, 3>, scalar_prefetch = 0 : i64, scratch_operands = 2 : i64, tpu.core_type = #tpu.core_type<tc>, window_params = [{}, {pipeline_mode = #tpu.pipeline_mode<synchronous>, transform_indices = @transform_1, window_bounds = array<i64: 3, 3, 128, 128>}, {pipeline_mode = #tpu.pipeline_mode<synchronous>, transform_indices = @transform_2, window_bounds = array<i64: 3, 1, 128>}, {pipeline_mode = #tpu.pipeline_mode<synchronous>, transform_indices = @transform_3, window_bounds = array<i64: 3, 3, 128, 128>}, {pipeline_mode = #tpu.pipeline_mode<synchronous>, transform_indices = @transform_4, window_bounds = array<i64: 3, 1, 128>}, {transform_indices = @transform_5, window_bounds = array<i64: 1, 128, 128>}]} {
    %c2_i32 = arith.constant 2 : i32
    %c0_i32 = arith.constant 0 : i32
    %0 = arith.cmpi eq, %c2_i32, %c0_i32 : i32
    %c1_i32 = arith.constant 1 : i32
    %1 = arith.select %0, %c1_i32, %c2_i32 : i32
    %2 = arith.remsi %arg1, %1 : i32
    %c0_i32_0 = arith.constant 0 : i32
    %3 = arith.cmpi ne, %2, %c0_i32_0 : i32
    %c0_i32_1 = arith.constant 0 : i32
    %4 = arith.cmpi slt, %2, %c0_i32_1 : i32
    %c0_i32_2 = arith.constant 0 : i32
    %5 = arith.cmpi slt, %1, %c0_i32_2 : i32
    %6 = arith.xori %4, %5 : i1
    %7 = arith.andi %6, %3 : i1
    %8 = arith.addi %2, %1 : i32
    %9 = arith.select %7, %8, %2 : i32
    %c0_i32_3 = arith.constant 0 : i32
    %10 = arith.cmpi eq, %arg1, %c0_i32_3 : i32
    %11 = arith.extui %10 : i1 to i32
    %c0_i32_4 = arith.constant 0 : i32
    %12 = arith.cmpi ne, %11, %c0_i32_4 : i32
    scf.if %12 {
      %c0_i32_85 = arith.constant 0 : i32
      %c0_i32_86 = arith.constant 0 : i32
      %c0_i32_87 = arith.constant 0 : i32
      %c0_i32_88 = arith.constant 0 : i32
      %221 = tpu.memref_slice %arg2[%arg0, %c0_i32_87, %c0_i32_88] : memref<2x408x128xf32, #tpu.memory_space<any>> -> memref<1x152x128xf32, #tpu.memory_space<any>>
      %222 = tpu.memref_squeeze %221 : memref<1x152x128xf32, #tpu.memory_space<any>> -> memref<152x128xf32, #tpu.memory_space<any>>
      %c0_i32_89 = arith.constant 0 : i32
      %c0_i32_90 = arith.constant 0 : i32
      %223 = tpu.memref_slice %arg8[%c0_i32_85, %c0_i32_89, %c0_i32_90] : memref<2x152x128xf32, #tpu.memory_space<vmem>> -> memref<1x152x128xf32, #tpu.memory_space<vmem>>
      %224 = tpu.memref_squeeze %223 : memref<1x152x128xf32, #tpu.memory_space<vmem>> -> memref<152x128xf32, #tpu.memory_space<vmem>>
      %225 = tpu.memref_slice %arg9[%c0_i32_86] : memref<2x!tpu.dma_semaphore, #tpu.memory_space<semaphore_mem>> -> memref<1x!tpu.dma_semaphore, #tpu.memory_space<semaphore_mem>>
      %226 = tpu.memref_squeeze %225 : memref<1x!tpu.dma_semaphore, #tpu.memory_space<semaphore_mem>> -> memref<!tpu.dma_semaphore, #tpu.memory_space<semaphore_mem>>
      tpu.enqueue_dma source(%222 : memref<152x128xf32, #tpu.memory_space<any>>) target(%224 : memref<152x128xf32, #tpu.memory_space<vmem>>) target_semaphore(%226 : memref<!tpu.dma_semaphore, #tpu.memory_space<semaphore_mem>>)
    } else {
    }
    %c1_i32_5 = arith.constant 1 : i32
    %13 = arith.addi %arg1, %c1_i32_5 : i32
    %c3_i32 = arith.constant 3 : i32
    %14 = arith.cmpi slt, %13, %c3_i32 : i32
    %15 = arith.extui %14 : i1 to i32
    %c0_i32_6 = arith.constant 0 : i32
    %16 = arith.cmpi ne, %15, %c0_i32_6 : i32
    scf.if %16 {
      %c1_i32_85 = arith.constant 1 : i32
      %221 = arith.addi %arg1, %c1_i32_85 : i32
      %c1_i32_86 = arith.constant 1 : i32
      %222 = arith.subi %c1_i32_86, %9 : i32
      %c128_i32_87 = arith.constant 128 : i32
      %223 = arith.muli %221, %c128_i32_87 : i32
      %c0_i32_88 = arith.constant 0 : i32
      %224 = tpu.memref_slice %arg2[%arg0, %223, %c0_i32_88] : memref<2x408x128xf32, #tpu.memory_space<any>> -> memref<1x152x128xf32, #tpu.memory_space<any>>
      %225 = tpu.memref_squeeze %224 : memref<1x152x128xf32, #tpu.memory_space<any>> -> memref<152x128xf32, #tpu.memory_space<any>>
      %c0_i32_89 = arith.constant 0 : i32
      %c0_i32_90 = arith.constant 0 : i32
      %226 = tpu.memref_slice %arg8[%222, %c0_i32_89, %c0_i32_90] : memref<2x152x128xf32, #tpu.memory_space<vmem>> -> memref<1x152x128xf32, #tpu.memory_space<vmem>>
      %227 = tpu.memref_squeeze %226 : memref<1x152x128xf32, #tpu.memory_space<vmem>> -> memref<152x128xf32, #tpu.memory_space<vmem>>
      %228 = tpu.memref_slice %arg9[%222] : memref<2x!tpu.dma_semaphore, #tpu.memory_space<semaphore_mem>> -> memref<1x!tpu.dma_semaphore, #tpu.memory_space<semaphore_mem>>
      %229 = tpu.memref_squeeze %228 : memref<1x!tpu.dma_semaphore, #tpu.memory_space<semaphore_mem>> -> memref<!tpu.dma_semaphore, #tpu.memory_space<semaphore_mem>>
      tpu.enqueue_dma source(%225 : memref<152x128xf32, #tpu.memory_space<any>>) target(%227 : memref<152x128xf32, #tpu.memory_space<vmem>>) target_semaphore(%229 : memref<!tpu.dma_semaphore, #tpu.memory_space<semaphore_mem>>)
    } else {
    }
    %c128_i32 = arith.constant 128 : i32
    %17 = arith.muli %arg1, %c128_i32 : i32
    %c0_i32_7 = arith.constant 0 : i32
    %18 = tpu.memref_slice %arg2[%arg0, %17, %c0_i32_7] : memref<2x408x128xf32, #tpu.memory_space<any>> -> memref<1x152x128xf32, #tpu.memory_space<any>>
    %19 = tpu.memref_squeeze %18 : memref<1x152x128xf32, #tpu.memory_space<any>> -> memref<152x128xf32, #tpu.memory_space<any>>
    %c0_i32_8 = arith.constant 0 : i32
    %c0_i32_9 = arith.constant 0 : i32
    %20 = tpu.memref_slice %arg8[%9, %c0_i32_8, %c0_i32_9] : memref<2x152x128xf32, #tpu.memory_space<vmem>> -> memref<1x152x128xf32, #tpu.memory_space<vmem>>
    %21 = tpu.memref_squeeze %20 : memref<1x152x128xf32, #tpu.memory_space<vmem>> -> memref<152x128xf32, #tpu.memory_space<vmem>>
    %22 = tpu.memref_slice %arg9[%9] : memref<2x!tpu.dma_semaphore, #tpu.memory_space<semaphore_mem>> -> memref<1x!tpu.dma_semaphore, #tpu.memory_space<semaphore_mem>>
    %23 = tpu.memref_squeeze %22 : memref<1x!tpu.dma_semaphore, #tpu.memory_space<semaphore_mem>> -> memref<!tpu.dma_semaphore, #tpu.memory_space<semaphore_mem>>
    tpu.wait_dma2 semaphore(%23 : memref<!tpu.dma_semaphore, #tpu.memory_space<semaphore_mem>>) src(%19 : memref<152x128xf32, #tpu.memory_space<any>>) dst(%21 : memref<152x128xf32, #tpu.memory_space<vmem>>)
    %24 = arith.index_cast %9 : i32 to index
    %c0 = arith.constant 0 : index
    %c0_10 = arith.constant 0 : index
    %25 = vector.load %arg8[%24, %c0, %c0_10] : memref<2x152x128xf32, #tpu.memory_space<vmem>>, vector<1x152x128xf32>
    %26 = vector.shape_cast %25 : vector<1x152x128xf32> to vector<152x128xf32>
    %27 = tpu.iota {dimensions = array<i32: 0>} : vector<152x1xi32>
    %c128_i32_11 = arith.constant 128 : i32
    %28 = arith.muli %arg1, %c128_i32_11 : i32
    %c12_i32 = arith.constant 12 : i32
    %29 = arith.subi %28, %c12_i32 : i32
    %30 = vector.broadcast %29 : i32 to vector<152x1xi32>
    %31 = arith.addi %27, %30 : vector<152x1xi32>
    %c0_i32_12 = arith.constant 0 : i32
    %32 = vector.broadcast %c0_i32_12 : i32 to vector<152x1xi32>
    %33 = arith.cmpi sge, %31, %32 : vector<152x1xi32>
    %c300_i32 = arith.constant 300 : i32
    %34 = vector.broadcast %c300_i32 : i32 to vector<152x1xi32>
    %35 = arith.cmpi slt, %31, %34 : vector<152x1xi32>
    %36 = arith.andi %33, %35 : vector<152x1xi1>
    %37 = arith.extui %36 : vector<152x1xi1> to vector<152x1xi32>
    %38 = arith.sitofp %37 : vector<152x1xi32> to vector<152x1xf32>
    %cst = arith.constant 0.000000e+00 : f32
    %39 = vector.broadcast %cst : f32 to vector<152x128xf32>
    %40 = arith.cmpf oge, %26, %39 : vector<152x128xf32>
    %cst_13 = arith.constant 1.000000e-01 : f32
    %41 = vector.broadcast %cst_13 : f32 to vector<152x128xf32>
    %42 = arith.mulf %41, %26 : vector<152x128xf32>
    %43 = arith.select %40, %26, %42 : vector<152x128xi1>, vector<152x128xf32>
    %44 = vector.broadcast %38 : vector<152x1xf32> to vector<152x128xf32>
    %45 = arith.mulf %43, %44 : vector<152x128xf32>
    %c0_14 = arith.constant 0 : index
    %c0_15 = arith.constant 0 : index
    %c0_16 = arith.constant 0 : index
    %c0_17 = arith.constant 0 : index
    %46 = vector.load %arg3[%c0_14, %c0_15, %c0_16, %c0_17] : memref<3x3x128x128xbf16, #tpu.memory_space<vmem>>, vector<1x3x128x128xbf16>
    %47 = vector.shape_cast %46 : vector<1x3x128x128xbf16> to vector<3x128x128xbf16>
    %c0_18 = arith.constant 0 : index
    %c0_19 = arith.constant 0 : index
    %c0_20 = arith.constant 0 : index
    %48 = vector.load %arg4[%c0_18, %c0_19, %c0_20] : memref<3x1x128xf32, #tpu.memory_space<vmem>>, vector<1x1x128xf32>
    %49 = vector.shape_cast %48 : vector<1x1x128xf32> to vector<1x128xf32>
    %50 = arith.truncf %45 : vector<152x128xf32> to vector<152x128xbf16>
    %51 = vector.extract_strided_slice %50 {offsets = [0, 0], sizes = [150, 128], strides = [1, 1]} : vector<152x128xbf16> to vector<150x128xbf16>
    %52 = vector.extract_strided_slice %47 {offsets = [0, 0, 0], sizes = [1, 128, 128], strides = [1, 1, 1]} : vector<3x128x128xbf16> to vector<1x128x128xbf16>
    %53 = vector.shape_cast %52 : vector<1x128x128xbf16> to vector<128x128xbf16>
    %cst_21 = arith.constant dense<0.000000e+00> : vector<150x128xf32>
    %54 = tpu.matmul %51, %53, %cst_21 {dimension_numbers = #tpu.dot_dimension_numbers<[1], [0], [0], [1], [0, 0, 1, 1], [], []>} : vector<150x128xbf16>, vector<128x128xbf16>, vector<150x128xf32> -> vector<150x128xf32>
    %55 = vector.extract_strided_slice %50 {offsets = [1, 0], sizes = [150, 128], strides = [1, 1]} : vector<152x128xbf16> to vector<150x128xbf16>
    %56 = vector.extract_strided_slice %47 {offsets = [1, 0, 0], sizes = [1, 128, 128], strides = [1, 1, 1]} : vector<3x128x128xbf16> to vector<1x128x128xbf16>
    %57 = vector.shape_cast %56 : vector<1x128x128xbf16> to vector<128x128xbf16>
    %cst_22 = arith.constant dense<0.000000e+00> : vector<150x128xf32>
    %58 = tpu.matmul %55, %57, %cst_22 {dimension_numbers = #tpu.dot_dimension_numbers<[1], [0], [0], [1], [0, 0, 1, 1], [], []>} : vector<150x128xbf16>, vector<128x128xbf16>, vector<150x128xf32> -> vector<150x128xf32>
    %59 = arith.addf %54, %58 : vector<150x128xf32>
    %60 = vector.extract_strided_slice %50 {offsets = [2, 0], sizes = [150, 128], strides = [1, 1]} : vector<152x128xbf16> to vector<150x128xbf16>
    %61 = vector.extract_strided_slice %47 {offsets = [2, 0, 0], sizes = [1, 128, 128], strides = [1, 1, 1]} : vector<3x128x128xbf16> to vector<1x128x128xbf16>
    %62 = vector.shape_cast %61 : vector<1x128x128xbf16> to vector<128x128xbf16>
    %cst_23 = arith.constant dense<0.000000e+00> : vector<150x128xf32>
    %63 = tpu.matmul %60, %62, %cst_23 {dimension_numbers = #tpu.dot_dimension_numbers<[1], [0], [0], [1], [0, 0, 1, 1], [], []>} : vector<150x128xbf16>, vector<128x128xbf16>, vector<150x128xf32> -> vector<150x128xf32>
    %64 = arith.addf %59, %63 : vector<150x128xf32>
    %65 = vector.broadcast %49 : vector<1x128xf32> to vector<150x128xf32>
    %66 = arith.addf %64, %65 : vector<150x128xf32>
    %cst_24 = arith.constant 0.000000e+00 : f32
    %67 = vector.broadcast %cst_24 : f32 to vector<150x128xf32>
    %68 = arith.cmpf oge, %66, %67 : vector<150x128xf32>
    %cst_25 = arith.constant 1.000000e-01 : f32
    %69 = vector.broadcast %cst_25 : f32 to vector<150x128xf32>
    %70 = arith.mulf %69, %66 : vector<150x128xf32>
    %71 = arith.select %68, %66, %70 : vector<150x128xi1>, vector<150x128xf32>
    %72 = vector.extract_strided_slice %38 {offsets = [1, 0], sizes = [150, 1], strides = [1, 1]} : vector<152x1xf32> to vector<150x1xf32>
    %73 = vector.broadcast %72 : vector<150x1xf32> to vector<150x128xf32>
    %74 = arith.mulf %71, %73 : vector<150x128xf32>
    %c0_26 = arith.constant 0 : index
    %c0_27 = arith.constant 0 : index
    %c0_28 = arith.constant 0 : index
    %c0_29 = arith.constant 0 : index
    %75 = vector.load %arg5[%c0_26, %c0_27, %c0_28, %c0_29] : memref<3x3x128x128xbf16, #tpu.memory_space<vmem>>, vector<1x3x128x128xbf16>
    %76 = vector.shape_cast %75 : vector<1x3x128x128xbf16> to vector<3x128x128xbf16>
    %c0_30 = arith.constant 0 : index
    %c0_31 = arith.constant 0 : index
    %c0_32 = arith.constant 0 : index
    %77 = vector.load %arg6[%c0_30, %c0_31, %c0_32] : memref<3x1x128xf32, #tpu.memory_space<vmem>>, vector<1x1x128xf32>
    %78 = vector.shape_cast %77 : vector<1x1x128xf32> to vector<1x128xf32>
    %79 = arith.truncf %74 : vector<150x128xf32> to vector<150x128xbf16>
    %80 = vector.extract_strided_slice %79 {offsets = [0, 0], sizes = [148, 128], strides = [1, 1]} : vector<150x128xbf16> to vector<148x128xbf16>
    %81 = vector.extract_strided_slice %76 {offsets = [0, 0, 0], sizes = [1, 128, 128], strides = [1, 1, 1]} : vector<3x128x128xbf16> to vector<1x128x128xbf16>
    %82 = vector.shape_cast %81 : vector<1x128x128xbf16> to vector<128x128xbf16>
    %cst_33 = arith.constant dense<0.000000e+00> : vector<148x128xf32>
    %83 = tpu.matmul %80, %82, %cst_33 {dimension_numbers = #tpu.dot_dimension_numbers<[1], [0], [0], [1], [0, 0, 1, 1], [], []>} : vector<148x128xbf16>, vector<128x128xbf16>, vector<148x128xf32> -> vector<148x128xf32>
    %84 = vector.extract_strided_slice %79 {offsets = [1, 0], sizes = [148, 128], strides = [1, 1]} : vector<150x128xbf16> to vector<148x128xbf16>
    %85 = vector.extract_strided_slice %76 {offsets = [1, 0, 0], sizes = [1, 128, 128], strides = [1, 1, 1]} : vector<3x128x128xbf16> to vector<1x128x128xbf16>
    %86 = vector.shape_cast %85 : vector<1x128x128xbf16> to vector<128x128xbf16>
    %cst_34 = arith.constant dense<0.000000e+00> : vector<148x128xf32>
    %87 = tpu.matmul %84, %86, %cst_34 {dimension_numbers = #tpu.dot_dimension_numbers<[1], [0], [0], [1], [0, 0, 1, 1], [], []>} : vector<148x128xbf16>, vector<128x128xbf16>, vector<148x128xf32> -> vector<148x128xf32>
    %88 = arith.addf %83, %87 : vector<148x128xf32>
    %89 = vector.extract_strided_slice %79 {offsets = [2, 0], sizes = [148, 128], strides = [1, 1]} : vector<150x128xbf16> to vector<148x128xbf16>
    %90 = vector.extract_strided_slice %76 {offsets = [2, 0, 0], sizes = [1, 128, 128], strides = [1, 1, 1]} : vector<3x128x128xbf16> to vector<1x128x128xbf16>
    %91 = vector.shape_cast %90 : vector<1x128x128xbf16> to vector<128x128xbf16>
    %cst_35 = arith.constant dense<0.000000e+00> : vector<148x128xf32>
    %92 = tpu.matmul %89, %91, %cst_35 {dimension_numbers = #tpu.dot_dimension_numbers<[1], [0], [0], [1], [0, 0, 1, 1], [], []>} : vector<148x128xbf16>, vector<128x128xbf16>, vector<148x128xf32> -> vector<148x128xf32>
    %93 = arith.addf %88, %92 : vector<148x128xf32>
    %94 = vector.broadcast %78 : vector<1x128xf32> to vector<148x128xf32>
    %95 = arith.addf %93, %94 : vector<148x128xf32>
    %96 = vector.extract_strided_slice %26 {offsets = [2, 0], sizes = [148, 128], strides = [1, 1]} : vector<152x128xf32> to vector<148x128xf32>
    %97 = arith.addf %95, %96 : vector<148x128xf32>
    %cst_36 = arith.constant 0.000000e+00 : f32
    %98 = vector.broadcast %cst_36 : f32 to vector<148x128xf32>
    %99 = arith.cmpf oge, %97, %98 : vector<148x128xf32>
    %cst_37 = arith.constant 1.000000e-01 : f32
    %100 = vector.broadcast %cst_37 : f32 to vector<148x128xf32>
    %101 = arith.mulf %100, %97 : vector<148x128xf32>
    %102 = arith.select %99, %97, %101 : vector<148x128xi1>, vector<148x128xf32>
    %103 = vector.extract_strided_slice %38 {offsets = [2, 0], sizes = [148, 1], strides = [1, 1]} : vector<152x1xf32> to vector<148x1xf32>
    %104 = vector.broadcast %103 : vector<148x1xf32> to vector<148x128xf32>
    %105 = arith.mulf %102, %104 : vector<148x128xf32>
    %c1 = arith.constant 1 : index
    %c0_38 = arith.constant 0 : index
    %c0_39 = arith.constant 0 : index
    %c0_40 = arith.constant 0 : index
    %106 = vector.load %arg3[%c1, %c0_38, %c0_39, %c0_40] : memref<3x3x128x128xbf16, #tpu.memory_space<vmem>>, vector<1x3x128x128xbf16>
    %107 = vector.shape_cast %106 : vector<1x3x128x128xbf16> to vector<3x128x128xbf16>
    %c1_41 = arith.constant 1 : index
    %c0_42 = arith.constant 0 : index
    %c0_43 = arith.constant 0 : index
    %108 = vector.load %arg4[%c1_41, %c0_42, %c0_43] : memref<3x1x128xf32, #tpu.memory_space<vmem>>, vector<1x1x128xf32>
    %109 = vector.shape_cast %108 : vector<1x1x128xf32> to vector<1x128xf32>
    %110 = arith.truncf %105 : vector<148x128xf32> to vector<148x128xbf16>
    %111 = vector.extract_strided_slice %110 {offsets = [0, 0], sizes = [142, 128], strides = [1, 1]} : vector<148x128xbf16> to vector<142x128xbf16>
    %112 = vector.extract_strided_slice %107 {offsets = [0, 0, 0], sizes = [1, 128, 128], strides = [1, 1, 1]} : vector<3x128x128xbf16> to vector<1x128x128xbf16>
    %113 = vector.shape_cast %112 : vector<1x128x128xbf16> to vector<128x128xbf16>
    %cst_44 = arith.constant dense<0.000000e+00> : vector<142x128xf32>
    %114 = tpu.matmul %111, %113, %cst_44 {dimension_numbers = #tpu.dot_dimension_numbers<[1], [0], [0], [1], [0, 0, 1, 1], [], []>} : vector<142x128xbf16>, vector<128x128xbf16>, vector<142x128xf32> -> vector<142x128xf32>
    %115 = vector.extract_strided_slice %110 {offsets = [3, 0], sizes = [142, 128], strides = [1, 1]} : vector<148x128xbf16> to vector<142x128xbf16>
    %116 = vector.extract_strided_slice %107 {offsets = [1, 0, 0], sizes = [1, 128, 128], strides = [1, 1, 1]} : vector<3x128x128xbf16> to vector<1x128x128xbf16>
    %117 = vector.shape_cast %116 : vector<1x128x128xbf16> to vector<128x128xbf16>
    %cst_45 = arith.constant dense<0.000000e+00> : vector<142x128xf32>
    %118 = tpu.matmul %115, %117, %cst_45 {dimension_numbers = #tpu.dot_dimension_numbers<[1], [0], [0], [1], [0, 0, 1, 1], [], []>} : vector<142x128xbf16>, vector<128x128xbf16>, vector<142x128xf32> -> vector<142x128xf32>
    %119 = arith.addf %114, %118 : vector<142x128xf32>
    %120 = vector.extract_strided_slice %110 {offsets = [6, 0], sizes = [142, 128], strides = [1, 1]} : vector<148x128xbf16> to vector<142x128xbf16>
    %121 = vector.extract_strided_slice %107 {offsets = [2, 0, 0], sizes = [1, 128, 128], strides = [1, 1, 1]} : vector<3x128x128xbf16> to vector<1x128x128xbf16>
    %122 = vector.shape_cast %121 : vector<1x128x128xbf16> to vector<128x128xbf16>
    %cst_46 = arith.constant dense<0.000000e+00> : vector<142x128xf32>
    %123 = tpu.matmul %120, %122, %cst_46 {dimension_numbers = #tpu.dot_dimension_numbers<[1], [0], [0], [1], [0, 0, 1, 1], [], []>} : vector<142x128xbf16>, vector<128x128xbf16>, vector<142x128xf32> -> vector<142x128xf32>
    %124 = arith.addf %119, %123 : vector<142x128xf32>
    %125 = vector.broadcast %109 : vector<1x128xf32> to vector<142x128xf32>
    %126 = arith.addf %124, %125 : vector<142x128xf32>
    %cst_47 = arith.constant 0.000000e+00 : f32
    %127 = vector.broadcast %cst_47 : f32 to vector<142x128xf32>
    %128 = arith.cmpf oge, %126, %127 : vector<142x128xf32>
    %cst_48 = arith.constant 1.000000e-01 : f32
    %129 = vector.broadcast %cst_48 : f32 to vector<142x128xf32>
    %130 = arith.mulf %129, %126 : vector<142x128xf32>
    %131 = arith.select %128, %126, %130 : vector<142x128xi1>, vector<142x128xf32>
    %132 = vector.extract_strided_slice %38 {offsets = [5, 0], sizes = [142, 1], strides = [1, 1]} : vector<152x1xf32> to vector<142x1xf32>
    %133 = vector.broadcast %132 : vector<142x1xf32> to vector<142x128xf32>
    %134 = arith.mulf %131, %133 : vector<142x128xf32>
    %c1_49 = arith.constant 1 : index
    %c0_50 = arith.constant 0 : index
    %c0_51 = arith.constant 0 : index
    %c0_52 = arith.constant 0 : index
    %135 = vector.load %arg5[%c1_49, %c0_50, %c0_51, %c0_52] : memref<3x3x128x128xbf16, #tpu.memory_space<vmem>>, vector<1x3x128x128xbf16>
    %136 = vector.shape_cast %135 : vector<1x3x128x128xbf16> to vector<3x128x128xbf16>
    %c1_53 = arith.constant 1 : index
    %c0_54 = arith.constant 0 : index
    %c0_55 = arith.constant 0 : index
    %137 = vector.load %arg6[%c1_53, %c0_54, %c0_55] : memref<3x1x128xf32, #tpu.memory_space<vmem>>, vector<1x1x128xf32>
    %138 = vector.shape_cast %137 : vector<1x1x128xf32> to vector<1x128xf32>
    %139 = arith.truncf %134 : vector<142x128xf32> to vector<142x128xbf16>
    %140 = vector.extract_strided_slice %139 {offsets = [0, 0], sizes = [140, 128], strides = [1, 1]} : vector<142x128xbf16> to vector<140x128xbf16>
    %141 = vector.extract_strided_slice %136 {offsets = [0, 0, 0], sizes = [1, 128, 128], strides = [1, 1, 1]} : vector<3x128x128xbf16> to vector<1x128x128xbf16>
    %142 = vector.shape_cast %141 : vector<1x128x128xbf16> to vector<128x128xbf16>
    %cst_56 = arith.constant dense<0.000000e+00> : vector<140x128xf32>
    %143 = tpu.matmul %140, %142, %cst_56 {dimension_numbers = #tpu.dot_dimension_numbers<[1], [0], [0], [1], [0, 0, 1, 1], [], []>} : vector<140x128xbf16>, vector<128x128xbf16>, vector<140x128xf32> -> vector<140x128xf32>
    %144 = vector.extract_strided_slice %139 {offsets = [1, 0], sizes = [140, 128], strides = [1, 1]} : vector<142x128xbf16> to vector<140x128xbf16>
    %145 = vector.extract_strided_slice %136 {offsets = [1, 0, 0], sizes = [1, 128, 128], strides = [1, 1, 1]} : vector<3x128x128xbf16> to vector<1x128x128xbf16>
    %146 = vector.shape_cast %145 : vector<1x128x128xbf16> to vector<128x128xbf16>
    %cst_57 = arith.constant dense<0.000000e+00> : vector<140x128xf32>
    %147 = tpu.matmul %144, %146, %cst_57 {dimension_numbers = #tpu.dot_dimension_numbers<[1], [0], [0], [1], [0, 0, 1, 1], [], []>} : vector<140x128xbf16>, vector<128x128xbf16>, vector<140x128xf32> -> vector<140x128xf32>
    %148 = arith.addf %143, %147 : vector<140x128xf32>
    %149 = vector.extract_strided_slice %139 {offsets = [2, 0], sizes = [140, 128], strides = [1, 1]} : vector<142x128xbf16> to vector<140x128xbf16>
    %150 = vector.extract_strided_slice %136 {offsets = [2, 0, 0], sizes = [1, 128, 128], strides = [1, 1, 1]} : vector<3x128x128xbf16> to vector<1x128x128xbf16>
    %151 = vector.shape_cast %150 : vector<1x128x128xbf16> to vector<128x128xbf16>
    %cst_58 = arith.constant dense<0.000000e+00> : vector<140x128xf32>
    %152 = tpu.matmul %149, %151, %cst_58 {dimension_numbers = #tpu.dot_dimension_numbers<[1], [0], [0], [1], [0, 0, 1, 1], [], []>} : vector<140x128xbf16>, vector<128x128xbf16>, vector<140x128xf32> -> vector<140x128xf32>
    %153 = arith.addf %148, %152 : vector<140x128xf32>
    %154 = vector.broadcast %138 : vector<1x128xf32> to vector<140x128xf32>
    %155 = arith.addf %153, %154 : vector<140x128xf32>
    %156 = vector.extract_strided_slice %97 {offsets = [4, 0], sizes = [140, 128], strides = [1, 1]} : vector<148x128xf32> to vector<140x128xf32>
    %157 = arith.addf %155, %156 : vector<140x128xf32>
    %cst_59 = arith.constant 0.000000e+00 : f32
    %158 = vector.broadcast %cst_59 : f32 to vector<140x128xf32>
    %159 = arith.cmpf oge, %157, %158 : vector<140x128xf32>
    %cst_60 = arith.constant 1.000000e-01 : f32
    %160 = vector.broadcast %cst_60 : f32 to vector<140x128xf32>
    %161 = arith.mulf %160, %157 : vector<140x128xf32>
    %162 = arith.select %159, %157, %161 : vector<140x128xi1>, vector<140x128xf32>
    %163 = vector.extract_strided_slice %38 {offsets = [6, 0], sizes = [140, 1], strides = [1, 1]} : vector<152x1xf32> to vector<140x1xf32>
    %164 = vector.broadcast %163 : vector<140x1xf32> to vector<140x128xf32>
    %165 = arith.mulf %162, %164 : vector<140x128xf32>
    %c2 = arith.constant 2 : index
    %c0_61 = arith.constant 0 : index
    %c0_62 = arith.constant 0 : index
    %c0_63 = arith.constant 0 : index
    %166 = vector.load %arg3[%c2, %c0_61, %c0_62, %c0_63] : memref<3x3x128x128xbf16, #tpu.memory_space<vmem>>, vector<1x3x128x128xbf16>
    %167 = vector.shape_cast %166 : vector<1x3x128x128xbf16> to vector<3x128x128xbf16>
    %c2_64 = arith.constant 2 : index
    %c0_65 = arith.constant 0 : index
    %c0_66 = arith.constant 0 : index
    %168 = vector.load %arg4[%c2_64, %c0_65, %c0_66] : memref<3x1x128xf32, #tpu.memory_space<vmem>>, vector<1x1x128xf32>
    %169 = vector.shape_cast %168 : vector<1x1x128xf32> to vector<1x128xf32>
    %170 = arith.truncf %165 : vector<140x128xf32> to vector<140x128xbf16>
    %171 = vector.extract_strided_slice %170 {offsets = [0, 0], sizes = [130, 128], strides = [1, 1]} : vector<140x128xbf16> to vector<130x128xbf16>
    %172 = vector.extract_strided_slice %167 {offsets = [0, 0, 0], sizes = [1, 128, 128], strides = [1, 1, 1]} : vector<3x128x128xbf16> to vector<1x128x128xbf16>
    %173 = vector.shape_cast %172 : vector<1x128x128xbf16> to vector<128x128xbf16>
    %cst_67 = arith.constant dense<0.000000e+00> : vector<130x128xf32>
    %174 = tpu.matmul %171, %173, %cst_67 {dimension_numbers = #tpu.dot_dimension_numbers<[1], [0], [0], [1], [0, 0, 1, 1], [], []>} : vector<130x128xbf16>, vector<128x128xbf16>, vector<130x128xf32> -> vector<130x128xf32>
    %175 = vector.extract_strided_slice %170 {offsets = [5, 0], sizes = [130, 128], strides = [1, 1]} : vector<140x128xbf16> to vector<130x128xbf16>
    %176 = vector.extract_strided_slice %167 {offsets = [1, 0, 0], sizes = [1, 128, 128], strides = [1, 1, 1]} : vector<3x128x128xbf16> to vector<1x128x128xbf16>
    %177 = vector.shape_cast %176 : vector<1x128x128xbf16> to vector<128x128xbf16>
    %cst_68 = arith.constant dense<0.000000e+00> : vector<130x128xf32>
    %178 = tpu.matmul %175, %177, %cst_68 {dimension_numbers = #tpu.dot_dimension_numbers<[1], [0], [0], [1], [0, 0, 1, 1], [], []>} : vector<130x128xbf16>, vector<128x128xbf16>, vector<130x128xf32> -> vector<130x128xf32>
    %179 = arith.addf %174, %178 : vector<130x128xf32>
    %180 = vector.extract_strided_slice %170 {offsets = [10, 0], sizes = [130, 128], strides = [1, 1]} : vector<140x128xbf16> to vector<130x128xbf16>
    %181 = vector.extract_strided_slice %167 {offsets = [2, 0, 0], sizes = [1, 128, 128], strides = [1, 1, 1]} : vector<3x128x128xbf16> to vector<1x128x128xbf16>
    %182 = vector.shape_cast %181 : vector<1x128x128xbf16> to vector<128x128xbf16>
    %cst_69 = arith.constant dense<0.000000e+00> : vector<130x128xf32>
    %183 = tpu.matmul %180, %182, %cst_69 {dimension_numbers = #tpu.dot_dimension_numbers<[1], [0], [0], [1], [0, 0, 1, 1], [], []>} : vector<130x128xbf16>, vector<128x128xbf16>, vector<130x128xf32> -> vector<130x128xf32>
    %184 = arith.addf %179, %183 : vector<130x128xf32>
    %185 = vector.broadcast %169 : vector<1x128xf32> to vector<130x128xf32>
    %186 = arith.addf %184, %185 : vector<130x128xf32>
    %cst_70 = arith.constant 0.000000e+00 : f32
    %187 = vector.broadcast %cst_70 : f32 to vector<130x128xf32>
    %188 = arith.cmpf oge, %186, %187 : vector<130x128xf32>
    %cst_71 = arith.constant 1.000000e-01 : f32
    %189 = vector.broadcast %cst_71 : f32 to vector<130x128xf32>
    %190 = arith.mulf %189, %186 : vector<130x128xf32>
    %191 = arith.select %188, %186, %190 : vector<130x128xi1>, vector<130x128xf32>
    %192 = vector.extract_strided_slice %38 {offsets = [11, 0], sizes = [130, 1], strides = [1, 1]} : vector<152x1xf32> to vector<130x1xf32>
    %193 = vector.broadcast %192 : vector<130x1xf32> to vector<130x128xf32>
    %194 = arith.mulf %191, %193 : vector<130x128xf32>
    %c2_72 = arith.constant 2 : index
    %c0_73 = arith.constant 0 : index
    %c0_74 = arith.constant 0 : index
    %c0_75 = arith.constant 0 : index
    %195 = vector.load %arg5[%c2_72, %c0_73, %c0_74, %c0_75] : memref<3x3x128x128xbf16, #tpu.memory_space<vmem>>, vector<1x3x128x128xbf16>
    %196 = vector.shape_cast %195 : vector<1x3x128x128xbf16> to vector<3x128x128xbf16>
    %c2_76 = arith.constant 2 : index
    %c0_77 = arith.constant 0 : index
    %c0_78 = arith.constant 0 : index
    %197 = vector.load %arg6[%c2_76, %c0_77, %c0_78] : memref<3x1x128xf32, #tpu.memory_space<vmem>>, vector<1x1x128xf32>
    %198 = vector.shape_cast %197 : vector<1x1x128xf32> to vector<1x128xf32>
    %199 = arith.truncf %194 : vector<130x128xf32> to vector<130x128xbf16>
    %200 = vector.extract_strided_slice %199 {offsets = [0, 0], sizes = [128, 128], strides = [1, 1]} : vector<130x128xbf16> to vector<128x128xbf16>
    %201 = vector.extract_strided_slice %196 {offsets = [0, 0, 0], sizes = [1, 128, 128], strides = [1, 1, 1]} : vector<3x128x128xbf16> to vector<1x128x128xbf16>
    %202 = vector.shape_cast %201 : vector<1x128x128xbf16> to vector<128x128xbf16>
    %cst_79 = arith.constant dense<0.000000e+00> : vector<128x128xf32>
    %203 = tpu.matmul %200, %202, %cst_79 {dimension_numbers = #tpu.dot_dimension_numbers<[1], [0], [0], [1], [0, 0, 1, 1], [], []>} : vector<128x128xbf16>, vector<128x128xbf16>, vector<128x128xf32> -> vector<128x128xf32>
    %204 = vector.extract_strided_slice %199 {offsets = [1, 0], sizes = [128, 128], strides = [1, 1]} : vector<130x128xbf16> to vector<128x128xbf16>
    %205 = vector.extract_strided_slice %196 {offsets = [1, 0, 0], sizes = [1, 128, 128], strides = [1, 1, 1]} : vector<3x128x128xbf16> to vector<1x128x128xbf16>
    %206 = vector.shape_cast %205 : vector<1x128x128xbf16> to vector<128x128xbf16>
    %cst_80 = arith.constant dense<0.000000e+00> : vector<128x128xf32>
    %207 = tpu.matmul %204, %206, %cst_80 {dimension_numbers = #tpu.dot_dimension_numbers<[1], [0], [0], [1], [0, 0, 1, 1], [], []>} : vector<128x128xbf16>, vector<128x128xbf16>, vector<128x128xf32> -> vector<128x128xf32>
    %208 = arith.addf %203, %207 : vector<128x128xf32>
    %209 = vector.extract_strided_slice %199 {offsets = [2, 0], sizes = [128, 128], strides = [1, 1]} : vector<130x128xbf16> to vector<128x128xbf16>
    %210 = vector.extract_strided_slice %196 {offsets = [2, 0, 0], sizes = [1, 128, 128], strides = [1, 1, 1]} : vector<3x128x128xbf16> to vector<1x128x128xbf16>
    %211 = vector.shape_cast %210 : vector<1x128x128xbf16> to vector<128x128xbf16>
    %cst_81 = arith.constant dense<0.000000e+00> : vector<128x128xf32>
    %212 = tpu.matmul %209, %211, %cst_81 {dimension_numbers = #tpu.dot_dimension_numbers<[1], [0], [0], [1], [0, 0, 1, 1], [], []>} : vector<128x128xbf16>, vector<128x128xbf16>, vector<128x128xf32> -> vector<128x128xf32>
    %213 = arith.addf %208, %212 : vector<128x128xf32>
    %214 = vector.broadcast %198 : vector<1x128xf32> to vector<128x128xf32>
    %215 = arith.addf %213, %214 : vector<128x128xf32>
    %216 = vector.extract_strided_slice %157 {offsets = [6, 0], sizes = [128, 128], strides = [1, 1]} : vector<140x128xf32> to vector<128x128xf32>
    %217 = arith.addf %215, %216 : vector<128x128xf32>
    %c0_82 = arith.constant 0 : index
    %c0_83 = arith.constant 0 : index
    %c0_84 = arith.constant 0 : index
    %218 = vector.load %arg7[%c0_82, %c0_83, %c0_84] : memref<1x128x128xf32, #tpu.memory_space<vmem>>, vector<1x128x128xf32>
    %219 = vector.shape_cast %218 : vector<1x128x128xf32> to vector<128x128xf32>
    %220 = vector.shape_cast %217 : vector<128x128xf32> to vector<1x128x128xf32>
    tpu.vector_store %arg7[%c0_82, %c0_83, %c0_84], %220 {strides = array<i32>} : memref<1x128x128xf32, #tpu.memory_space<vmem>>, vector<1x128x128xf32>,
    return
  }
  func.func @transform_1(%arg0: i32, %arg1: i32) -> (i32, i32, i32, i32) {
    %c0_i32 = arith.constant 0 : i32
    %c0_i32_0 = arith.constant 0 : i32
    %c0_i32_1 = arith.constant 0 : i32
    %c0_i32_2 = arith.constant 0 : i32
    %c0_i32_3 = arith.constant 0 : i32
    return %c0_i32, %c0_i32_0, %c0_i32_1, %c0_i32_2 : i32, i32, i32, i32
  }
  func.func @transform_2(%arg0: i32, %arg1: i32) -> (i32, i32, i32) {
    %c0_i32 = arith.constant 0 : i32
    %c0_i32_0 = arith.constant 0 : i32
    %c0_i32_1 = arith.constant 0 : i32
    %c0_i32_2 = arith.constant 0 : i32
    return %c0_i32, %c0_i32_0, %c0_i32_1 : i32, i32, i32
  }
  func.func @transform_3(%arg0: i32, %arg1: i32) -> (i32, i32, i32, i32) {
    %c0_i32 = arith.constant 0 : i32
    %c0_i32_0 = arith.constant 0 : i32
    %c0_i32_1 = arith.constant 0 : i32
    %c0_i32_2 = arith.constant 0 : i32
    %c0_i32_3 = arith.constant 0 : i32
    return %c0_i32, %c0_i32_0, %c0_i32_1, %c0_i32_2 : i32, i32, i32, i32
  }
  func.func @transform_4(%arg0: i32, %arg1: i32) -> (i32, i32, i32) {
    %c0_i32 = arith.constant 0 : i32
    %c0_i32_0 = arith.constant 0 : i32
    %c0_i32_1 = arith.constant 0 : i32
    %c0_i32_2 = arith.constant 0 : i32
    return %c0_i32, %c0_i32_0, %c0_i32_1 : i32, i32, i32
  }
  func.func @transform_5(%arg0: i32, %arg1: i32) -> (i32, i32, i32) {
    %c0_i32 = arith.constant 0 : i32
    %c0_i32_0 = arith.constant 0 : i32
    return %arg0, %arg1, %c0_i32 : i32, i32, i32
  }
}

</mosaic_0001>

<llo_original>
// kernel: tpu_custom_call.1
$region0: #{tpu_custom_call.1}
  #allocation0 [shape = 'u32[]', space=smem, size = 0x4, offset = 0x4, fixed_abs, tag = 'smem constant byte address 0x4 - core index']
  #allocation1 [shape = 'u32[144,128]{1,0:T(1,128)}', space=vmem, size = 0x12000, scoped, tag = 'internal scratch']
  #allocation2 [shape = 'f32[2,152,128]{2,1,0:T(8,128)}', space=vmem, size = 0x26000, scoped, tag = 'scratch operand']
  #allocation3 [shape = 's32[2]{0}', space=sflag, size = 0x8, scoped, tag = 'scratch operand']
  #allocation10 [shape = 's32[]', space=sflag, size = 0x4, offset = 0, fixed_abs, tag = 'sflag constant byte address 0x0 - dummy sync flag']
  #allocation11 [shape = 's32[]', space=sflag, size = 0x4, offset = 0, fixed_abs, tag = 'sflag constant byte address 0x0 - dummy sync flag']
  #allocation12 [shape = 'u32[]', space=smem, size = 0x4, offset = 0x44, fixed_abs, tag = 'smem constant byte address 0x44 - assertion arg 0']
  #allocation13 [shape = 'u32[]', space=smem, size = 0x4, offset = 0x48, fixed_abs, tag = 'smem constant byte address 0x48 - assertion arg 1']
  #allocation14 [shape = 's32[]', space=sflag, size = 0x4, offset = 0, fixed_abs, tag = 'sflag constant byte address 0x0 - dummy sync flag']
  #allocation15 [shape = 's32[]', space=sflag, size = 0x4, offset = 0, fixed_abs, tag = 'sflag constant byte address 0x0 - dummy sync flag']
  %s0 = inlined_call_operand.hbm [shape: f32[2,408,128], index: 0, kind: input, shape index: {}]
  %s1 = inlined_call_operand.hbm [shape: bf16[3,3,128,128], index: 1, kind: input, shape index: {}]
  %s2 = inlined_call_operand.vmem [shape: f32[3,1,128], index: 2, kind: input, shape index: {}]
  %s3 = inlined_call_operand.hbm [shape: bf16[3,3,128,128], index: 3, kind: input, shape index: {}]
  %s4 = inlined_call_operand.vmem [shape: f32[3,1,128], index: 4, kind: input, shape index: {}]
  %s5 = inlined_call_operand.hbm [shape: f32[2,384,128], index: 5, kind: output, shape index: {}]
  %s6 = sld [smem:[#allocation0]]
  $region73: #{tpu_custom_call.1} parent=0
    _
  %s8 = ssub.s32 1, %s6
  %s9 = scalar_select 0, %s8, %s6
  $region1: #{tpu_custom_call.1} parent=0
    #allocation4 [shape = 'u8[294912]{0}', space=vmem, size = 0x48000, scoped, tag = 'input window, operand 1, single buffered']
    #allocation5 [shape = 's32[2]{0}', space=sflag, size = 0x8, scoped, tag = 'scoped memory for tpu_custom_call.1']
    #allocation6 [shape = 's32[2]{0}', space=sflag, size = 0x8, scoped, tag = 'scoped memory for tpu_custom_call.1']
    #allocation7 [shape = 'u8[294912]{0}', space=vmem, size = 0x48000, scoped, tag = 'input window, operand 3, single buffered']
    #allocation8 [shape = 's32[1]{0}', space=sflag, size = 0x4, scoped, tag = 'scoped memory for tpu_custom_call.1']
    #allocation9 [shape = 'u8[131072]{0}', space=vmem, size = 0x20000, scoped, tag = 'output window, operand 0']
    %10 = vsyncpa [#allocation5], 0
    %11 = vsyncpa [#allocation8], 0
    %12 = vsyncpa [#allocation6], 0
    %s13 = scalar_lea.sflag [#allocation6], 1
    %14 = vsyncpa %s13, 0
    loop: start=0, step=1, limit=8
    $region2: #{tpu_custom_call.1} parent=1 // loop_pre_header
      _
    $region3: #{tpu_custom_call.1} parent=1 // loop_header
      %s16 = sphi 0, %s20
      %p17 = scmp.ge.s32.totalorder %s16, 8
      %s23 = sphi 0, %s35
      %s24 = sphi 0, %s31
      %s25 = sphi 0, %s23
      %s26 = sphi 0, %s24
      %s27 = sphi 0, %s25
      %s28 = sphi 0, %s26
      %s36 = sphi 0, %s36
      %s38 = sphi 0, %s36
      %s39 = sphi 0, %s38
      %s53 = sphi 0, %s39
      %s57 = sphi 0, %s57
      %s59 = sphi 0, %s57
      %s60 = sphi 0, %s59
      %s74 = sphi 0, %s60
      %s78 = sphi 0, %s78
      %s80 = sphi 0, %s78
      %s81 = sphi 0, %s80
      %s95 = sphi 0, %s81
      %s99 = sphi 0, %s99
      %s101 = sphi 0, %s99
      %s102 = sphi 0, %s101
      %s116 = sphi 0, %s102
      %s124 = sphi 0, %s126
      %s127 = sphi 0, %s124
      %s128 = sphi 0, %s127
      %s144 = sphi 0, %s128
    $region4: #{tpu_custom_call.1} parent=1 // loop_header_branch
      %19 = sbr.rel (%p17) target = $region8
    $region5: #{tpu_custom_call.1} parent=1 // loop_body
      %s21 = ssub.s32 %s16, 1
      %s22 = ssub.s32 %s16, 2
      %s29 = sadd.s32 1, %s24
      %p30 = scmp.ge.s32.totalorder %s29, 3
      %s31 = scalar_select %p30, 0, %s29
      %s32 = sadd.s32 1, %s23
      %s33 = scalar_select %p30, %s32, %s23
      %p34 = scmp.ge.s32.totalorder %s33, 2
      %s35 = scalar_select %p34, 0, %s33
      %s37 = sadd.s32 %s36, 1
      %p40 = scmp.eq.s32.totalorder %s16, 5
      %p41 = scmp.ne.s32.totalorder %s36, %s38
      %p42 = scmp.eq.s32.totalorder %s16, 0
      %p43 = por %p41, %p42
      %p44 = scmp.ne.s32.totalorder %s36, %s38
      %p45 = scmp.eq.s32.totalorder %s21, 5
      %p46 = por %p44, %p45
      %p47 = scmp.ne.s32.totalorder %s38, %s39
      %p48 = scmp.eq.s32.totalorder %s21, 0
      %p49 = por %p47, %p48
      %p50 = scmp.ne.s32.totalorder %s38, %s39
      %p51 = scmp.eq.s32.totalorder %s22, 5
      %p52 = por %p50, %p51
      %p54 = scmp.ne.s32.totalorder %s39, %s53
      %p55 = scmp.eq.s32.totalorder %s22, 0
      %p56 = por %p54, %p55
      %s58 = sadd.s32 %s57, 1
      %p61 = scmp.eq.s32.totalorder %s16, 5
      %p62 = scmp.ne.s32.totalorder %s57, %s59
      %p63 = scmp.eq.s32.totalorder %s16, 0
      %p64 = por %p62, %p63
      %p65 = scmp.ne.s32.totalorder %s57, %s59
      %p66 = scmp.eq.s32.totalorder %s21, 5
      %p67 = por %p65, %p66
      %p68 = scmp.ne.s32.totalorder %s59, %s60
      %p69 = scmp.eq.s32.totalorder %s21, 0
      %p70 = por %p68, %p69
      %p71 = scmp.ne.s32.totalorder %s59, %s60
      %p72 = scmp.eq.s32.totalorder %s22, 5
      %p73 = por %p71, %p72
      %p75 = scmp.ne.s32.totalorder %s60, %s74
      %p76 = scmp.eq.s32.totalorder %s22, 0
      %p77 = por %p75, %p76
      %s79 = sadd.s32 %s78, 1
      %p82 = scmp.eq.s32.totalorder %s16, 5
      %p83 = scmp.ne.s32.totalorder %s78, %s80
      %p84 = scmp.eq.s32.totalorder %s16, 0
      %p85 = por %p83, %p84
      %p86 = scmp.ne.s32.totalorder %s78, %s80
      %p87 = scmp.eq.s32.totalorder %s21, 5
      %p88 = por %p86, %p87
      %p89 = scmp.ne.s32.totalorder %s80, %s81
      %p90 = scmp.eq.s32.totalorder %s21, 0
      %p91 = por %p89, %p90
      %p92 = scmp.ne.s32.totalorder %s80, %s81
      %p93 = scmp.eq.s32.totalorder %s22, 5
      %p94 = por %p92, %p93
      %p96 = scmp.ne.s32.totalorder %s81, %s95
      %p97 = scmp.eq.s32.totalorder %s22, 0
      %p98 = por %p96, %p97
      %s100 = sadd.s32 %s99, 1
      %p103 = scmp.eq.s32.totalorder %s16, 5
      %p104 = scmp.ne.s32.totalorder %s99, %s101
      %p105 = scmp.eq.s32.totalorder %s16, 0
      %p106 = por %p104, %p105
      %p107 = scmp.ne.s32.totalorder %s99, %s101
      %p108 = scmp.eq.s32.totalorder %s21, 5
      %p109 = por %p107, %p108
      %p110 = scmp.ne.s32.totalorder %s101, %s102
      %p111 = scmp.eq.s32.totalorder %s21, 0
      %p112 = por %p110, %p111
      %p113 = scmp.ne.s32.totalorder %s101, %s102
      %p114 = scmp.eq.s32.totalorder %s22, 5
      %p115 = por %p113, %p114
      %p117 = scmp.ne.s32.totalorder %s102, %s116
      %p118 = scmp.eq.s32.totalorder %s22, 0
      %p119 = por %p117, %p118
      %s120 = ssub.s32 %s23, %s35
      %s121 = ssub.s32 %s24, %s31
      %s122 = sor.u32 %s120, %s121
      %p123 = scmp.eq.s32.totalorder %s122, 0
      %s125 = sadd.s32 %s124, 1
      %s126 = scalar_select %p123, %s124, %s125
      %p129 = pneg %p123
      %p130 = scmp.eq.s32.totalorder %s16, 5
      %p131 = por %p129, %p130
      %p132 = scmp.ne.s32.totalorder %s124, %s127
      %p133 = scmp.eq.s32.totalorder %s16, 0
      %p134 = por %p132, %p133
      %p135 = scmp.ne.s32.totalorder %s124, %s127
      %p136 = scmp.eq.s32.totalorder %s21, 5
      %p137 = por %p135, %p136
      %p138 = scmp.ne.s32.totalorder %s127, %s128
      %p139 = scmp.eq.s32.totalorder %s21, 0
      %p140 = por %p138, %p139
      %p141 = scmp.ne.s32.totalorder %s127, %s128
      %p142 = scmp.eq.s32.totalorder %s22, 5
      %p143 = por %p141, %p142
      %p145 = scmp.ne.s32.totalorder %s128, %s144
      %p146 = scmp.eq.s32.totalorder %s22, 0
      %p147 = por %p145, %p146
      %p148 = scmp.le.s32.totalorder 1, %s16
      %p149 = scmp.lt.s32.totalorder %s16, 7
      %p150 = pnand %p148, %p149
      %p151 = pneg %p150
      // Predicated region
      $region9: #{tpu_custom_call.1} parent=5 // pred_check
        _
      $region10: #{tpu_custom_call.1} parent=5 // pred_check_branch
        %153 = sbr.rel (%p150) target = $region12
      $region11: #{tpu_custom_call.1} parent=5 // pred_region
        %s154 = ssub.s32 %s16, 1
        // Predicated region
        $region13: #{tpu_custom_call.1} parent=11 // pred_check
          %p155 = pneg %p49
        $region14: #{tpu_custom_call.1} parent=11 // pred_check_branch
          %157 = sbr.rel (%p155) target = $region16
        $region15: #{tpu_custom_call.1} parent=11 // pred_region
          %s159 = ssub.s32 9216, 9216
          %160 = vsyncadd [#allocation5], %s159
          %s161 = sshll.u32 [#allocation4], 4
          %s162 = int_to_ptr.vmem [resolvable:$true] %s161
          %167 = dma.hbm_to_vmem [thread:$0]  %s1, 9216, %s162, [#allocation5], 64, 64, 4
        $region16: #{tpu_custom_call.1} parent=11 // pred_fallthru
          _
        // Predicated region
        $region17: #{tpu_custom_call.1} parent=11 // pred_check
          %p168 = pneg %p70
        $region18: #{tpu_custom_call.1} parent=11 // pred_check_branch
          %170 = sbr.rel (%p168) target = $region20
        $region19: #{tpu_custom_call.1} parent=11 // pred_region
          _
        $region20: #{tpu_custom_call.1} parent=11 // pred_fallthru
          _
        // Predicated region
        $region21: #{tpu_custom_call.1} parent=11 // pred_check
          %p171 = pneg %p91
        $region22: #{tpu_custom_call.1} parent=11 // pred_check_branch
          %173 = sbr.rel (%p171) target = $region24
        $region23: #{tpu_custom_call.1} parent=11 // pred_region
          %s175 = ssub.s32 9216, 9216
          %176 = vsyncadd [#allocation8], %s175
          %s177 = sshll.u32 [#allocation7], 4
          %s178 = int_to_ptr.vmem [resolvable:$true] %s177
          %183 = dma.hbm_to_vmem [thread:$0]  %s3, 9216, %s178, [#allocation8], 64, 64, 4
        $region24: #{tpu_custom_call.1} parent=11 // pred_fallthru
          _
        // Predicated region
        $region25: #{tpu_custom_call.1} parent=11 // pred_check
          %p184 = pneg %p112
        $region26: #{tpu_custom_call.1} parent=11 // pred_check_branch
          %186 = sbr.rel (%p184) target = $region28
        $region27: #{tpu_custom_call.1} parent=11 // pred_region
          _
        $region28: #{tpu_custom_call.1} parent=11 // pred_fallthru
          _
      $region12: #{tpu_custom_call.1} parent=5 // pred_fallthru
        _
      %p187 = scmp.lt.s32.totalorder %s16, 6
      // Predicated region
      $region29: #{tpu_custom_call.1} parent=5 // pred_check
        %p188 = pneg %p187
      $region30: #{tpu_custom_call.1} parent=5 // pred_check_branch
        %190 = sbr.rel (%p188) target = $region32
      $region31: #{tpu_custom_call.1} parent=5 // pred_region
        _
      $region32: #{tpu_custom_call.1} parent=5 // pred_fallthru
        _
      %p191 = scmp.le.s32.totalorder 1, %s16
      %p192 = scmp.lt.s32.totalorder %s16, 7
      %p193 = pnand %p191, %p192
      %p194 = pneg %p193
      // Predicated region
      $region33: #{tpu_custom_call.1} parent=5 // pred_check
        _
      $region34: #{tpu_custom_call.1} parent=5 // pred_check_branch
        %196 = sbr.rel (%p193) target = $region36
      $region35: #{tpu_custom_call.1} parent=5 // pred_region
        %s197 = ssub.s32 %s16, 1
        // Predicated region
        $region37: #{tpu_custom_call.1} parent=35 // pred_check
          %p198 = pneg %p49
        $region38: #{tpu_custom_call.1} parent=35 // pred_check_branch
          %200 = sbr.rel (%p198) target = $region40
        $region39: #{tpu_custom_call.1} parent=35 // pred_region
          %201 = dma.done [#allocation5], 9216
        $region40: #{tpu_custom_call.1} parent=35 // pred_fallthru
          _
        // Predicated region
        $region41: #{tpu_custom_call.1} parent=35 // pred_check
          %p202 = pneg %p91
        $region42: #{tpu_custom_call.1} parent=35 // pred_check_branch
          %204 = sbr.rel (%p202) target = $region44
        $region43: #{tpu_custom_call.1} parent=35 // pred_region
          %205 = dma.done [#allocation8], 9216
        $region44: #{tpu_custom_call.1} parent=35 // pred_fallthru
          _
        %p206 = pneg %p49
        %p207 = pneg %p46
        %p208 = pneg %p70
        %p209 = pneg %p67
        %p210 = pneg %p91
        %p211 = pneg %p88
        %p212 = pneg %p112
        %p213 = pneg %p109
        %p214 = pneg %p140
        %p215 = pneg %p137
        %s216 = sand.u32 %s127, 1
        %s217 = scalar_lea.sflag [#allocation6], %s216
        %s218 = sand.u32 %s127, 1
        %s219 = smul.addr %s218, 128
        %s220 = scalar_lea.vmem [#allocation9], %s219
        %s221 = smul.u32 16, %s26
        %p223 = scmp.lt.s32.totalorder %s26, 0
        %s224 = ssub.s32 0, %s26
        %s225 = scalar_select %p223, %s224, %s26
        %s226 = sand.u32 %s225, 1
        %s227 = ssub.s32 0, %s226
        %s228 = scalar_select %p223, %s227, %s226
        %p229 = scmp.ne.s32.totalorder %s228, 0
        %p230 = scmp.lt.s32.totalorder %s228, 0
        %p231 = pnand %p230, %p229
        %p232 = pneg %p231
        %s233 = sadd.s32 %s228, 2
        %s234 = scalar_select %p232, %s233, %s228
        %p235 = scmp.eq.s32.totalorder %s26, 0
        // Predicated region
        $region45: #{tpu_custom_call.1} parent=35 // pred_check
          %p236 = pneg %p235
        $region46: #{tpu_custom_call.1} parent=35 // pred_check_branch
          %238 = sbr.rel (%p236) target = $region48
        $region47: #{tpu_custom_call.1} parent=35 // pred_region
          %s239 = smul.u32 %s25, 408
          %s240 = smul.addr %s239, 16
          %s241 = scalar_lea.hbm %s0, %s240
          // Predicated region
          $region49: #{tpu_custom_call.1} parent=47 // pred_check
            _
          $region50: #{tpu_custom_call.1} parent=47 // pred_check_branch
            %243 = sbr.rel target = $region52
          $region51: #{tpu_custom_call.1} parent=47 // pred_region
            %244 = sst [smem:[#allocation12]] [#allocation11]
            %245 = sst [smem:[#allocation13]] [#allocation10]
          $region52: #{tpu_custom_call.1} parent=47 // pred_fallthru
            _
          %247 = shalt.err (0)
          %s249 = sshll.u32 [#allocation2], 4
          %s250 = int_to_ptr.vmem [resolvable:$true] %s249
          %252 = dma.hbm_to_vmem [thread:$0]  %s241, 2432, %s250, [#allocation3]
        $region48: #{tpu_custom_call.1} parent=35 // pred_fallthru
          _
        %s253 = sadd.s32 %s26, 1
        %p254 = scmp.lt.s32.totalorder %s253, 3
        // Predicated region
        $region53: #{tpu_custom_call.1} parent=35 // pred_check
          %p255 = pneg %p254
        $region54: #{tpu_custom_call.1} parent=35 // pred_check_branch
          %257 = sbr.rel (%p255) target = $region56
        $region55: #{tpu_custom_call.1} parent=35 // pred_region
          %s258 = ssub.s32 1, %s234
          %s259 = smul.u32 %s253, 128
          %s260 = smul.u32 %s25, 408
          %s261 = sadd.s32 %s259, %s260
          %s262 = smul.addr %s261, 16
          %s263 = scalar_lea.hbm %s0, %s262
          %s264 = smul.u32 %s258, 152
          %s265 = scalar_lea.vmem [#allocation2], %s264
          %s266 = scalar_lea.sflag [#allocation3], %s258
          // Predicated region
          $region57: #{tpu_custom_call.1} parent=55 // pred_check
            _
          $region58: #{tpu_custom_call.1} parent=55 // pred_check_branch
            %268 = sbr.rel target = $region60
          $region59: #{tpu_custom_call.1} parent=55 // pred_region
            %269 = sst [smem:[#allocation12]] [#allocation15]
            %270 = sst [smem:[#allocation13]] [#allocation14]
          $region60: #{tpu_custom_call.1} parent=55 // pred_fallthru
            _
          %272 = shalt.err (0)
          %s274 = sshll.u32 %s265, 4
          %s275 = int_to_ptr.vmem [resolvable:$true] %s274
          %277 = dma.hbm_to_vmem [thread:$0]  %s263, 2432, %s275, %s266
        $region56: #{tpu_custom_call.1} parent=35 // pred_fallthru
          _
        %s278 = smul.u32 %s26, 128
        %s279 = smul.u32 %s234, 152
        %s280 = scalar_lea.vmem [#allocation2], %s279
        %s281 = scalar_lea.sflag [#allocation3], %s234
        %s282 = smul.u32 152, 1
        %s283 = sshll.u32 %s282, 4
        %284 = dma.done %s281, %s283
        %v285 = vld [vmem:[%s280] sm:$0xff]
        %v286 = vld [vmem:[%s280 + $0x8] sm:$0xff]
        %v287 = vld [vmem:[%s280 + $0x10] sm:$0xff]
        %v288 = vld [vmem:[%s280 + $0x18] sm:$0xff]
        %v289 = vld [vmem:[%s280 + $0x20] sm:$0xff]
        %v290 = vld [vmem:[%s280 + $0x28] sm:$0xff]
        %v291 = vld [vmem:[%s280 + $0x30] sm:$0xff]
        %v292 = vld [vmem:[%s280 + $0x38] sm:$0xff]
        %v293 = vld [vmem:[%s280 + $0x40] sm:$0xff]
        %v294 = vld [vmem:[%s280 + $0x48] sm:$0xff]
        %v295 = vld [vmem:[%s280 + $0x50] sm:$0xff]
        %v296 = vld [vmem:[%s280 + $0x58] sm:$0xff]
        %v297 = vld [vmem:[%s280 + $0x60] sm:$0xff]
        %v298 = vld [vmem:[%s280 + $0x68] sm:$0xff]
        %v299 = vld [vmem:[%s280 + $0x70] sm:$0xff]
        %v300 = vld [vmem:[%s280 + $0x78] sm:$0xff]
        %v301 = vld [vmem:[%s280 + $0x80] sm:$0xff]
        %v302 = vld [vmem:[%s280 + $0x88] sm:$0xff]
        %v303 = vld [vmem:[%s280 + $0x90] sm:$0xff]
        %v304 = vlaneseq
        %v305 = vshrl.u32 %v304, 7
        %v306 = vadd.s32 %v305, 8
        %v307 = vadd.s32 %v305, 16
        %v308 = vadd.s32 %v305, 24
        %v309 = vadd.s32 %v305, 32
        %v310 = vadd.s32 %v305, 40
        %v311 = vadd.s32 %v305, 48
        %v312 = vadd.s32 %v305, 56
        %v313 = vadd.s32 %v305, 64
        %v314 = vadd.s32 %v305, 72
        %v315 = vadd.s32 %v305, 80
        %v316 = vadd.s32 %v305, 88
        %v317 = vadd.s32 %v305, 96
        %v318 = vadd.s32 %v305, 104
        %v319 = vadd.s32 %v305, 112
        %v320 = vadd.s32 %v305, 120
        %v321 = vadd.s32 %v305, 128
        %v322 = vadd.s32 %v305, 136
        %v323 = vadd.s32 %v305, 144
        %s324 = ssub.s32 %s278, 12
        %v325 = vstv %s324
        %v326 = vadd.s32 %v305, %v325
        %v327 = vadd.s32 %v306, %v325
        %v328 = vadd.s32 %v307, %v325
        %v329 = vadd.s32 %v308, %v325
        %v330 = vadd.s32 %v309, %v325
        %v331 = vadd.s32 %v310, %v325
        %v332 = vadd.s32 %v311, %v325
        %v333 = vadd.s32 %v312, %v325
        %v334 = vadd.s32 %v313, %v325
        %v335 = vadd.s32 %v314, %v325
        %v336 = vadd.s32 %v315, %v325
        %v337 = vadd.s32 %v316, %v325
        %v338 = vadd.s32 %v317, %v325
        %v339 = vadd.s32 %v318, %v325
        %v340 = vadd.s32 %v319, %v325
        %v341 = vadd.s32 %v320, %v325
        %v342 = vadd.s32 %v321, %v325
        %v343 = vadd.s32 %v322, %v325
        %v344 = vadd.s32 %v323, %v325
        %vm345 = vcmp.ge.s32.totalorder %v326, 0
        %vm346 = vcmp.ge.s32.totalorder %v327, 0
        %vm347 = vcmp.ge.s32.totalorder %v328, 0
        %vm348 = vcmp.ge.s32.totalorder %v329, 0
        %vm349 = vcmp.ge.s32.totalorder %v330, 0
        %vm350 = vcmp.ge.s32.totalorder %v331, 0
        %vm351 = vcmp.ge.s32.totalorder %v332, 0
        %vm352 = vcmp.ge.s32.totalorder %v333, 0
        %vm353 = vcmp.ge.s32.totalorder %v334, 0
        %vm354 = vcmp.ge.s32.totalorder %v335, 0
        %vm355 = vcmp.ge.s32.totalorder %v336, 0
        %vm356 = vcmp.ge.s32.totalorder %v337, 0
        %vm357 = vcmp.ge.s32.totalorder %v338, 0
        %vm358 = vcmp.ge.s32.totalorder %v339, 0
        %vm359 = vcmp.ge.s32.totalorder %v340, 0
        %vm360 = vcmp.ge.s32.totalorder %v341, 0
        %vm361 = vcmp.ge.s32.totalorder %v342, 0
        %vm362 = vcmp.ge.s32.totalorder %v343, 0
        %vm363 = vcmp.ge.s32.totalorder %v344, 0
        %vm364 = vcmp.lt.s32.totalorder %v326, 300
        %vm365 = vcmp.lt.s32.totalorder %v327, 300
        %vm366 = vcmp.lt.s32.totalorder %v328, 300
        %vm367 = vcmp.lt.s32.totalorder %v329, 300
        %vm368 = vcmp.lt.s32.totalorder %v330, 300
        %vm369 = vcmp.lt.s32.totalorder %v331, 300
        %vm370 = vcmp.lt.s32.totalorder %v332, 300
        %vm371 = vcmp.lt.s32.totalorder %v333, 300
        %vm372 = vcmp.lt.s32.totalorder %v334, 300
        %vm373 = vcmp.lt.s32.totalorder %v335, 300
        %vm374 = vcmp.lt.s32.totalorder %v336, 300
        %vm375 = vcmp.lt.s32.totalorder %v337, 300
        %vm376 = vcmp.lt.s32.totalorder %v338, 300
        %vm377 = vcmp.lt.s32.totalorder %v339, 300
        %vm378 = vcmp.lt.s32.totalorder %v340, 300
        %vm379 = vcmp.lt.s32.totalorder %v341, 300
        %vm380 = vcmp.lt.s32.totalorder %v342, 300
        %vm381 = vcmp.lt.s32.totalorder %v343, 300
        %vm382 = vcmp.lt.s32.totalorder %v344, 300
        %vm383 = vmand %vm345, %vm364
        %vm384 = vmand %vm346, %vm365
        %vm385 = vmand %vm347, %vm366
        %vm386 = vmand %vm348, %vm367
        %vm387 = vmand %vm349, %vm368
        %vm388 = vmand %vm350, %vm369
        %vm389 = vmand %vm351, %vm370
        %vm390 = vmand %vm352, %vm371
        %vm391 = vmand %vm353, %vm372
        %vm392 = vmand %vm354, %vm373
        %vm393 = vmand %vm355, %vm374
        %vm394 = vmand %vm356, %vm375
        %vm395 = vmand %vm357, %vm376
        %vm396 = vmand %vm358, %vm377
        %vm397 = vmand %vm359, %vm378
        %vm398 = vmand %vm360, %vm379
        %vm399 = vmand %vm361, %vm380
        %vm400 = vmand %vm362, %vm381
        %vm401 = vmand %vm363, %vm382
        %v402 = vsel %vm383, 1, 0
        %v403 = vsel %vm384, 1, 0
        %v404 = vsel %vm385, 1, 0
        %v405 = vsel %vm386, 1, 0
        %v406 = vsel %vm387, 1, 0
        %v407 = vsel %vm388, 1, 0
        %v408 = vsel %vm389, 1, 0
        %v409 = vsel %vm390, 1, 0
        %v410 = vsel %vm391, 1, 0
        %v411 = vsel %vm392, 1, 0
        %v412 = vsel %vm393, 1, 0
        %v413 = vsel %vm394, 1, 0
        %v414 = vsel %vm395, 1, 0
        %v415 = vsel %vm396, 1, 0
        %v416 = vsel %vm397, 1, 0
        %v417 = vsel %vm398, 1, 0
        %v418 = vsel %vm399, 1, 0
        %v419 = vsel %vm400, 1, 0
        %v420 = vsel %vm401, 1, 0
        %v421 = vcvt.s32.f32 %v402
        %v422 = vcvt.s32.f32 %v403
        %v423 = vcvt.s32.f32 %v404
        %v424 = vcvt.s32.f32 %v405
        %v425 = vcvt.s32.f32 %v406
        %v426 = vcvt.s32.f32 %v407
        %v427 = vcvt.s32.f32 %v408
        %v428 = vcvt.s32.f32 %v409
        %v429 = vcvt.s32.f32 %v410
        %v430 = vcvt.s32.f32 %v411
        %v431 = vcvt.s32.f32 %v412
        %v432 = vcvt.s32.f32 %v413
        %v433 = vcvt.s32.f32 %v414
        %v434 = vcvt.s32.f32 %v415
        %v435 = vcvt.s32.f32 %v416
        %v436 = vcvt.s32.f32 %v417
        %v437 = vcvt.s32.f32 %v418
        %v438 = vcvt.s32.f32 %v419
        %v439 = vcvt.s32.f32 %v420
        %vm440 = vcmp.ge.f32.partialorder %v285, 0.0
        %vm441 = vcmp.ge.f32.partialorder %v286, 0.0
        %vm442 = vcmp.ge.f32.partialorder %v287, 0.0
        %vm443 = vcmp.ge.f32.partialorder %v288, 0.0
        %vm444 = vcmp.ge.f32.partialorder %v289, 0.0
        %vm445 = vcmp.ge.f32.partialorder %v290, 0.0
        %vm446 = vcmp.ge.f32.partialorder %v291, 0.0
        %vm447 = vcmp.ge.f32.partialorder %v292, 0.0
        %vm448 = vcmp.ge.f32.partialorder %v293, 0.0
        %vm449 = vcmp.ge.f32.partialorder %v294, 0.0
        %vm450 = vcmp.ge.f32.partialorder %v295, 0.0
        %vm451 = vcmp.ge.f32.partialorder %v296, 0.0
        %vm452 = vcmp.ge.f32.partialorder %v297, 0.0
        %vm453 = vcmp.ge.f32.partialorder %v298, 0.0
        %vm454 = vcmp.ge.f32.partialorder %v299, 0.0
        %vm455 = vcmp.ge.f32.partialorder %v300, 0.0
        %vm456 = vcmp.ge.f32.partialorder %v301, 0.0
        %vm457 = vcmp.ge.f32.partialorder %v302, 0.0
        %vm458 = vcmp.ge.f32.partialorder %v303, 0.0
        %v459 = vmul.f32 %v285, 0.1
        %v460 = vmul.f32 %v286, 0.1
        %v461 = vmul.f32 %v287, 0.1
        %v462 = vmul.f32 %v288, 0.1
        %v463 = vmul.f32 %v289, 0.1
        %v464 = vmul.f32 %v290, 0.1
        %v465 = vmul.f32 %v291, 0.1
        %v466 = vmul.f32 %v292, 0.1
        %v467 = vmul.f32 %v293, 0.1
        %v468 = vmul.f32 %v294, 0.1
        %v469 = vmul.f32 %v295, 0.1
        %v470 = vmul.f32 %v296, 0.1
        %v471 = vmul.f32 %v297, 0.1
        %v472 = vmul.f32 %v298, 0.1
        %v473 = vmul.f32 %v299, 0.1
        %v474 = vmul.f32 %v300, 0.1
        %v475 = vmul.f32 %v301, 0.1
        %v476 = vmul.f32 %v302, 0.1
        %v477 = vmul.f32 %v303, 0.1
        %v478 = vsel %vm440, %v285, %v459
        %v479 = vsel %vm441, %v286, %v460
        %v480 = vsel %vm442, %v287, %v461
        %v481 = vsel %vm443, %v288, %v462
        %v482 = vsel %vm444, %v289, %v463
        %v483 = vsel %vm445, %v290, %v464
        %v484 = vsel %vm446, %v291, %v465
        %v485 = vsel %vm447, %v292, %v466
        %v486 = vsel %vm448, %v293, %v467
        %v487 = vsel %vm449, %v294, %v468
        %v488 = vsel %vm450, %v295, %v469
        %v489 = vsel %vm451, %v296, %v470
        %v490 = vsel %vm452, %v297, %v471
        %v491 = vsel %vm453, %v298, %v472
        %v492 = vsel %vm454, %v299, %v473
        %v493 = vsel %vm455, %v300, %v474
        %v494 = vsel %vm456, %v301, %v475
        %v495 = vsel %vm457, %v302, %v476
        %v496 = vsel %vm458, %v303, %v477
        %v497 = vmul.f32 %v478, %v421
        %v498 = vmul.f32 %v479, %v422
        %v499 = vmul.f32 %v480, %v423
        %v500 = vmul.f32 %v481, %v424
        %v501 = vmul.f32 %v482, %v425
        %v502 = vmul.f32 %v483, %v426
        %v503 = vmul.f32 %v484, %v427
        %v504 = vmul.f32 %v485, %v428
        %v505 = vmul.f32 %v486, %v429
        %v506 = vmul.f32 %v487, %v430
        %v507 = vmul.f32 %v488, %v431
        %v508 = vmul.f32 %v489, %v432
        %v509 = vmul.f32 %v490, %v433
        %v510 = vmul.f32 %v491, %v434
        %v511 = vmul.f32 %v492, %v435
        %v512 = vmul.f32 %v493, %v436
        %v513 = vmul.f32 %v494, %v437
        %v514 = vmul.f32 %v495, %v438
        %v515 = vmul.f32 %v496, %v439
        %v516 = vld [vmem:[#allocation4] sm:$0xf]
        %v517 = vld [vmem:[#allocation4 + $0x4] sm:$0xf]
        %v518 = vld [vmem:[#allocation4 + $0x8] sm:$0xf]
        %v519 = vld [vmem:[#allocation4 + $0xc] sm:$0xf]
        %v520 = vld [vmem:[#allocation4 + $0x10] sm:$0xf]
        %v521 = vld [vmem:[#allocation4 + $0x14] sm:$0xf]
        %v522 = vld [vmem:[#allocation4 + $0x18] sm:$0xf]
        %v523 = vld [vmem:[#allocation4 + $0x1c] sm:$0xf]
        %v524 = vld [vmem:[#allocation4 + $0x20] sm:$0xf]
        %v525 = vld [vmem:[#allocation4 + $0x24] sm:$0xf]
        %v526 = vld [vmem:[#allocation4 + $0x28] sm:$0xf]
        %v527 = vld [vmem:[#allocation4 + $0x2c] sm:$0xf]
        %v528 = vld [vmem:[#allocation4 + $0x30] sm:$0xf]
        %v529 = vld [vmem:[#allocation4 + $0x34] sm:$0xf]
        %v530 = vld [vmem:[#allocation4 + $0x38] sm:$0xf]
        %v531 = vld [vmem:[#allocation4 + $0x3c] sm:$0xf]
        %v532 = vld [vmem:[#allocation4 + $0x40] sm:$0xf]
        %v533 = vld [vmem:[#allocation4 + $0x44] sm:$0xf]
        %v534 = vld [vmem:[#allocation4 + $0x48] sm:$0xf]
        %v535 = vld [vmem:[#allocation4 + $0x4c] sm:$0xf]
        %v536 = vld [vmem:[#allocation4 + $0x50] sm:$0xf]
        %v537 = vld [vmem:[#allocation4 + $0x54] sm:$0xf]
        %v538 = vld [vmem:[#allocation4 + $0x58] sm:$0xf]
        %v539 = vld [vmem:[#allocation4 + $0x5c] sm:$0xf]
        %v540 = vld [vmem:[#allocation4 + $0x60] sm:$0xf]
        %v541 = vld [vmem:[#allocation4 + $0x64] sm:$0xf]
        %v542 = vld [vmem:[#allocation4 + $0x68] sm:$0xf]
        %v543 = vld [vmem:[#allocation4 + $0x6c] sm:$0xf]
        %v544 = vld [vmem:[#allocation4 + $0x70] sm:$0xf]
        %v545 = vld [vmem:[#allocation4 + $0x74] sm:$0xf]
        %v546 = vld [vmem:[#allocation4 + $0x78] sm:$0xf]
        %v547 = vld [vmem:[#allocation4 + $0x7c] sm:$0xf]
        %v548 = vld [vmem:[#allocation4 + $0x80] sm:$0xf]
        %v549 = vld [vmem:[#allocation4 + $0x84] sm:$0xf]
        %v550 = vld [vmem:[#allocation4 + $0x88] sm:$0xf]
        %v551 = vld [vmem:[#allocation4 + $0x8c] sm:$0xf]
        %v552 = vld [vmem:[#allocation4 + $0x90] sm:$0xf]
        %v553 = vld [vmem:[#allocation4 + $0x94] sm:$0xf]
        %v554 = vld [vmem:[#allocation4 + $0x98] sm:$0xf]
        %v555 = vld [vmem:[#allocation4 + $0x9c] sm:$0xf]
        %v556 = vld [vmem:[#allocation4 + $0xa0] sm:$0xf]
        %v557 = vld [vmem:[#allocation4 + $0xa4] sm:$0xf]
        %v558 = vld [vmem:[#allocation4 + $0xa8] sm:$0xf]
        %v559 = vld [vmem:[#allocation4 + $0xac] sm:$0xf]
        %v560 = vld [vmem:[#allocation4 + $0xb0] sm:$0xf]
        %v561 = vld [vmem:[#allocation4 + $0xb4] sm:$0xf]
        %v562 = vld [vmem:[#allocation4 + $0xb8] sm:$0xf]
        %v563 = vld [vmem:[#allocation4 + $0xbc] sm:$0xf]
        %v564 = vld [vmem:[%s2] sm:$0x1]
        %v565 = vpack.c.bf16 %v498, %v497
        %v566 = vpack.c.bf16 %v500, %v499
        %v567 = vpack.c.bf16 %v502, %v501
        %v568 = vpack.c.bf16 %v504, %v503
        %v569 = vpack.c.bf16 %v506, %v505
        %v570 = vpack.c.bf16 %v508, %v507
        %v571 = vpack.c.bf16 %v510, %v509
        %v572 = vpack.c.bf16 %v512, %v511
        %v573 = vpack.c.bf16 %v514, %v513
        %v574 = vpack.c.bf16 %v515, %v515
        %vm575 = vsmask.f32 7424
        %v577 = vshrl.u32 %v565, 16
        %v579 = vshll.u32 %v565, 16
        %v581 = vrot.slane %v579, 1
        %v582 = vor.u32 %v577, %v581
        %v584 = vshll.u32 %v566, 16
        %v586 = vrot.slane %v584, 1
        %v587 = vsel %vm575, %v582, %v586
        %v588 = vshrl.u32 %v566, 16
        %v590 = vor.u32 %v588, %v586
        %v592 = vshll.u32 %v567, 16
        %v594 = vrot.slane %v592, 1
        %v595 = vsel %vm575, %v590, %v594
        %v596 = vshrl.u32 %v567, 16
        %v598 = vor.u32 %v596, %v594
        %v600 = vshll.u32 %v568, 16
        %v602 = vrot.slane %v600, 1
        %v603 = vsel %vm575, %v598, %v602
        %v604 = vshrl.u32 %v568, 16
        %v606 = vor.u32 %v604, %v602
        %v608 = vshll.u32 %v569, 16
        %v610 = vrot.slane %v608, 1
        %v611 = vsel %vm575, %v606, %v610
        %v612 = vshrl.u32 %v569, 16
        %v614 = vor.u32 %v612, %v610
        %v616 = vshll.u32 %v570, 16
        %v618 = vrot.slane %v616, 1
        %v619 = vsel %vm575, %v614, %v618
        %v620 = vshrl.u32 %v570, 16
        %v622 = vor.u32 %v620, %v618
        %v624 = vshll.u32 %v571, 16
        %v626 = vrot.slane %v624, 1
        %v627 = vsel %vm575, %v622, %v626
        %v628 = vshrl.u32 %v571, 16
        %v630 = vor.u32 %v628, %v626
        %v632 = vshll.u32 %v572, 16
        %v634 = vrot.slane %v632, 1
        %v635 = vsel %vm575, %v630, %v634
        %v636 = vshrl.u32 %v572, 16
        %v638 = vor.u32 %v636, %v634
        %v640 = vshll.u32 %v573, 16
        %v642 = vrot.slane %v640, 1
        %v643 = vsel %vm575, %v638, %v642
        %v644 = vshrl.u32 %v573, 16
        %v646 = vor.u32 %v644, %v642
        %v648 = vshll.u32 %v574, 16
        %v650 = vrot.slane %v648, 1
        %v651 = vsel %vm575, %v646, %v650
        %v652 = vshrl.u32 %v574, 16
        %v654 = vor.u32 %v652, %v650
        %v681 = vunpack.c.l.b16 %v532
        %v682 = vunpack.c.l.b16 %v533
        %v683 = vunpack.c.l.b16 %v534
        %v684 = vunpack.c.l.b16 %v535
        %v685 = vunpack.c.l.b16 %v536
        %v686 = vunpack.c.l.b16 %v537
        %v687 = vunpack.c.l.b16 %v538
        %v688 = vunpack.c.l.b16 %v539
        %v689 = vunpack.c.l.b16 %v540
        %v690 = vunpack.c.l.b16 %v541
        %v691 = vunpack.c.l.b16 %v542
        %v692 = vunpack.c.l.b16 %v543
        %v693 = vunpack.c.l.b16 %v544
        %v694 = vunpack.c.l.b16 %v545
        %v695 = vunpack.c.l.b16 %v546
        %v696 = vunpack.c.l.b16 %v547
        %v697 = vpack.c.b16 %v682, %v681
        %v698 = vpack.c.b16 %v684, %v683
        %v699 = vpack.c.b16 %v686, %v685
        %v700 = vpack.c.b16 %v688, %v687
        %v701 = vpack.c.b16 %v690, %v689
        %v702 = vpack.c.b16 %v692, %v691
        %v703 = vpack.c.b16 %v694, %v693
        %v704 = vpack.c.b16 %v696, %v695
        %713 = vmatprep.subr.bf16.mxu0 0
        %714 = vmatpush1.bf16.msra.mxu0 %v697
        %715 = vmatprep.subr.bf16.mxu0 0
        %716 = vmatpush1.bf16.msra.mxu0 %v698
        %717 = vmatprep.subr.bf16.mxu0 0
        %718 = vmatpush1.bf16.msra.mxu0 %v699
        %719 = vmatprep.subr.bf16.mxu0 0
        %720 = vmatpush1.bf16.msra.mxu0 %v700
        %721 = vmatprep.subr.bf16.mxu0 0
        %722 = vmatpush1.bf16.msra.mxu0 %v701
        %723 = vmatprep.subr.bf16.mxu0 0
        %724 = vmatpush1.bf16.msra.mxu0 %v702
        %725 = vmatprep.subr.bf16.mxu0 0
        %726 = vmatpush1.bf16.msra.mxu0 %v703
        %727 = vmatprep.subr.bf16.mxu0 0
        %728 = vmatpush1.bf16.msra.mxu0 %v704
        %729 = vmatprep.subr.bf16.mxu0 0
        %730 = vmatpush1.bf16.msra.mxu0 0
        %731 = vmatprep.subr.bf16.mxu0 0
        %732 = vmatpush1.bf16.msra.mxu0 0
        %733 = vmatprep.subr.bf16.mxu0 0
        %734 = vmatpush1.bf16.msra.mxu0 0
        %735 = vmatprep.subr.bf16.mxu0 0
        %736 = vmatpush1.bf16.msra.mxu0 0
        %737 = vmatprep.subr.bf16.mxu0 0
        %738 = vmatpush1.bf16.msra.mxu0 0
        %739 = vmatprep.subr.bf16.mxu0 0
        %740 = vmatpush1.bf16.msra.mxu0 0
        %741 = vmatprep.subr.bf16.mxu0 0
        %742 = vmatpush1.bf16.msra.mxu0 0
        %743 = vmatprep.subr.bf16.mxu0 0
        %744 = vmatpush1.bf16.msra.mxu0 0
        %745 = vmatprep.mubr.bf16.mxu0 0
        %746 = vmatmul.mubr.bf16.gmra.mrb[0].mxu0 %v587
        %v747 = vpop.f32.mrb[0].mxu0
        %v748 = vadd.f32 0.0, %v747
        %v749 = vpop.f32.mrb[0].mxu0
        %v750 = vpop.f32.mrb[0].mxu0
        %v751 = vadd.f32 0.0, %v750
        %v752 = vpop.f32.mrb[0].mxu0
        %753 = vmatprep.mubr.bf16.mxu0 0
        %754 = vmatmul.mubr.bf16.gmra.mrb[0].mxu0 %v595
        %v755 = vpop.f32.mrb[0].mxu0
        %v756 = vadd.f32 0.0, %v755
        %v757 = vpop.f32.mrb[0].mxu0
        %v758 = vpop.f32.mrb[0].mxu0
        %v759 = vadd.f32 0.0, %v758
        %v760 = vpop.f32.mrb[0].mxu0
        %761 = vmatprep.mubr.bf16.mxu0 0
        %762 = vmatmul.mubr.bf16.gmra.mrb[0].mxu0 %v603
        %v763 = vpop.f32.mrb[0].mxu0
        %v764 = vadd.f32 0.0, %v763
        %v765 = vpop.f32.mrb[0].mxu0
        %v766 = vpop.f32.mrb[0].mxu0
        %v767 = vadd.f32 0.0, %v766
        %v768 = vpop.f32.mrb[0].mxu0
        %769 = vmatprep.mubr.bf16.mxu0 0
        %770 = vmatmul.mubr.bf16.gmra.mrb[0].mxu0 %v611
        %v771 = vpop.f32.mrb[0].mxu0
        %v772 = vadd.f32 0.0, %v771
        %v773 = vpop.f32.mrb[0].mxu0
        %v774 = vpop.f32.mrb[0].mxu0
        %v775 = vadd.f32 0.0, %v774
        %v776 = vpop.f32.mrb[0].mxu0
        %777 = vmatprep.mubr.bf16.mxu0 0
        %778 = vmatmul.mubr.bf16.gmra.mrb[0].mxu0 %v619
        %v779 = vpop.f32.mrb[0].mxu0
        %v780 = vadd.f32 0.0, %v779
        %v781 = vpop.f32.mrb[0].mxu0
        %v782 = vpop.f32.mrb[0].mxu0
        %v783 = vadd.f32 0.0, %v782
        %v784 = vpop.f32.mrb[0].mxu0
        %785 = vmatprep.mubr.bf16.mxu0 0
        %786 = vmatmul.mubr.bf16.gmra.mrb[0].mxu0 %v627
        %v787 = vpop.f32.mrb[0].mxu0
        %v788 = vadd.f32 0.0, %v787
        %v789 = vpop.f32.mrb[0].mxu0
        %v790 = vpop.f32.mrb[0].mxu0
        %v791 = vadd.f32 0.0, %v790
        %v792 = vpop.f32.mrb[0].mxu0
        %793 = vmatprep.mubr.bf16.mxu0 0
        %794 = vmatmul.mubr.bf16.gmra.mrb[0].mxu0 %v635
        %v795 = vpop.f32.mrb[0].mxu0
        %v796 = vadd.f32 0.0, %v795
        %v797 = vpop.f32.mrb[0].mxu0
        %v798 = vpop.f32.mrb[0].mxu0
        %v799 = vadd.f32 0.0, %v798
        %v800 = vpop.f32.mrb[0].mxu0
        %801 = vmatprep.mubr.bf16.mxu0 0
        %802 = vmatmul.mubr.bf16.gmra.mrb[0].mxu0 %v643
        %v803 = vpop.f32.mrb[0].mxu0
        %v804 = vadd.f32 0.0, %v803
        %v805 = vpop.f32.mrb[0].mxu0
        %v806 = vpop.f32.mrb[0].mxu0
        %v807 = vadd.f32 0.0, %v806
        %v808 = vpop.f32.mrb[0].mxu0
        %809 = vmatprep.mubr.bf16.mxu0 0
        %810 = vmatmul.mubr.bf16.gmra.mrb[0].mxu0 %v651
        %v811 = vpop.f32.mrb[0].mxu0
        %v812 = vadd.f32 0.0, %v811
        %v813 = vpop.f32.mrb[0].mxu0
        %v814 = vpop.f32.mrb[0].mxu0
        %v815 = vadd.f32 0.0, %v814
        %v816 = vpop.f32.mrb[0].mxu0
        %817 = vmatprep.mubr.bf16.mxu0 0
        %818 = vmatmul.mubr.bf16.gmra.mrb[0].mxu0 %v654
        %v819 = vpop.f32.mrb[0].mxu0
        %v820 = vadd.f32 0.0, %v819
        %v821 = vpop.f32.mrb[0].mxu0
        %v822 = vpop.f32.mrb[0].mxu0
        %v823 = vpop.f32.mrb[0].mxu0
        %824 = vdwg.mxu0
        %v841 = vunpack.c.l.b16 %v516
        %v842 = vunpack.c.l.b16 %v517
        %v843 = vunpack.c.l.b16 %v518
        %v844 = vunpack.c.l.b16 %v519
        %v845 = vunpack.c.l.b16 %v520
        %v846 = vunpack.c.l.b16 %v521
        %v847 = vunpack.c.l.b16 %v522
        %v848 = vunpack.c.l.b16 %v523
        %v849 = vunpack.c.l.b16 %v524
        %v850 = vunpack.c.l.b16 %v525
        %v851 = vunpack.c.l.b16 %v526
        %v852 = vunpack.c.l.b16 %v527
        %v853 = vunpack.c.l.b16 %v528
        %v854 = vunpack.c.l.b16 %v529
        %v855 = vunpack.c.l.b16 %v530
        %v856 = vunpack.c.l.b16 %v531
        %v857 = vpack.c.b16 %v842, %v841
        %v858 = vpack.c.b16 %v844, %v843
        %v859 = vpack.c.b16 %v846, %v845
        %v860 = vpack.c.b16 %v848, %v847
        %v861 = vpack.c.b16 %v850, %v849
        %v862 = vpack.c.b16 %v852, %v851
        %v863 = vpack.c.b16 %v854, %v853
        %v864 = vpack.c.b16 %v856, %v855
        %873 = vmatprep.subr.bf16.mxu0 0
        %874 = vmatpush1.bf16.msra.mxu0 %v857
        %875 = vmatprep.subr.bf16.mxu0 0
        %876 = vmatpush1.bf16.msra.mxu0 %v858
        %877 = vmatprep.subr.bf16.mxu0 0
        %878 = vmatpush1.bf16.msra.mxu0 %v859
        %879 = vmatprep.subr.bf16.mxu0 0
        %880 = vmatpush1.bf16.msra.mxu0 %v860
        %881 = vmatprep.subr.bf16.mxu0 0
        %882 = vmatpush1.bf16.msra.mxu0 %v861
        %883 = vmatprep.subr.bf16.mxu0 0
        %884 = vmatpush1.bf16.msra.mxu0 %v862
        %885 = vmatprep.subr.bf16.mxu0 0
        %886 = vmatpush1.bf16.msra.mxu0 %v863
        %887 = vmatprep.subr.bf16.mxu0 0
        %888 = vmatpush1.bf16.msra.mxu0 %v864
        %889 = vmatprep.subr.bf16.mxu0 0
        %890 = vmatpush1.bf16.msra.mxu0 0
        %891 = vmatprep.subr.bf16.mxu0 0
        %892 = vmatpush1.bf16.msra.mxu0 0
        %893 = vmatprep.subr.bf16.mxu0 0
        %894 = vmatpush1.bf16.msra.mxu0 0
        %895 = vmatprep.subr.bf16.mxu0 0
        %896 = vmatpush1.bf16.msra.mxu0 0
        %897 = vmatprep.subr.bf16.mxu0 0
        %898 = vmatpush1.bf16.msra.mxu0 0
        %899 = vmatprep.subr.bf16.mxu0 0
        %900 = vmatpush1.bf16.msra.mxu0 0
        %901 = vmatprep.subr.bf16.mxu0 0
        %902 = vmatpush1.bf16.msra.mxu0 0
        %903 = vmatprep.subr.bf16.mxu0 0
        %904 = vmatpush1.bf16.msra.mxu0 0
        %905 = vmatprep.mubr.bf16.mxu0 0
        %906 = vmatmul.mubr.bf16.gmra.mrb[0].mxu0 %v565
        %v907 = vpop.f32.mrb[0].mxu0
        %v908 = vadd.f32 %v748, %v907
        %v909 = vpop.f32.mrb[0].mxu0
        %v910 = vpop.f32.mrb[0].mxu0
        %v911 = vadd.f32 %v751, %v910
        %v912 = vpop.f32.mrb[0].mxu0
        %913 = vmatprep.mubr.bf16.mxu0 0
        %914 = vmatmul.mubr.bf16.gmra.mrb[0].mxu0 %v566
        %v915 = vpop.f32.mrb[0].mxu0
        %v916 = vadd.f32 %v756, %v915
        %v917 = vpop.f32.mrb[0].mxu0
        %v918 = vpop.f32.mrb[0].mxu0
        %v919 = vadd.f32 %v759, %v918
        %v920 = vpop.f32.mrb[0].mxu0
        %921 = vmatprep.mubr.bf16.mxu0 0
        %922 = vmatmul.mubr.bf16.gmra.mrb[0].mxu0 %v567
        %v923 = vpop.f32.mrb[0].mxu0
        %v924 = vadd.f32 %v764, %v923
        %v925 = vpop.f32.mrb[0].mxu0
        %v926 = vpop.f32.mrb[0].mxu0
        %v927 = vadd.f32 %v767, %v926
        %v928 = vpop.f32.mrb[0].mxu0
        %929 = vmatprep.mubr.bf16.mxu0 0
        %930 = vmatmul.mubr.bf16.gmra.mrb[0].mxu0 %v568
        %v931 = vpop.f32.mrb[0].mxu0
        %v932 = vadd.f32 %v772, %v931
        %v933 = vpop.f32.mrb[0].mxu0
        %v934 = vpop.f32.mrb[0].mxu0
        %v935 = vadd.f32 %v775, %v934
        %v936 = vpop.f32.mrb[0].mxu0
        %937 = vmatprep.mubr.bf16.mxu0 0
        %938 = vmatmul.mubr.bf16.gmra.mrb[0].mxu0 %v569
        %v939 = vpop.f32.mrb[0].mxu0
        %v940 = vadd.f32 %v780, %v939
        %v941 = vpop.f32.mrb[0].mxu0
        %v942 = vpop.f32.mrb[0].mxu0
        %v943 = vadd.f32 %v783, %v942
        %v944 = vpop.f32.mrb[0].mxu0
        %945 = vmatprep.mubr.bf16.mxu0 0
        %946 = vmatmul.mubr.bf16.gmra.mrb[0].mxu0 %v570
        %v947 = vpop.f32.mrb[0].mxu0
        %v948 = vadd.f32 %v788, %v947
        %v949 = vpop.f32.mrb[0].mxu0
        %v950 = vpop.f32.mrb[0].mxu0
        %v951 = vadd.f32 %v791, %v950
        %v952 = vpop.f32.mrb[0].mxu0
        %953 = vmatprep.mubr.bf16.mxu0 0
        %954 = vmatmul.mubr.bf16.gmra.mrb[0].mxu0 %v571
        %v955 = vpop.f32.mrb[0].mxu0
        %v956 = vadd.f32 %v796, %v955
        %v957 = vpop.f32.mrb[0].mxu0
        %v958 = vpop.f32.mrb[0].mxu0
        %v959 = vadd.f32 %v799, %v958
        %v960 = vpop.f32.mrb[0].mxu0
        %961 = vmatprep.mubr.bf16.mxu0 0
        %962 = vmatmul.mubr.bf16.gmra.mrb[0].mxu0 %v572
        %v963 = vpop.f32.mrb[0].mxu0
        %v964 = vadd.f32 %v804, %v963
        %v965 = vpop.f32.mrb[0].mxu0
        %v966 = vpop.f32.mrb[0].mxu0
        %v967 = vadd.f32 %v807, %v966
        %v968 = vpop.f32.mrb[0].mxu0
        %969 = vmatprep.mubr.bf16.mxu0 0
        %970 = vmatmul.mubr.bf16.gmra.mrb[0].mxu0 %v573
        %v971 = vpop.f32.mrb[0].mxu0
        %v972 = vadd.f32 %v812, %v971
        %v973 = vpop.f32.mrb[0].mxu0
        %v974 = vpop.f32.mrb[0].mxu0
        %v975 = vadd.f32 %v815, %v974
        %v976 = vpop.f32.mrb[0].mxu0
        %977 = vmatprep.mubr.bf16.mxu0 0
        %978 = vmatmul.mubr.bf16.gmra.mrb[0].mxu0 %v574
        %v979 = vpop.f32.mrb[0].mxu0
        %v980 = vadd.f32 %v820, %v979
        %v981 = vpop.f32.mrb[0].mxu0
        %v982 = vpop.f32.mrb[0].mxu0
        %v983 = vpop.f32.mrb[0].mxu0
        %984 = vdwg.mxu0
        %vm995 = vcmask 1046528
        %v996 = vrot.slane %v565, 1
        %v997 = vrot.slane %v566, 1
        %v998 = vsel %vm995, %v996, %v997
        %v999 = vrot.slane %v567, 1
        %v1000 = vsel %vm995, %v997, %v999
        %v1001 = vrot.slane %v568, 1
        %v1002 = vsel %vm995, %v999, %v1001
        %v1003 = vrot.slane %v569, 1
        %v1004 = vsel %vm995, %v1001, %v1003
        %v1005 = vrot.slane %v570, 1
        %v1006 = vsel %vm995, %v1003, %v1005
        %v1007 = vrot.slane %v571, 1
        %v1008 = vsel %vm995, %v1005, %v1007
        %v1009 = vrot.slane %v572, 1
        %v1010 = vsel %vm995, %v1007, %v1009
        %v1011 = vrot.slane %v573, 1
        %v1012 = vsel %vm995, %v1009, %v1011
        %v1013 = vrot.slane %v574, 1
        %v1014 = vsel %vm995, %v1011, %v1013
        %v1041 = vunpack.c.l.b16 %v548
        %v1042 = vunpack.c.l.b16 %v549
        %v1043 = vunpack.c.l.b16 %v550
        %v1044 = vunpack.c.l.b16 %v551
        %v1045 = vunpack.c.l.b16 %v552
        %v1046 = vunpack.c.l.b16 %v553
        %v1047 = vunpack.c.l.b16 %v554
        %v1048 = vunpack.c.l.b16 %v555
        %v1049 = vunpack.c.l.b16 %v556
        %v1050 = vunpack.c.l.b16 %v557
        %v1051 = vunpack.c.l.b16 %v558
        %v1052 = vunpack.c.l.b16 %v559
        %v1053 = vunpack.c.l.b16 %v560
        %v1054 = vunpack.c.l.b16 %v561
        %v1055 = vunpack.c.l.b16 %v562
        %v1056 = vunpack.c.l.b16 %v563
        %v1057 = vpack.c.b16 %v1042, %v1041
        %v1058 = vpack.c.b16 %v1044, %v1043
        %v1059 = vpack.c.b16 %v1046, %v1045
        %v1060 = vpack.c.b16 %v1048, %v1047
        %v1061 = vpack.c.b16 %v1050, %v1049
        %v1062 = vpack.c.b16 %v1052, %v1051
        %v1063 = vpack.c.b16 %v1054, %v1053
        %v1064 = vpack.c.b16 %v1056, %v1055
        %1073 = vmatprep.subr.bf16.mxu0 0
        %1074 = vmatpush1.bf16.msra.mxu0 %v1057
        %1075 = vmatprep.subr.bf16.mxu0 0
        %1076 = vmatpush1.bf16.msra.mxu0 %v1058
        %1077 = vmatprep.subr.bf16.mxu0 0
        %1078 = vmatpush1.bf16.msra.mxu0 %v1059
        %1079 = vmatprep.subr.bf16.mxu0 0
        %1080 = vmatpush1.bf16.msra.mxu0 %v1060
        %1081 = vmatprep.subr.bf16.mxu0 0
        %1082 = vmatpush1.bf16.msra.mxu0 %v1061
        %1083 = vmatprep.subr.bf16.mxu0 0
        %1084 = vmatpush1.bf16.msra.mxu0 %v1062
        %1085 = vmatprep.subr.bf16.mxu0 0
        %1086 = vmatpush1.bf16.msra.mxu0 %v1063
        %1087 = vmatprep.subr.bf16.mxu0 0
        %1088 = vmatpush1.bf16.msra.mxu0 %v1064
        %1089 = vmatprep.subr.bf16.mxu0 0
        %1090 = vmatpush1.bf16.msra.mxu0 0
        %1091 = vmatprep.subr.bf16.mxu0 0
        %1092 = vmatpush1.bf16.msra.mxu0 0
        %1093 = vmatprep.subr.bf16.mxu0 0
        %1094 = vmatpush1.bf16.msra.mxu0 0
        %1095 = vmatprep.subr.bf16.mxu0 0
        %1096 = vmatpush1.bf16.msra.mxu0 0
        %1097 = vmatprep.subr.bf16.mxu0 0
        %1098 = vmatpush1.bf16.msra.mxu0 0
        %1099 = vmatprep.subr.bf16.mxu0 0
        %1100 = vmatpush1.bf16.msra.mxu0 0
        %1101 = vmatprep.subr.bf16.mxu0 0
        %1102 = vmatpush1.bf16.msra.mxu0 0
        %1103 = vmatprep.subr.bf16.mxu0 0
        %1104 = vmatpush1.bf16.msra.mxu0 0
        %1105 = vmatprep.mubr.bf16.mxu0 0
        %1106 = vmatmul.mubr.bf16.gmra.mrb[0].mxu0 %v998
        %v1107 = vpop.f32.mrb[0].mxu0
        %v1108 = vadd.f32 0.0, %v1107
        %v1109 = vpop.f32.mrb[0].mxu0
        %v1110 = vpop.f32.mrb[0].mxu0
        %v1111 = vadd.f32 0.0, %v1110
        %v1112 = vpop.f32.mrb[0].mxu0
        %1113 = vmatprep.mubr.bf16.mxu0 0
        %1114 = vmatmul.mubr.bf16.gmra.mrb[0].mxu0 %v1000
        %v1115 = vpop.f32.mrb[0].mxu0
        %v1116 = vadd.f32 0.0, %v1115
        %v1117 = vpop.f32.mrb[0].mxu0
        %v1118 = vpop.f32.mrb[0].mxu0
        %v1119 = vadd.f32 0.0, %v1118
        %v1120 = vpop.f32.mrb[0].mxu0
        %1121 = vmatprep.mubr.bf16.mxu0 0
        %1122 = vmatmul.mubr.bf16.gmra.mrb[0].mxu0 %v1002
        %v1123 = vpop.f32.mrb[0].mxu0
        %v1124 = vadd.f32 0.0, %v1123
        %v1125 = vpop.f32.mrb[0].mxu0
        %v1126 = vpop.f32.mrb[0].mxu0
        %v1127 = vadd.f32 0.0, %v1126
        %v1128 = vpop.f32.mrb[0].mxu0
        %1129 = vmatprep.mubr.bf16.mxu0 0
        %1130 = vmatmul.mubr.bf16.gmra.mrb[0].mxu0 %v1004
        %v1131 = vpop.f32.mrb[0].mxu0
        %v1132 = vadd.f32 0.0, %v1131
        %v1133 = vpop.f32.mrb[0].mxu0
        %v1134 = vpop.f32.mrb[0].mxu0
        %v1135 = vadd.f32 0.0, %v1134
        %v1136 = vpop.f32.mrb[0].mxu0
        %1137 = vmatprep.mubr.bf16.mxu0 0
        %1138 = vmatmul.mubr.bf16.gmra.mrb[0].mxu0 %v1006
        %v1139 = vpop.f32.mrb[0].mxu0
        %v1140 = vadd.f32 0.0, %v1139
        %v1141 = vpop.f32.mrb[0].mxu0
        %v1142 = vpop.f32.mrb[0].mxu0
        %v1143 = vadd.f32 0.0, %v1142
        %v1144 = vpop.f32.mrb[0].mxu0
        %1145 = vmatprep.mubr.bf16.mxu0 0
        %1146 = vmatmul.mubr.bf16.gmra.mrb[0].mxu0 %v1008
        %v1147 = vpop.f32.mrb[0].mxu0
        %v1148 = vadd.f32 0.0, %v1147
        %v1149 = vpop.f32.mrb[0].mxu0
        %v1150 = vpop.f32.mrb[0].mxu0
        %v1151 = vadd.f32 0.0, %v1150
        %v1152 = vpop.f32.mrb[0].mxu0
        %1153 = vmatprep.mubr.bf16.mxu0 0
        %1154 = vmatmul.mubr.bf16.gmra.mrb[0].mxu0 %v1010
        %v1155 = vpop.f32.mrb[0].mxu0
        %v1156 = vadd.f32 0.0, %v1155
        %v1157 = vpop.f32.mrb[0].mxu0
        %v1158 = vpop.f32.mrb[0].mxu0
        %v1159 = vadd.f32 0.0, %v1158
        %v1160 = vpop.f32.mrb[0].mxu0
        %1161 = vmatprep.mubr.bf16.mxu0 0
        %1162 = vmatmul.mubr.bf16.gmra.mrb[0].mxu0 %v1012
        %v1163 = vpop.f32.mrb[0].mxu0
        %v1164 = vadd.f32 0.0, %v1163
        %v1165 = vpop.f32.mrb[0].mxu0
        %v1166 = vpop.f32.mrb[0].mxu0
        %v1167 = vadd.f32 0.0, %v1166
        %v1168 = vpop.f32.mrb[0].mxu0
        %1169 = vmatprep.mubr.bf16.mxu0 0
        %1170 = vmatmul.mubr.bf16.gmra.mrb[0].mxu0 %v1014
        %v1171 = vpop.f32.mrb[0].mxu0
        %v1172 = vadd.f32 0.0, %v1171
        %v1173 = vpop.f32.mrb[0].mxu0
        %v1174 = vpop.f32.mrb[0].mxu0
        %v1175 = vadd.f32 0.0, %v1174
        %v1176 = vpop.f32.mrb[0].mxu0
        %1177 = vmatprep.mubr.bf16.mxu0 0
        %1178 = vmatmul.mubr.bf16.gmra.mrb[0].mxu0 %v1013
        %v1179 = vpop.f32.mrb[0].mxu0
        %v1180 = vadd.f32 0.0, %v1179
        %v1181 = vpop.f32.mrb[0].mxu0
        %v1182 = vpop.f32.mrb[0].mxu0
        %v1183 = vpop.f32.mrb[0].mxu0
        %1184 = vdwg.mxu0
        %v1185 = vadd.f32 %v908, %v1108
        %v1186 = vadd.f32 %v911, %v1111
        %v1187 = vadd.f32 %v916, %v1116
        %v1188 = vadd.f32 %v919, %v1119
        %v1189 = vadd.f32 %v924, %v1124
        %v1190 = vadd.f32 %v927, %v1127
        %v1191 = vadd.f32 %v932, %v1132
        %v1192 = vadd.f32 %v935, %v1135
        %v1193 = vadd.f32 %v940, %v1140
        %v1194 = vadd.f32 %v943, %v1143
        %v1195 = vadd.f32 %v948, %v1148
        %v1196 = vadd.f32 %v951, %v1151
        %v1197 = vadd.f32 %v956, %v1156
        %v1198 = vadd.f32 %v959, %v1159
        %v1199 = vadd.f32 %v964, %v1164
        %v1200 = vadd.f32 %v967, %v1167
        %v1201 = vadd.f32 %v972, %v1172
        %v1202 = vadd.f32 %v975, %v1175
        %v1203 = vadd.f32 %v980, %v1180
        %v1205 = vlaneseq
        %v1206 = vshrl.u32 %v1205, 7
        %v1207 = vsub.s32 0, %v1206
        %v1208 = vrot.slane %v564, %v1207
        %v1210 = vadd.f32 %v1185, %v1208
        %v1211 = vadd.f32 %v1186, %v1208
        %v1212 = vadd.f32 %v1187, %v1208
        %v1213 = vadd.f32 %v1188, %v1208
        %v1214 = vadd.f32 %v1189, %v1208
        %v1215 = vadd.f32 %v1190, %v1208
        %v1216 = vadd.f32 %v1191, %v1208
        %v1217 = vadd.f32 %v1192, %v1208
        %v1218 = vadd.f32 %v1193, %v1208
        %v1219 = vadd.f32 %v1194, %v1208
        %v1220 = vadd.f32 %v1195, %v1208
        %v1221 = vadd.f32 %v1196, %v1208
        %v1222 = vadd.f32 %v1197, %v1208
        %v1223 = vadd.f32 %v1198, %v1208
        %v1224 = vadd.f32 %v1199, %v1208
        %v1225 = vadd.f32 %v1200, %v1208
        %v1226 = vadd.f32 %v1201, %v1208
        %v1227 = vadd.f32 %v1202, %v1208
        %v1228 = vadd.f32 %v1203, %v1208
        %vm1229 = vcmp.ge.f32.partialorder %v1210, 0.0
        %vm1230 = vcmp.ge.f32.partialorder %v1211, 0.0
        %vm1231 = vcmp.ge.f32.partialorder %v1212, 0.0
        %vm1232 = vcmp.ge.f32.partialorder %v1213, 0.0
        %vm1233 = vcmp.ge.f32.partialorder %v1214, 0.0
        %vm1234 = vcmp.ge.f32.partialorder %v1215, 0.0
        %vm1235 = vcmp.ge.f32.partialorder %v1216, 0.0
        %vm1236 = vcmp.ge.f32.partialorder %v1217, 0.0
        %vm1237 = vcmp.ge.f32.partialorder %v1218, 0.0
        %vm1238 = vcmp.ge.f32.partialorder %v1219, 0.0
        %vm1239 = vcmp.ge.f32.partialorder %v1220, 0.0
        %vm1240 = vcmp.ge.f32.partialorder %v1221, 0.0
        %vm1241 = vcmp.ge.f32.partialorder %v1222, 0.0
        %vm1242 = vcmp.ge.f32.partialorder %v1223, 0.0
        %vm1243 = vcmp.ge.f32.partialorder %v1224, 0.0
        %vm1244 = vcmp.ge.f32.partialorder %v1225, 0.0
        %vm1245 = vcmp.ge.f32.partialorder %v1226, 0.0
        %vm1246 = vcmp.ge.f32.partialorder %v1227, 0.0
        %vm1247 = vcmp.ge.f32.partialorder %v1228, 0.0
        %v1248 = vmul.f32 %v1210, 0.1
        %v1249 = vmul.f32 %v1211, 0.1
        %v1250 = vmul.f32 %v1212, 0.1
        %v1251 = vmul.f32 %v1213, 0.1
        %v1252 = vmul.f32 %v1214, 0.1
        %v1253 = vmul.f32 %v1215, 0.1
        %v1254 = vmul.f32 %v1216, 0.1
        %v1255 = vmul.f32 %v1217, 0.1
        %v1256 = vmul.f32 %v1218, 0.1
        %v1257 = vmul.f32 %v1219, 0.1
        %v1258 = vmul.f32 %v1220, 0.1
        %v1259 = vmul.f32 %v1221, 0.1
        %v1260 = vmul.f32 %v1222, 0.1
        %v1261 = vmul.f32 %v1223, 0.1
        %v1262 = vmul.f32 %v1224, 0.1
        %v1263 = vmul.f32 %v1225, 0.1
        %v1264 = vmul.f32 %v1226, 0.1
        %v1265 = vmul.f32 %v1227, 0.1
        %v1266 = vmul.f32 %v1228, 0.1
        %v1267 = vsel %vm1229, %v1210, %v1248
        %v1268 = vsel %vm1230, %v1211, %v1249
        %v1269 = vsel %vm1231, %v1212, %v1250
        %v1270 = vsel %vm1232, %v1213, %v1251
        %v1271 = vsel %vm1233, %v1214, %v1252
        %v1272 = vsel %vm1234, %v1215, %v1253
        %v1273 = vsel %vm1235, %v1216, %v1254
        %v1274 = vsel %vm1236, %v1217, %v1255
        %v1275 = vsel %vm1237, %v1218, %v1256
        %v1276 = vsel %vm1238, %v1219, %v1257
        %v1277 = vsel %vm1239, %v1220, %v1258
        %v1278 = vsel %vm1240, %v1221, %v1259
        %v1279 = vsel %vm1241, %v1222, %v1260
        %v1280 = vsel %vm1242, %v1223, %v1261
        %v1281 = vsel %vm1243, %v1224, %v1262
        %v1282 = vsel %vm1244, %v1225, %v1263
        %v1283 = vsel %vm1245, %v1226, %v1264
        %v1284 = vsel %vm1246, %v1227, %v1265
        %v1285 = vsel %vm1247, %v1228, %v1266
        %vm1305 = vcmask 1046528
        %v1306 = vrot.slane %v421, 1
        %v1307 = vrot.slane %v422, 1
        %v1308 = vsel %vm1305, %v1306, %v1307
        %v1309 = vrot.slane %v423, 1
        %v1310 = vsel %vm1305, %v1307, %v1309
        %v1311 = vrot.slane %v424, 1
        %v1312 = vsel %vm1305, %v1309, %v1311
        %v1313 = vrot.slane %v425, 1
        %v1314 = vsel %vm1305, %v1311, %v1313
        %v1315 = vrot.slane %v426, 1
        %v1316 = vsel %vm1305, %v1313, %v1315
        %v1317 = vrot.slane %v427, 1
        %v1318 = vsel %vm1305, %v1315, %v1317
        %v1319 = vrot.slane %v428, 1
        %v1320 = vsel %vm1305, %v1317, %v1319
        %v1321 = vrot.slane %v429, 1
        %v1322 = vsel %vm1305, %v1319, %v1321
        %v1323 = vrot.slane %v430, 1
        %v1324 = vsel %vm1305, %v1321, %v1323
        %v1325 = vrot.slane %v431, 1
        %v1326 = vsel %vm1305, %v1323, %v1325
        %v1327 = vrot.slane %v432, 1
        %v1328 = vsel %vm1305, %v1325, %v1327
        %v1329 = vrot.slane %v433, 1
        %v1330 = vsel %vm1305, %v1327, %v1329
        %v1331 = vrot.slane %v434, 1
        %v1332 = vsel %vm1305, %v1329, %v1331
        %v1333 = vrot.slane %v435, 1
        %v1334 = vsel %vm1305, %v1331, %v1333
        %v1335 = vrot.slane %v436, 1
        %v1336 = vsel %vm1305, %v1333, %v1335
        %v1337 = vrot.slane %v437, 1
        %v1338 = vsel %vm1305, %v1335, %v1337
        %v1339 = vrot.slane %v438, 1
        %v1340 = vsel %vm1305, %v1337, %v1339
        %v1341 = vrot.slane %v439, 1
        %v1342 = vsel %vm1305, %v1339, %v1341
        %v1362 = vmul.f32 %v1267, %v1308
        %v1363 = vmul.f32 %v1268, %v1310
        %v1364 = vmul.f32 %v1269, %v1312
        %v1365 = vmul.f32 %v1270, %v1314
        %v1366 = vmul.f32 %v1271, %v1316
        %v1367 = vmul.f32 %v1272, %v1318
        %v1368 = vmul.f32 %v1273, %v1320
        %v1369 = vmul.f32 %v1274, %v1322
        %v1370 = vmul.f32 %v1275, %v1324
        %v1371 = vmul.f32 %v1276, %v1326
        %v1372 = vmul.f32 %v1277, %v1328
        %v1373 = vmul.f32 %v1278, %v1330
        %v1374 = vmul.f32 %v1279, %v1332
        %v1375 = vmul.f32 %v1280, %v1334
        %v1376 = vmul.f32 %v1281, %v1336
        %v1377 = vmul.f32 %v1282, %v1338
        %v1378 = vmul.f32 %v1283, %v1340
        %v1379 = vmul.f32 %v1284, %v1342
        %v1380 = vmul.f32 %v1285, %v1341
        %v1381 = vld [vmem:[#allocation7] sm:$0xf]
        %v1382 = vld [vmem:[#allocation7 + $0x4] sm:$0xf]
        %v1383 = vld [vmem:[#allocation7 + $0x8] sm:$0xf]
        %v1384 = vld [vmem:[#allocation7 + $0xc] sm:$0xf]
        %v1385 = vld [vmem:[#allocation7 + $0x10] sm:$0xf]
        %v1386 = vld [vmem:[#allocation7 + $0x14] sm:$0xf]
        %v1387 = vld [vmem:[#allocation7 + $0x18] sm:$0xf]
        %v1388 = vld [vmem:[#allocation7 + $0x1c] sm:$0xf]
        %v1389 = vld [vmem:[#allocation7 + $0x20] sm:$0xf]
        %v1390 = vld [vmem:[#allocation7 + $0x24] sm:$0xf]
        %v1391 = vld [vmem:[#allocation7 + $0x28] sm:$0xf]
        %v1392 = vld [vmem:[#allocation7 + $0x2c] sm:$0xf]
        %v1393 = vld [vmem:[#allocation7 + $0x30] sm:$0xf]
        %v1394 = vld [vmem:[#allocation7 + $0x34] sm:$0xf]
        %v1395 = vld [vmem:[#allocation7 + $0x38] sm:$0xf]
        %v1396 = vld [vmem:[#allocation7 + $0x3c] sm:$0xf]
        %v1397 = vld [vmem:[#allocation7 + $0x40] sm:$0xf]
        %v1398 = vld [vmem:[#allocation7 + $0x44] sm:$0xf]
        %v1399 = vld [vmem:[#allocation7 + $0x48] sm:$0xf]
        %v1400 = vld [vmem:[#allocation7 + $0x4c] sm:$0xf]
        %v1401 = vld [vmem:[#allocation7 + $0x50] sm:$0xf]
        %v1402 = vld [vmem:[#allocation7 + $0x54] sm:$0xf]
        %v1403 = vld [vmem:[#allocation7 + $0x58] sm:$0xf]
        %v1404 = vld [vmem:[#allocation7 + $0x5c] sm:$0xf]
        %v1405 = vld [vmem:[#allocation7 + $0x60] sm:$0xf]
        %v1406 = vld [vmem:[#allocation7 + $0x64] sm:$0xf]
        %v1407 = vld [vmem:[#allocation7 + $0x68] sm:$0xf]
        %v1408 = vld [vmem:[#allocation7 + $0x6c] sm:$0xf]
        %v1409 = vld [vmem:[#allocation7 + $0x70] sm:$0xf]
        %v1410 = vld [vmem:[#allocation7 + $0x74] sm:$0xf]
        %v1411 = vld [vmem:[#allocation7 + $0x78] sm:$0xf]
        %v1412 = vld [vmem:[#allocation7 + $0x7c] sm:$0xf]
        %v1413 = vld [vmem:[#allocation7 + $0x80] sm:$0xf]
        %v1414 = vld [vmem:[#allocation7 + $0x84] sm:$0xf]
        %v1415 = vld [vmem:[#allocation7 + $0x88] sm:$0xf]
        %v1416 = vld [vmem:[#allocation7 + $0x8c] sm:$0xf]
        %v1417 = vld [vmem:[#allocation7 + $0x90] sm:$0xf]
        %v1418 = vld [vmem:[#allocation7 + $0x94] sm:$0xf]
        %v1419 = vld [vmem:[#allocation7 + $0x98] sm:$0xf]
        %v1420 = vld [vmem:[#allocation7 + $0x9c] sm:$0xf]
        %v1421 = vld [vmem:[#allocation7 + $0xa0] sm:$0xf]
        %v1422 = vld [vmem:[#allocation7 + $0xa4] sm:$0xf]
        %v1423 = vld [vmem:[#allocation7 + $0xa8] sm:$0xf]
        %v1424 = vld [vmem:[#allocation7 + $0xac] sm:$0xf]
        %v1425 = vld [vmem:[#allocation7 + $0xb0] sm:$0xf]
        %v1426 = vld [vmem:[#allocation7 + $0xb4] sm:$0xf]
        %v1427 = vld [vmem:[#allocation7 + $0xb8] sm:$0xf]
        %v1428 = vld [vmem:[#allocation7 + $0xbc] sm:$0xf]
        %v1429 = vld [vmem:[%s4] sm:$0x1]
        %v1430 = vpack.c.bf16 %v1363, %v1362
        %v1431 = vpack.c.bf16 %v1365, %v1364
        %v1432 = vpack.c.bf16 %v1367, %v1366
        %v1433 = vpack.c.bf16 %v1369, %v1368
        %v1434 = vpack.c.bf16 %v1371, %v1370
        %v1435 = vpack.c.bf16 %v1373, %v1372
        %v1436 = vpack.c.bf16 %v1375, %v1374
        %v1437 = vpack.c.bf16 %v1377, %v1376
        %v1438 = vpack.c.bf16 %v1379, %v1378
        %v1439 = vpack.c.bf16 %v1380, %v1380
        %v1441 = vshrl.u32 %v1430, 16
        %v1443 = vshll.u32 %v1430, 16
        %v1445 = vrot.slane %v1443, 1
        %v1446 = vor.u32 %v1441, %v1445
        %v1448 = vshll.u32 %v1431, 16
        %v1450 = vrot.slane %v1448, 1
        %v1451 = vsel %vm575, %v1446, %v1450
        %v1452 = vshrl.u32 %v1431, 16
        %v1454 = vor.u32 %v1452, %v1450
        %v1456 = vshll.u32 %v1432, 16
        %v1458 = vrot.slane %v1456, 1
        %v1459 = vsel %vm575, %v1454, %v1458
        %v1460 = vshrl.u32 %v1432, 16
        %v1462 = vor.u32 %v1460, %v1458
        %v1464 = vshll.u32 %v1433, 16
        %v1466 = vrot.slane %v1464, 1
        %v1467 = vsel %vm575, %v1462, %v1466
        %v1468 = vshrl.u32 %v1433, 16
        %v1470 = vor.u32 %v1468, %v1466
        %v1472 = vshll.u32 %v1434, 16
        %v1474 = vrot.slane %v1472, 1
        %v1475 = vsel %vm575, %v1470, %v1474
        %v1476 = vshrl.u32 %v1434, 16
        %v1478 = vor.u32 %v1476, %v1474
        %v1480 = vshll.u32 %v1435, 16
        %v1482 = vrot.slane %v1480, 1
        %v1483 = vsel %vm575, %v1478, %v1482
        %v1484 = vshrl.u32 %v1435, 16
        %v1486 = vor.u32 %v1484, %v1482
        %v1488 = vshll.u32 %v1436, 16
        %v1490 = vrot.slane %v1488, 1
        %v1491 = vsel %vm575, %v1486, %v1490
        %v1492 = vshrl.u32 %v1436, 16
        %v1494 = vor.u32 %v1492, %v1490
        %v1496 = vshll.u32 %v1437, 16
        %v1498 = vrot.slane %v1496, 1
        %v1499 = vsel %vm575, %v1494, %v1498
        %v1500 = vshrl.u32 %v1437, 16
        %v1502 = vor.u32 %v1500, %v1498
        %v1504 = vshll.u32 %v1438, 16
        %v1506 = vrot.slane %v1504, 1
        %v1507 = vsel %vm575, %v1502, %v1506
        %v1508 = vshrl.u32 %v1438, 16
        %v1510 = vor.u32 %v1508, %v1506
        %v1512 = vshll.u32 %v1439, 16
        %v1514 = vrot.slane %v1512, 1
        %v1515 = vsel %vm575, %v1510, %v1514
        %v1516 = vshrl.u32 %v1439, 16
        %v1518 = vor.u32 %v1516, %v1514
        %v1545 = vunpack.c.l.b16 %v1397
        %v1546 = vunpack.c.l.b16 %v1398
        %v1547 = vunpack.c.l.b16 %v1399
        %v1548 = vunpack.c.l.b16 %v1400
        %v1549 = vunpack.c.l.b16 %v1401
        %v1550 = vunpack.c.l.b16 %v1402
        %v1551 = vunpack.c.l.b16 %v1403
        %v1552 = vunpack.c.l.b16 %v1404
        %v1553 = vunpack.c.l.b16 %v1405
        %v1554 = vunpack.c.l.b16 %v1406
        %v1555 = vunpack.c.l.b16 %v1407
        %v1556 = vunpack.c.l.b16 %v1408
        %v1557 = vunpack.c.l.b16 %v1409
        %v1558 = vunpack.c.l.b16 %v1410
        %v1559 = vunpack.c.l.b16 %v1411
        %v1560 = vunpack.c.l.b16 %v1412
        %v1561 = vpack.c.b16 %v1546, %v1545
        %v1562 = vpack.c.b16 %v1548, %v1547
        %v1563 = vpack.c.b16 %v1550, %v1549
        %v1564 = vpack.c.b16 %v1552, %v1551
        %v1565 = vpack.c.b16 %v1554, %v1553
        %v1566 = vpack.c.b16 %v1556, %v1555
        %v1567 = vpack.c.b16 %v1558, %v1557
        %v1568 = vpack.c.b16 %v1560, %v1559
        %1577 = vmatprep.subr.bf16.mxu0 0
        %1578 = vmatpush1.bf16.msra.mxu0 %v1561
        %1579 = vmatprep.subr.bf16.mxu0 0
        %1580 = vmatpush1.bf16.msra.mxu0 %v1562
        %1581 = vmatprep.subr.bf16.mxu0 0
        %1582 = vmatpush1.bf16.msra.mxu0 %v1563
        %1583 = vmatprep.subr.bf16.mxu0 0
        %1584 = vmatpush1.bf16.msra.mxu0 %v1564
        %1585 = vmatprep.subr.bf16.mxu0 0
        %1586 = vmatpush1.bf16.msra.mxu0 %v1565
        %1587 = vmatprep.subr.bf16.mxu0 0
        %1588 = vmatpush1.bf16.msra.mxu0 %v1566
        %1589 = vmatprep.subr.bf16.mxu0 0
        %1590 = vmatpush1.bf16.msra.mxu0 %v1567
        %1591 = vmatprep.subr.bf16.mxu0 0
        %1592 = vmatpush1.bf16.msra.mxu0 %v1568
        %1593 = vmatprep.subr.bf16.mxu0 0
        %1594 = vmatpush1.bf16.msra.mxu0 0
        %1595 = vmatprep.subr.bf16.mxu0 0
        %1596 = vmatpush1.bf16.msra.mxu0 0
        %1597 = vmatprep.subr.bf16.mxu0 0
        %1598 = vmatpush1.bf16.msra.mxu0 0
        %1599 = vmatprep.subr.bf16.mxu0 0
        %1600 = vmatpush1.bf16.msra.mxu0 0
        %1601 = vmatprep.subr.bf16.mxu0 0
        %1602 = vmatpush1.bf16.msra.mxu0 0
        %1603 = vmatprep.subr.bf16.mxu0 0
        %1604 = vmatpush1.bf16.msra.mxu0 0
        %1605 = vmatprep.subr.bf16.mxu0 0
        %1606 = vmatpush1.bf16.msra.mxu0 0
        %1607 = vmatprep.subr.bf16.mxu0 0
        %1608 = vmatpush1.bf16.msra.mxu0 0
        %1609 = vmatprep.mubr.bf16.mxu0 0
        %1610 = vmatmul.mubr.bf16.gmra.mrb[0].mxu0 %v1451
        %v1611 = vpop.f32.mrb[0].mxu0
        %v1612 = vadd.f32 0.0, %v1611
        %v1613 = vpop.f32.mrb[0].mxu0
        %v1614 = vpop.f32.mrb[0].mxu0
        %v1615 = vadd.f32 0.0, %v1614
        %v1616 = vpop.f32.mrb[0].mxu0
        %1617 = vmatprep.mubr.bf16.mxu0 0
        %1618 = vmatmul.mubr.bf16.gmra.mrb[0].mxu0 %v1459
        %v1619 = vpop.f32.mrb[0].mxu0
        %v1620 = vadd.f32 0.0, %v1619
        %v1621 = vpop.f32.mrb[0].mxu0
        %v1622 = vpop.f32.mrb[0].mxu0
        %v1623 = vadd.f32 0.0, %v1622
        %v1624 = vpop.f32.mrb[0].mxu0
        %1625 = vmatprep.mubr.bf16.mxu0 0
        %1626 = vmatmul.mubr.bf16.gmra.mrb[0].mxu0 %v1467
        %v1627 = vpop.f32.mrb[0].mxu0
        %v1628 = vadd.f32 0.0, %v1627
        %v1629 = vpop.f32.mrb[0].mxu0
        %v1630 = vpop.f32.mrb[0].mxu0
        %v1631 = vadd.f32 0.0, %v1630
        %v1632 = vpop.f32.mrb[0].mxu0
        %1633 = vmatprep.mubr.bf16.mxu0 0
        %1634 = vmatmul.mubr.bf16.gmra.mrb[0].mxu0 %v1475
        %v1635 = vpop.f32.mrb[0].mxu0
        %v1636 = vadd.f32 0.0, %v1635
        %v1637 = vpop.f32.mrb[0].mxu0
        %v1638 = vpop.f32.mrb[0].mxu0
        %v1639 = vadd.f32 0.0, %v1638
        %v1640 = vpop.f32.mrb[0].mxu0
        %1641 = vmatprep.mubr.bf16.mxu0 0
        %1642 = vmatmul.mubr.bf16.gmra.mrb[0].mxu0 %v1483
        %v1643 = vpop.f32.mrb[0].mxu0
        %v1644 = vadd.f32 0.0, %v1643
        %v1645 = vpop.f32.mrb[0].mxu0
        %v1646 = vpop.f32.mrb[0].mxu0
        %v1647 = vadd.f32 0.0, %v1646
        %v1648 = vpop.f32.mrb[0].mxu0
        %1649 = vmatprep.mubr.bf16.mxu0 0
        %1650 = vmatmul.mubr.bf16.gmra.mrb[0].mxu0 %v1491
        %v1651 = vpop.f32.mrb[0].mxu0
        %v1652 = vadd.f32 0.0, %v1651
        %v1653 = vpop.f32.mrb[0].mxu0
        %v1654 = vpop.f32.mrb[0].mxu0
        %v1655 = vadd.f32 0.0, %v1654
        %v1656 = vpop.f32.mrb[0].mxu0
        %1657 = vmatprep.mubr.bf16.mxu0 0
        %1658 = vmatmul.mubr.bf16.gmra.mrb[0].mxu0 %v1499
        %v1659 = vpop.f32.mrb[0].mxu0
        %v1660 = vadd.f32 0.0, %v1659
        %v1661 = vpop.f32.mrb[0].mxu0
        %v1662 = vpop.f32.mrb[0].mxu0
        %v1663 = vadd.f32 0.0, %v1662
        %v1664 = vpop.f32.mrb[0].mxu0
        %1665 = vmatprep.mubr.bf16.mxu0 0
        %1666 = vmatmul.mubr.bf16.gmra.mrb[0].mxu0 %v1507
        %v1667 = vpop.f32.mrb[0].mxu0
        %v1668 = vadd.f32 0.0, %v1667
        %v1669 = vpop.f32.mrb[0].mxu0
        %v1670 = vpop.f32.mrb[0].mxu0
        %v1671 = vadd.f32 0.0, %v1670
        %v1672 = vpop.f32.mrb[0].mxu0
        %1673 = vmatprep.mubr.bf16.mxu0 0
        %1674 = vmatmul.mubr.bf16.gmra.mrb[0].mxu0 %v1515
        %v1675 = vpop.f32.mrb[0].mxu0
        %v1676 = vadd.f32 0.0, %v1675
        %v1677 = vpop.f32.mrb[0].mxu0
        %v1678 = vpop.f32.mrb[0].mxu0
        %v1679 = vadd.f32 0.0, %v1678
        %v1680 = vpop.f32.mrb[0].mxu0
        %1681 = vmatprep.mubr.bf16.mxu0 0
        %1682 = vmatmul.mubr.bf16.gmra.mrb[0].mxu0 %v1518
        %v1683 = vpop.f32.mrb[0].mxu0
        %v1684 = vadd.f32 0.0, %v1683
        %v1685 = vpop.f32.mrb[0].mxu0
        %v1686 = vpop.f32.mrb[0].mxu0
        %v1687 = vpop.f32.mrb[0].mxu0
        %1688 = vdwg.mxu0
        %v1705 = vunpack.c.l.b16 %v1381
        %v1706 = vunpack.c.l.b16 %v1382
        %v1707 = vunpack.c.l.b16 %v1383
        %v1708 = vunpack.c.l.b16 %v1384
        %v1709 = vunpack.c.l.b16 %v1385
        %v1710 = vunpack.c.l.b16 %v1386
        %v1711 = vunpack.c.l.b16 %v1387
        %v1712 = vunpack.c.l.b16 %v1388
        %v1713 = vunpack.c.l.b16 %v1389
        %v1714 = vunpack.c.l.b16 %v1390
        %v1715 = vunpack.c.l.b16 %v1391
        %v1716 = vunpack.c.l.b16 %v1392
        %v1717 = vunpack.c.l.b16 %v1393
        %v1718 = vunpack.c.l.b16 %v1394
        %v1719 = vunpack.c.l.b16 %v1395
        %v1720 = vunpack.c.l.b16 %v1396
        %v1721 = vpack.c.b16 %v1706, %v1705
        %v1722 = vpack.c.b16 %v1708, %v1707
        %v1723 = vpack.c.b16 %v1710, %v1709
        %v1724 = vpack.c.b16 %v1712, %v1711
        %v1725 = vpack.c.b16 %v1714, %v1713
        %v1726 = vpack.c.b16 %v1716, %v1715
        %v1727 = vpack.c.b16 %v1718, %v1717
        %v1728 = vpack.c.b16 %v1720, %v1719
        %1737 = vmatprep.subr.bf16.mxu0 0
        %1738 = vmatpush1.bf16.msra.mxu0 %v1721
        %1739 = vmatprep.subr.bf16.mxu0 0
        %1740 = vmatpush1.bf16.msra.mxu0 %v1722
        %1741 = vmatprep.subr.bf16.mxu0 0
        %1742 = vmatpush1.bf16.msra.mxu0 %v1723
        %1743 = vmatprep.subr.bf16.mxu0 0
        %1744 = vmatpush1.bf16.msra.mxu0 %v1724
        %1745 = vmatprep.subr.bf16.mxu0 0
        %1746 = vmatpush1.bf16.msra.mxu0 %v1725
        %1747 = vmatprep.subr.bf16.mxu0 0
        %1748 = vmatpush1.bf16.msra.mxu0 %v1726
        %1749 = vmatprep.subr.bf16.mxu0 0
        %1750 = vmatpush1.bf16.msra.mxu0 %v1727
        %1751 = vmatprep.subr.bf16.mxu0 0
        %1752 = vmatpush1.bf16.msra.mxu0 %v1728
        %1753 = vmatprep.subr.bf16.mxu0 0
        %1754 = vmatpush1.bf16.msra.mxu0 0
        %1755 = vmatprep.subr.bf16.mxu0 0
        %1756 = vmatpush1.bf16.msra.mxu0 0
        %1757 = vmatprep.subr.bf16.mxu0 0
        %1758 = vmatpush1.bf16.msra.mxu0 0
        %1759 = vmatprep.subr.bf16.mxu0 0
        %1760 = vmatpush1.bf16.msra.mxu0 0
        %1761 = vmatprep.subr.bf16.mxu0 0
        %1762 = vmatpush1.bf16.msra.mxu0 0
        %1763 = vmatprep.subr.bf16.mxu0 0
        %1764 = vmatpush1.bf16.msra.mxu0 0
        %1765 = vmatprep.subr.bf16.mxu0 0
        %1766 = vmatpush1.bf16.msra.mxu0 0
        %1767 = vmatprep.subr.bf16.mxu0 0
        %1768 = vmatpush1.bf16.msra.mxu0 0
        %1769 = vmatprep.mubr.bf16.mxu0 0
        %1770 = vmatmul.mubr.bf16.gmra.mrb[0].mxu0 %v1430
        %v1771 = vpop.f32.mrb[0].mxu0
        %v1772 = vadd.f32 %v1612, %v1771
        %v1773 = vpop.f32.mrb[0].mxu0
        %v1774 = vpop.f32.mrb[0].mxu0
        %v1775 = vadd.f32 %v1615, %v1774
        %v1776 = vpop.f32.mrb[0].mxu0
        %1777 = vmatprep.mubr.bf16.mxu0 0
        %1778 = vmatmul.mubr.bf16.gmra.mrb[0].mxu0 %v1431
        %v1779 = vpop.f32.mrb[0].mxu0
        %v1780 = vadd.f32 %v1620, %v1779
        %v1781 = vpop.f32.mrb[0].mxu0
        %v1782 = vpop.f32.mrb[0].mxu0
        %v1783 = vadd.f32 %v1623, %v1782
        %v1784 = vpop.f32.mrb[0].mxu0
        %1785 = vmatprep.mubr.bf16.mxu0 0
        %1786 = vmatmul.mubr.bf16.gmra.mrb[0].mxu0 %v1432
        %v1787 = vpop.f32.mrb[0].mxu0
        %v1788 = vadd.f32 %v1628, %v1787
        %v1789 = vpop.f32.mrb[0].mxu0
        %v1790 = vpop.f32.mrb[0].mxu0
        %v1791 = vadd.f32 %v1631, %v1790
        %v1792 = vpop.f32.mrb[0].mxu0
        %1793 = vmatprep.mubr.bf16.mxu0 0
        %1794 = vmatmul.mubr.bf16.gmra.mrb[0].mxu0 %v1433
        %v1795 = vpop.f32.mrb[0].mxu0
        %v1796 = vadd.f32 %v1636, %v1795
        %v1797 = vpop.f32.mrb[0].mxu0
        %v1798 = vpop.f32.mrb[0].mxu0
        %v1799 = vadd.f32 %v1639, %v1798
        %v1800 = vpop.f32.mrb[0].mxu0
        %1801 = vmatprep.mubr.bf16.mxu0 0
        %1802 = vmatmul.mubr.bf16.gmra.mrb[0].mxu0 %v1434
        %v1803 = vpop.f32.mrb[0].mxu0
        %v1804 = vadd.f32 %v1644, %v1803
        %v1805 = vpop.f32.mrb[0].mxu0
        %v1806 = vpop.f32.mrb[0].mxu0
        %v1807 = vadd.f32 %v1647, %v1806
        %v1808 = vpop.f32.mrb[0].mxu0
        %1809 = vmatprep.mubr.bf16.mxu0 0
        %1810 = vmatmul.mubr.bf16.gmra.mrb[0].mxu0 %v1435
        %v1811 = vpop.f32.mrb[0].mxu0
        %v1812 = vadd.f32 %v1652, %v1811
        %v1813 = vpop.f32.mrb[0].mxu0
        %v1814 = vpop.f32.mrb[0].mxu0
        %v1815 = vadd.f32 %v1655, %v1814
        %v1816 = vpop.f32.mrb[0].mxu0
        %1817 = vmatprep.mubr.bf16.mxu0 0
        %1818 = vmatmul.mubr.bf16.gmra.mrb[0].mxu0 %v1436
        %v1819 = vpop.f32.mrb[0].mxu0
        %v1820 = vadd.f32 %v1660, %v1819
        %v1821 = vpop.f32.mrb[0].mxu0
        %v1822 = vpop.f32.mrb[0].mxu0
        %v1823 = vadd.f32 %v1663, %v1822
        %v1824 = vpop.f32.mrb[0].mxu0
        %1825 = vmatprep.mubr.bf16.mxu0 0
        %1826 = vmatmul.mubr.bf16.gmra.mrb[0].mxu0 %v1437
        %v1827 = vpop.f32.mrb[0].mxu0
        %v1828 = vadd.f32 %v1668, %v1827
        %v1829 = vpop.f32.mrb[0].mxu0
        %v1830 = vpop.f32.mrb[0].mxu0
        %v1831 = vadd.f32 %v1671, %v1830
        %v1832 = vpop.f32.mrb[0].mxu0
        %1833 = vmatprep.mubr.bf16.mxu0 0
        %1834 = vmatmul.mubr.bf16.gmra.mrb[0].mxu0 %v1438
        %v1835 = vpop.f32.mrb[0].mxu0
        %v1836 = vadd.f32 %v1676, %v1835
        %v1837 = vpop.f32.mrb[0].mxu0
        %v1838 = vpop.f32.mrb[0].mxu0
        %v1839 = vadd.f32 %v1679, %v1838
        %v1840 = vpop.f32.mrb[0].mxu0
        %1841 = vmatprep.mubr.bf16.mxu0 0
        %1842 = vmatmul.mubr.bf16.gmra.mrb[0].mxu0 %v1439
        %v1843 = vpop.f32.mrb[0].mxu0
        %v1844 = vadd.f32 %v1684, %v1843
        %v1845 = vpop.f32.mrb[0].mxu0
        %v1846 = vpop.f32.mrb[0].mxu0
        %v1847 = vpop.f32.mrb[0].mxu0
        %1848 = vdwg.mxu0
        %v1859 = vrot.slane %v1430, 1
        %v1860 = vrot.slane %v1431, 1
        %v1861 = vsel %vm995, %v1859, %v1860
        %v1862 = vrot.slane %v1432, 1
        %v1863 = vsel %vm995, %v1860, %v1862
        %v1864 = vrot.slane %v1433, 1
        %v1865 = vsel %vm995, %v1862, %v1864
        %v1866 = vrot.slane %v1434, 1
        %v1867 = vsel %vm995, %v1864, %v1866
        %v1868 = vrot.slane %v1435, 1
        %v1869 = vsel %vm995, %v1866, %v1868
        %v1870 = vrot.slane %v1436, 1
        %v1871 = vsel %vm995, %v1868, %v1870
        %v1872 = vrot.slane %v1437, 1
        %v1873 = vsel %vm995, %v1870, %v1872
        %v1874 = vrot.slane %v1438, 1
        %v1875 = vsel %vm995, %v1872, %v1874
        %v1876 = vrot.slane %v1439, 1
        %v1877 = vsel %vm995, %v1874, %v1876
        %v1904 = vunpack.c.l.b16 %v1413
        %v1905 = vunpack.c.l.b16 %v1414
        %v1906 = vunpack.c.l.b16 %v1415
        %v1907 = vunpack.c.l.b16 %v1416
        %v1908 = vunpack.c.l.b16 %v1417
        %v1909 = vunpack.c.l.b16 %v1418
        %v1910 = vunpack.c.l.b16 %v1419
        %v1911 = vunpack.c.l.b16 %v1420
        %v1912 = vunpack.c.l.b16 %v1421
        %v1913 = vunpack.c.l.b16 %v1422
        %v1914 = vunpack.c.l.b16 %v1423
        %v1915 = vunpack.c.l.b16 %v1424
        %v1916 = vunpack.c.l.b16 %v1425
        %v1917 = vunpack.c.l.b16 %v1426
        %v1918 = vunpack.c.l.b16 %v1427
        %v1919 = vunpack.c.l.b16 %v1428
        %v1920 = vpack.c.b16 %v1905, %v1904
        %v1921 = vpack.c.b16 %v1907, %v1906
        %v1922 = vpack.c.b16 %v1909, %v1908
        %v1923 = vpack.c.b16 %v1911, %v1910
        %v1924 = vpack.c.b16 %v1913, %v1912
        %v1925 = vpack.c.b16 %v1915, %v1914
        %v1926 = vpack.c.b16 %v1917, %v1916
        %v1927 = vpack.c.b16 %v1919, %v1918
        %1936 = vmatprep.subr.bf16.mxu0 0
        %1937 = vmatpush1.bf16.msra.mxu0 %v1920
        %1938 = vmatprep.subr.bf16.mxu0 0
        %1939 = vmatpush1.bf16.msra.mxu0 %v1921
        %1940 = vmatprep.subr.bf16.mxu0 0
        %1941 = vmatpush1.bf16.msra.mxu0 %v1922
        %1942 = vmatprep.subr.bf16.mxu0 0
        %1943 = vmatpush1.bf16.msra.mxu0 %v1923
        %1944 = vmatprep.subr.bf16.mxu0 0
        %1945 = vmatpush1.bf16.msra.mxu0 %v1924
        %1946 = vmatprep.subr.bf16.mxu0 0
        %1947 = vmatpush1.bf16.msra.mxu0 %v1925
        %1948 = vmatprep.subr.bf16.mxu0 0
        %1949 = vmatpush1.bf16.msra.mxu0 %v1926
        %1950 = vmatprep.subr.bf16.mxu0 0
        %1951 = vmatpush1.bf16.msra.mxu0 %v1927
        %1952 = vmatprep.subr.bf16.mxu0 0
        %1953 = vmatpush1.bf16.msra.mxu0 0
        %1954 = vmatprep.subr.bf16.mxu0 0
        %1955 = vmatpush1.bf16.msra.mxu0 0
        %1956 = vmatprep.subr.bf16.mxu0 0
        %1957 = vmatpush1.bf16.msra.mxu0 0
        %1958 = vmatprep.subr.bf16.mxu0 0
        %1959 = vmatpush1.bf16.msra.mxu0 0
        %1960 = vmatprep.subr.bf16.mxu0 0
        %1961 = vmatpush1.bf16.msra.mxu0 0
        %1962 = vmatprep.subr.bf16.mxu0 0
        %1963 = vmatpush1.bf16.msra.mxu0 0
        %1964 = vmatprep.subr.bf16.mxu0 0
        %1965 = vmatpush1.bf16.msra.mxu0 0
        %1966 = vmatprep.subr.bf16.mxu0 0
        %1967 = vmatpush1.bf16.msra.mxu0 0
        %1968 = vmatprep.mubr.bf16.mxu0 0
        %1969 = vmatmul.mubr.bf16.gmra.mrb[0].mxu0 %v1861
        %v1970 = vpop.f32.mrb[0].mxu0
        %v1971 = vadd.f32 0.0, %v1970
        %v1972 = vpop.f32.mrb[0].mxu0
        %v1973 = vpop.f32.mrb[0].mxu0
        %v1974 = vadd.f32 0.0, %v1973
        %v1975 = vpop.f32.mrb[0].mxu0
        %1976 = vmatprep.mubr.bf16.mxu0 0
        %1977 = vmatmul.mubr.bf16.gmra.mrb[0].mxu0 %v1863
        %v1978 = vpop.f32.mrb[0].mxu0
        %v1979 = vadd.f32 0.0, %v1978
        %v1980 = vpop.f32.mrb[0].mxu0
        %v1981 = vpop.f32.mrb[0].mxu0
        %v1982 = vadd.f32 0.0, %v1981
        %v1983 = vpop.f32.mrb[0].mxu0
        %1984 = vmatprep.mubr.bf16.mxu0 0
        %1985 = vmatmul.mubr.bf16.gmra.mrb[0].mxu0 %v1865
        %v1986 = vpop.f32.mrb[0].mxu0
        %v1987 = vadd.f32 0.0, %v1986
        %v1988 = vpop.f32.mrb[0].mxu0
        %v1989 = vpop.f32.mrb[0].mxu0
        %v1990 = vadd.f32 0.0, %v1989
        %v1991 = vpop.f32.mrb[0].mxu0
        %1992 = vmatprep.mubr.bf16.mxu0 0
        %1993 = vmatmul.mubr.bf16.gmra.mrb[0].mxu0 %v1867
        %v1994 = vpop.f32.mrb[0].mxu0
        %v1995 = vadd.f32 0.0, %v1994
        %v1996 = vpop.f32.mrb[0].mxu0
        %v1997 = vpop.f32.mrb[0].mxu0
        %v1998 = vadd.f32 0.0, %v1997
        %v1999 = vpop.f32.mrb[0].mxu0
        %2000 = vmatprep.mubr.bf16.mxu0 0
        %2001 = vmatmul.mubr.bf16.gmra.mrb[0].mxu0 %v1869
        %v2002 = vpop.f32.mrb[0].mxu0
        %v2003 = vadd.f32 0.0, %v2002
        %v2004 = vpop.f32.mrb[0].mxu0
        %v2005 = vpop.f32.mrb[0].mxu0
        %v2006 = vadd.f32 0.0, %v2005
        %v2007 = vpop.f32.mrb[0].mxu0
        %2008 = vmatprep.mubr.bf16.mxu0 0
        %2009 = vmatmul.mubr.bf16.gmra.mrb[0].mxu0 %v1871
        %v2010 = vpop.f32.mrb[0].mxu0
        %v2011 = vadd.f32 0.0, %v2010
        %v2012 = vpop.f32.mrb[0].mxu0
        %v2013 = vpop.f32.mrb[0].mxu0
        %v2014 = vadd.f32 0.0, %v2013
        %v2015 = vpop.f32.mrb[0].mxu0
        %2016 = vmatprep.mubr.bf16.mxu0 0
        %2017 = vmatmul.mubr.bf16.gmra.mrb[0].mxu0 %v1873
        %v2018 = vpop.f32.mrb[0].mxu0
        %v2019 = vadd.f32 0.0, %v2018
        %v2020 = vpop.f32.mrb[0].mxu0
        %v2021 = vpop.f32.mrb[0].mxu0
        %v2022 = vadd.f32 0.0, %v2021
        %v2023 = vpop.f32.mrb[0].mxu0
        %2024 = vmatprep.mubr.bf16.mxu0 0
        %2025 = vmatmul.mubr.bf16.gmra.mrb[0].mxu0 %v1875
        %v2026 = vpop.f32.mrb[0].mxu0
        %v2027 = vadd.f32 0.0, %v2026
        %v2028 = vpop.f32.mrb[0].mxu0
        %v2029 = vpop.f32.mrb[0].mxu0
        %v2030 = vadd.f32 0.0, %v2029
        %v2031 = vpop.f32.mrb[0].mxu0
        %2032 = vmatprep.mubr.bf16.mxu0 0
        %2033 = vmatmul.mubr.bf16.gmra.mrb[0].mxu0 %v1877
        %v2034 = vpop.f32.mrb[0].mxu0
        %v2035 = vadd.f32 0.0, %v2034
        %v2036 = vpop.f32.mrb[0].mxu0
        %v2037 = vpop.f32.mrb[0].mxu0
        %v2038 = vadd.f32 0.0, %v2037
        %v2039 = vpop.f32.mrb[0].mxu0
        %2040 = vmatprep.mubr.bf16.mxu0 0
        %2041 = vmatmul.mubr.bf16.gmra.mrb[0].mxu0 %v1876
        %v2042 = vpop.f32.mrb[0].mxu0
        %v2043 = vadd.f32 0.0, %v2042
        %v2044 = vpop.f32.mrb[0].mxu0
        %v2045 = vpop.f32.mrb[0].mxu0
        %v2046 = vpop.f32.mrb[0].mxu0
        %2047 = vdwg.mxu0
        %v2048 = vadd.f32 %v1772, %v1971
        %v2049 = vadd.f32 %v1775, %v1974
        %v2050 = vadd.f32 %v1780, %v1979
        %v2051 = vadd.f32 %v1783, %v1982
        %v2052 = vadd.f32 %v1788, %v1987
        %v2053 = vadd.f32 %v1791, %v1990
        %v2054 = vadd.f32 %v1796, %v1995
        %v2055 = vadd.f32 %v1799, %v1998
        %v2056 = vadd.f32 %v1804, %v2003
        %v2057 = vadd.f32 %v1807, %v2006
        %v2058 = vadd.f32 %v1812, %v2011
        %v2059 = vadd.f32 %v1815, %v2014
        %v2060 = vadd.f32 %v1820, %v2019
        %v2061 = vadd.f32 %v1823, %v2022
        %v2062 = vadd.f32 %v1828, %v2027
        %v2063 = vadd.f32 %v1831, %v2030
        %v2064 = vadd.f32 %v1836, %v2035
        %v2065 = vadd.f32 %v1839, %v2038
        %v2066 = vadd.f32 %v1844, %v2043
        %v2068 = vlaneseq
        %v2069 = vshrl.u32 %v2068, 7
        %v2070 = vsub.s32 0, %v2069
        %v2071 = vrot.slane %v1429, %v2070
        %v2073 = vadd.f32 %v2048, %v2071
        %v2074 = vadd.f32 %v2049, %v2071
        %v2075 = vadd.f32 %v2050, %v2071
        %v2076 = vadd.f32 %v2051, %v2071
        %v2077 = vadd.f32 %v2052, %v2071
        %v2078 = vadd.f32 %v2053, %v2071
        %v2079 = vadd.f32 %v2054, %v2071
        %v2080 = vadd.f32 %v2055, %v2071
        %v2081 = vadd.f32 %v2056, %v2071
        %v2082 = vadd.f32 %v2057, %v2071
        %v2083 = vadd.f32 %v2058, %v2071
        %v2084 = vadd.f32 %v2059, %v2071
        %v2085 = vadd.f32 %v2060, %v2071
        %v2086 = vadd.f32 %v2061, %v2071
        %v2087 = vadd.f32 %v2062, %v2071
        %v2088 = vadd.f32 %v2063, %v2071
        %v2089 = vadd.f32 %v2064, %v2071
        %v2090 = vadd.f32 %v2065, %v2071
        %v2091 = vadd.f32 %v2066, %v2071
        %vm2111 = vcmask 1045504
        %v2112 = vrot.slane %v285, 2
        %v2113 = vrot.slane %v286, 2
        %v2114 = vsel %vm2111, %v2112, %v2113
        %v2115 = vrot.slane %v287, 2
        %v2116 = vsel %vm2111, %v2113, %v2115
        %v2117 = vrot.slane %v288, 2
        %v2118 = vsel %vm2111, %v2115, %v2117
        %v2119 = vrot.slane %v289, 2
        %v2120 = vsel %vm2111, %v2117, %v2119
        %v2121 = vrot.slane %v290, 2
        %v2122 = vsel %vm2111, %v2119, %v2121
        %v2123 = vrot.slane %v291, 2
        %v2124 = vsel %vm2111, %v2121, %v2123
        %v2125 = vrot.slane %v292, 2
        %v2126 = vsel %vm2111, %v2123, %v2125
        %v2127 = vrot.slane %v293, 2
        %v2128 = vsel %vm2111, %v2125, %v2127
        %v2129 = vrot.slane %v294, 2
        %v2130 = vsel %vm2111, %v2127, %v2129
        %v2131 = vrot.slane %v295, 2
        %v2132 = vsel %vm2111, %v2129, %v2131
        %v2133 = vrot.slane %v296, 2
        %v2134 = vsel %vm2111, %v2131, %v2133
        %v2135 = vrot.slane %v297, 2
        %v2136 = vsel %vm2111, %v2133, %v2135
        %v2137 = vrot.slane %v298, 2
        %v2138 = vsel %vm2111, %v2135, %v2137
        %v2139 = vrot.slane %v299, 2
        %v2140 = vsel %vm2111, %v2137, %v2139
        %v2141 = vrot.slane %v300, 2
        %v2142 = vsel %vm2111, %v2139, %v2141
        %v2143 = vrot.slane %v301, 2
        %v2144 = vsel %vm2111, %v2141, %v2143
        %v2145 = vrot.slane %v302, 2
        %v2146 = vsel %vm2111, %v2143, %v2145
        %v2147 = vrot.slane %v303, 2
        %v2148 = vsel %vm2111, %v2145, %v2147
        %v2168 = vadd.f32 %v2073, %v2114
        %v2169 = vadd.f32 %v2074, %v2116
        %v2170 = vadd.f32 %v2075, %v2118
        %v2171 = vadd.f32 %v2076, %v2120
        %v2172 = vadd.f32 %v2077, %v2122
        %v2173 = vadd.f32 %v2078, %v2124
        %v2174 = vadd.f32 %v2079, %v2126
        %v2175 = vadd.f32 %v2080, %v2128
        %v2176 = vadd.f32 %v2081, %v2130
        %v2177 = vadd.f32 %v2082, %v2132
        %v2178 = vadd.f32 %v2083, %v2134
        %v2179 = vadd.f32 %v2084, %v2136
        %v2180 = vadd.f32 %v2085, %v2138
        %v2181 = vadd.f32 %v2086, %v2140
        %v2182 = vadd.f32 %v2087, %v2142
        %v2183 = vadd.f32 %v2088, %v2144
        %v2184 = vadd.f32 %v2089, %v2146
        %v2185 = vadd.f32 %v2090, %v2148
        %v2186 = vadd.f32 %v2091, %v2147
        %vm2187 = vcmp.ge.f32.partialorder %v2168, 0.0
        %vm2188 = vcmp.ge.f32.partialorder %v2169, 0.0
        %vm2189 = vcmp.ge.f32.partialorder %v2170, 0.0
        %vm2190 = vcmp.ge.f32.partialorder %v2171, 0.0
        %vm2191 = vcmp.ge.f32.partialorder %v2172, 0.0
        %vm2192 = vcmp.ge.f32.partialorder %v2173, 0.0
        %vm2193 = vcmp.ge.f32.partialorder %v2174, 0.0
        %vm2194 = vcmp.ge.f32.partialorder %v2175, 0.0
        %vm2195 = vcmp.ge.f32.partialorder %v2176, 0.0
        %vm2196 = vcmp.ge.f32.partialorder %v2177, 0.0
        %vm2197 = vcmp.ge.f32.partialorder %v2178, 0.0
        %vm2198 = vcmp.ge.f32.partialorder %v2179, 0.0
        %vm2199 = vcmp.ge.f32.partialorder %v2180, 0.0
        %vm2200 = vcmp.ge.f32.partialorder %v2181, 0.0
        %vm2201 = vcmp.ge.f32.partialorder %v2182, 0.0
        %vm2202 = vcmp.ge.f32.partialorder %v2183, 0.0
        %vm2203 = vcmp.ge.f32.partialorder %v2184, 0.0
        %vm2204 = vcmp.ge.f32.partialorder %v2185, 0.0
        %vm2205 = vcmp.ge.f32.partialorder %v2186, 0.0
        %v2206 = vmul.f32 %v2168, 0.1
        %v2207 = vmul.f32 %v2169, 0.1
        %v2208 = vmul.f32 %v2170, 0.1
        %v2209 = vmul.f32 %v2171, 0.1
        %v2210 = vmul.f32 %v2172, 0.1
        %v2211 = vmul.f32 %v2173, 0.1
        %v2212 = vmul.f32 %v2174, 0.1
        %v2213 = vmul.f32 %v2175, 0.1
        %v2214 = vmul.f32 %v2176, 0.1
        %v2215 = vmul.f32 %v2177, 0.1
        %v2216 = vmul.f32 %v2178, 0.1
        %v2217 = vmul.f32 %v2179, 0.1
        %v2218 = vmul.f32 %v2180, 0.1
        %v2219 = vmul.f32 %v2181, 0.1
        %v2220 = vmul.f32 %v2182, 0.1
        %v2221 = vmul.f32 %v2183, 0.1
        %v2222 = vmul.f32 %v2184, 0.1
        %v2223 = vmul.f32 %v2185, 0.1
        %v2224 = vmul.f32 %v2186, 0.1
        %v2225 = vsel %vm2187, %v2168, %v2206
        %v2226 = vsel %vm2188, %v2169, %v2207
        %v2227 = vsel %vm2189, %v2170, %v2208
        %v2228 = vsel %vm2190, %v2171, %v2209
        %v2229 = vsel %vm2191, %v2172, %v2210
        %v2230 = vsel %vm2192, %v2173, %v2211
        %v2231 = vsel %vm2193, %v2174, %v2212
        %v2232 = vsel %vm2194, %v2175, %v2213
        %v2233 = vsel %vm2195, %v2176, %v2214
        %v2234 = vsel %vm2196, %v2177, %v2215
        %v2235 = vsel %vm2197, %v2178, %v2216
        %v2236 = vsel %vm2198, %v2179, %v2217
        %v2237 = vsel %vm2199, %v2180, %v2218
        %v2238 = vsel %vm2200, %v2181, %v2219
        %v2239 = vsel %vm2201, %v2182, %v2220
        %v2240 = vsel %vm2202, %v2183, %v2221
        %v2241 = vsel %vm2203, %v2184, %v2222
        %v2242 = vsel %vm2204, %v2185, %v2223
        %v2243 = vsel %vm2205, %v2186, %v2224
        %v2244 = vrot.slane %v421, 2
        %v2245 = vrot.slane %v422, 2
        %v2246 = vsel %vm2111, %v2244, %v2245
        %v2247 = vrot.slane %v423, 2
        %v2248 = vsel %vm2111, %v2245, %v2247
        %v2249 = vrot.slane %v424, 2
        %v2250 = vsel %vm2111, %v2247, %v2249
        %v2251 = vrot.slane %v425, 2
        %v2252 = vsel %vm2111, %v2249, %v2251
        %v2253 = vrot.slane %v426, 2
        %v2254 = vsel %vm2111, %v2251, %v2253
        %v2255 = vrot.slane %v427, 2
        %v2256 = vsel %vm2111, %v2253, %v2255
        %v2257 = vrot.slane %v428, 2
        %v2258 = vsel %vm2111, %v2255, %v2257
        %v2259 = vrot.slane %v429, 2
        %v2260 = vsel %vm2111, %v2257, %v2259
        %v2261 = vrot.slane %v430, 2
        %v2262 = vsel %vm2111, %v2259, %v2261
        %v2263 = vrot.slane %v431, 2
        %v2264 = vsel %vm2111, %v2261, %v2263
        %v2265 = vrot.slane %v432, 2
        %v2266 = vsel %vm2111, %v2263, %v2265
        %v2267 = vrot.slane %v433, 2
        %v2268 = vsel %vm2111, %v2265, %v2267
        %v2269 = vrot.slane %v434, 2
        %v2270 = vsel %vm2111, %v2267, %v2269
        %v2271 = vrot.slane %v435, 2
        %v2272 = vsel %vm2111, %v2269, %v2271
        %v2273 = vrot.slane %v436, 2
        %v2274 = vsel %vm2111, %v2271, %v2273
        %v2275 = vrot.slane %v437, 2
        %v2276 = vsel %vm2111, %v2273, %v2275
        %v2277 = vrot.slane %v438, 2
        %v2278 = vsel %vm2111, %v2275, %v2277
        %v2279 = vrot.slane %v439, 2
        %v2280 = vsel %vm2111, %v2277, %v2279
        %v2300 = vmul.f32 %v2225, %v2246
        %v2301 = vmul.f32 %v2226, %v2248
        %v2302 = vmul.f32 %v2227, %v2250
        %v2303 = vmul.f32 %v2228, %v2252
        %v2304 = vmul.f32 %v2229, %v2254
        %v2305 = vmul.f32 %v2230, %v2256
        %v2306 = vmul.f32 %v2231, %v2258
        %v2307 = vmul.f32 %v2232, %v2260
        %v2308 = vmul.f32 %v2233, %v2262
        %v2309 = vmul.f32 %v2234, %v2264
        %v2310 = vmul.f32 %v2235, %v2266
        %v2311 = vmul.f32 %v2236, %v2268
        %v2312 = vmul.f32 %v2237, %v2270
        %v2313 = vmul.f32 %v2238, %v2272
        %v2314 = vmul.f32 %v2239, %v2274
        %v2315 = vmul.f32 %v2240, %v2276
        %v2316 = vmul.f32 %v2241, %v2278
        %v2317 = vmul.f32 %v2242, %v2280
        %v2318 = vmul.f32 %v2243, %v2279
        %s2319 = scalar_lea.vmem [#allocation4], 192
        %v2320 = vld [vmem:[%s2319] sm:$0xf]
        %v2321 = vld [vmem:[%s2319 + $0x4] sm:$0xf]
        %v2322 = vld [vmem:[%s2319 + $0x8] sm:$0xf]
        %v2323 = vld [vmem:[%s2319 + $0xc] sm:$0xf]
        %v2324 = vld [vmem:[%s2319 + $0x10] sm:$0xf]
        %v2325 = vld [vmem:[%s2319 + $0x14] sm:$0xf]
        %v2326 = vld [vmem:[%s2319 + $0x18] sm:$0xf]
        %v2327 = vld [vmem:[%s2319 + $0x1c] sm:$0xf]
        %v2328 = vld [vmem:[%s2319 + $0x20] sm:$0xf]
        %v2329 = vld [vmem:[%s2319 + $0x24] sm:$0xf]
        %v2330 = vld [vmem:[%s2319 + $0x28] sm:$0xf]
        %v2331 = vld [vmem:[%s2319 + $0x2c] sm:$0xf]
        %v2332 = vld [vmem:[%s2319 + $0x30] sm:$0xf]
        %v2333 = vld [vmem:[%s2319 + $0x34] sm:$0xf]
        %v2334 = vld [vmem:[%s2319 + $0x38] sm:$0xf]
        %v2335 = vld [vmem:[%s2319 + $0x3c] sm:$0xf]
        %v2336 = vld [vmem:[%s2319 + $0x40] sm:$0xf]
        %v2337 = vld [vmem:[%s2319 + $0x44] sm:$0xf]
        %v2338 = vld [vmem:[%s2319 + $0x48] sm:$0xf]
        %v2339 = vld [vmem:[%s2319 + $0x4c] sm:$0xf]
        %v2340 = vld [vmem:[%s2319 + $0x50] sm:$0xf]
        %v2341 = vld [vmem:[%s2319 + $0x54] sm:$0xf]
        %v2342 = vld [vmem:[%s2319 + $0x58] sm:$0xf]
        %v2343 = vld [vmem:[%s2319 + $0x5c] sm:$0xf]
        %v2344 = vld [vmem:[%s2319 + $0x60] sm:$0xf]
        %v2345 = vld [vmem:[%s2319 + $0x64] sm:$0xf]
        %v2346 = vld [vmem:[%s2319 + $0x68] sm:$0xf]
        %v2347 = vld [vmem:[%s2319 + $0x6c] sm:$0xf]
        %v2348 = vld [vmem:[%s2319 + $0x70] sm:$0xf]
        %v2349 = vld [vmem:[%s2319 + $0x74] sm:$0xf]
        %v2350 = vld [vmem:[%s2319 + $0x78] sm:$0xf]
        %v2351 = vld [vmem:[%s2319 + $0x7c] sm:$0xf]
        %v2352 = vld [vmem:[%s2319 + $0x80] sm:$0xf]
        %v2353 = vld [vmem:[%s2319 + $0x84] sm:$0xf]
        %v2354 = vld [vmem:[%s2319 + $0x88] sm:$0xf]
        %v2355 = vld [vmem:[%s2319 + $0x8c] sm:$0xf]
        %v2356 = vld [vmem:[%s2319 + $0x90] sm:$0xf]
        %v2357 = vld [vmem:[%s2319 + $0x94] sm:$0xf]
        %v2358 = vld [vmem:[%s2319 + $0x98] sm:$0xf]
        %v2359 = vld [vmem:[%s2319 + $0x9c] sm:$0xf]
        %v2360 = vld [vmem:[%s2319 + $0xa0] sm:$0xf]
        %v2361 = vld [vmem:[%s2319 + $0xa4] sm:$0xf]
        %v2362 = vld [vmem:[%s2319 + $0xa8] sm:$0xf]
        %v2363 = vld [vmem:[%s2319 + $0xac] sm:$0xf]
        %v2364 = vld [vmem:[%s2319 + $0xb0] sm:$0xf]
        %v2365 = vld [vmem:[%s2319 + $0xb4] sm:$0xf]
        %v2366 = vld [vmem:[%s2319 + $0xb8] sm:$0xf]
        %v2367 = vld [vmem:[%s2319 + $0xbc] sm:$0xf]
        %s2368 = scalar_lea.vmem %s2, 1
        %v2369 = vld [vmem:[%s2368] sm:$0x1]
        %v2370 = vpack.c.bf16 %v2301, %v2300
        %v2371 = vpack.c.bf16 %v2303, %v2302
        %v2372 = vpack.c.bf16 %v2305, %v2304
        %v2373 = vpack.c.bf16 %v2307, %v2306
        %v2374 = vpack.c.bf16 %v2309, %v2308
        %v2375 = vpack.c.bf16 %v2311, %v2310
        %v2376 = vpack.c.bf16 %v2313, %v2312
        %v2377 = vpack.c.bf16 %v2315, %v2314
        %v2378 = vpack.c.bf16 %v2317, %v2316
        %v2379 = vpack.c.bf16 %v2318, %v2318
        %vm2380 = vsmask.f32 6400
        %v2382 = vshrl.u32 %v2370, 16
        %v2384 = vrot.slane %v2382, 1
        %v2385 = vshll.u32 %v2370, 16
        %v2387 = vrot.slane %v2385, 2
        %v2388 = vor.u32 %v2384, %v2387
        %v2390 = vshrl.u32 %v2371, 16
        %v2392 = vrot.slane %v2390, 1
        %v2393 = vshll.u32 %v2371, 16
        %v2395 = vrot.slane %v2393, 2
        %v2396 = vor.u32 %v2392, %v2395
        %v2397 = vsel %vm2380, %v2388, %v2396
        %v2399 = vshrl.u32 %v2372, 16
        %v2401 = vrot.slane %v2399, 1
        %v2402 = vshll.u32 %v2372, 16
        %v2404 = vrot.slane %v2402, 2
        %v2405 = vor.u32 %v2401, %v2404
        %v2406 = vsel %vm2380, %v2396, %v2405
        %v2408 = vshrl.u32 %v2373, 16
        %v2410 = vrot.slane %v2408, 1
        %v2411 = vshll.u32 %v2373, 16
        %v2413 = vrot.slane %v2411, 2
        %v2414 = vor.u32 %v2410, %v2413
        %v2415 = vsel %vm2380, %v2405, %v2414
        %v2417 = vshrl.u32 %v2374, 16
        %v2419 = vrot.slane %v2417, 1
        %v2420 = vshll.u32 %v2374, 16
        %v2422 = vrot.slane %v2420, 2
        %v2423 = vor.u32 %v2419, %v2422
        %v2424 = vsel %vm2380, %v2414, %v2423
        %v2426 = vshrl.u32 %v2375, 16
        %v2428 = vrot.slane %v2426, 1
        %v2429 = vshll.u32 %v2375, 16
        %v2431 = vrot.slane %v2429, 2
        %v2432 = vor.u32 %v2428, %v2431
        %v2433 = vsel %vm2380, %v2423, %v2432
        %v2435 = vshrl.u32 %v2376, 16
        %v2437 = vrot.slane %v2435, 1
        %v2438 = vshll.u32 %v2376, 16
        %v2440 = vrot.slane %v2438, 2
        %v2441 = vor.u32 %v2437, %v2440
        %v2442 = vsel %vm2380, %v2432, %v2441
        %v2444 = vshrl.u32 %v2377, 16
        %v2446 = vrot.slane %v2444, 1
        %v2447 = vshll.u32 %v2377, 16
        %v2449 = vrot.slane %v2447, 2
        %v2450 = vor.u32 %v2446, %v2449
        %v2451 = vsel %vm2380, %v2441, %v2450
        %v2453 = vshrl.u32 %v2378, 16
        %v2455 = vrot.slane %v2453, 1
        %v2456 = vshll.u32 %v2378, 16
        %v2458 = vrot.slane %v2456, 2
        %v2459 = vor.u32 %v2455, %v2458
        %v2460 = vsel %vm2380, %v2450, %v2459
        %v2462 = vshll.u32 %v2379, 16
        %v2464 = vrot.slane %v2462, 2
        %v2465 = vsel %vm2380, %v2459, %v2464
        %v2491 = vunpack.c.l.b16 %v2336
        %v2492 = vunpack.c.l.b16 %v2337
        %v2493 = vunpack.c.l.b16 %v2338
        %v2494 = vunpack.c.l.b16 %v2339
        %v2495 = vunpack.c.l.b16 %v2340
        %v2496 = vunpack.c.l.b16 %v2341
        %v2497 = vunpack.c.l.b16 %v2342
        %v2498 = vunpack.c.l.b16 %v2343
        %v2499 = vunpack.c.l.b16 %v2344
        %v2500 = vunpack.c.l.b16 %v2345
        %v2501 = vunpack.c.l.b16 %v2346
        %v2502 = vunpack.c.l.b16 %v2347
        %v2503 = vunpack.c.l.b16 %v2348
        %v2504 = vunpack.c.l.b16 %v2349
        %v2505 = vunpack.c.l.b16 %v2350
        %v2506 = vunpack.c.l.b16 %v2351
        %v2507 = vpack.c.b16 %v2492, %v2491
        %v2508 = vpack.c.b16 %v2494, %v2493
        %v2509 = vpack.c.b16 %v2496, %v2495
        %v2510 = vpack.c.b16 %v2498, %v2497
        %v2511 = vpack.c.b16 %v2500, %v2499
        %v2512 = vpack.c.b16 %v2502, %v2501
        %v2513 = vpack.c.b16 %v2504, %v2503
        %v2514 = vpack.c.b16 %v2506, %v2505
        %2523 = vmatprep.subr.bf16.mxu0 0
        %2524 = vmatpush1.bf16.msra.mxu0 %v2507
        %2525 = vmatprep.subr.bf16.mxu0 0
        %2526 = vmatpush1.bf16.msra.mxu0 %v2508
        %2527 = vmatprep.subr.bf16.mxu0 0
        %2528 = vmatpush1.bf16.msra.mxu0 %v2509
        %2529 = vmatprep.subr.bf16.mxu0 0
        %2530 = vmatpush1.bf16.msra.mxu0 %v2510
        %2531 = vmatprep.subr.bf16.mxu0 0
        %2532 = vmatpush1.bf16.msra.mxu0 %v2511
        %2533 = vmatprep.subr.bf16.mxu0 0
        %2534 = vmatpush1.bf16.msra.mxu0 %v2512
        %2535 = vmatprep.subr.bf16.mxu0 0
        %2536 = vmatpush1.bf16.msra.mxu0 %v2513
        %2537 = vmatprep.subr.bf16.mxu0 0
        %2538 = vmatpush1.bf16.msra.mxu0 %v2514
        %2539 = vmatprep.subr.bf16.mxu0 0
        %2540 = vmatpush1.bf16.msra.mxu0 0
        %2541 = vmatprep.subr.bf16.mxu0 0
        %2542 = vmatpush1.bf16.msra.mxu0 0
        %2543 = vmatprep.subr.bf16.mxu0 0
        %2544 = vmatpush1.bf16.msra.mxu0 0
        %2545 = vmatprep.subr.bf16.mxu0 0
        %2546 = vmatpush1.bf16.msra.mxu0 0
        %2547 = vmatprep.subr.bf16.mxu0 0
        %2548 = vmatpush1.bf16.msra.mxu0 0
        %2549 = vmatprep.subr.bf16.mxu0 0
        %2550 = vmatpush1.bf16.msra.mxu0 0
        %2551 = vmatprep.subr.bf16.mxu0 0
        %2552 = vmatpush1.bf16.msra.mxu0 0
        %2553 = vmatprep.subr.bf16.mxu0 0
        %2554 = vmatpush1.bf16.msra.mxu0 0
        %2555 = vmatprep.mubr.bf16.mxu0 0
        %2556 = vmatmul.mubr.bf16.gmra.mrb[0].mxu0 %v2397
        %v2557 = vpop.f32.mrb[0].mxu0
        %v2558 = vadd.f32 0.0, %v2557
        %v2559 = vpop.f32.mrb[0].mxu0
        %v2560 = vpop.f32.mrb[0].mxu0
        %v2561 = vadd.f32 0.0, %v2560
        %v2562 = vpop.f32.mrb[0].mxu0
        %2563 = vmatprep.mubr.bf16.mxu0 0
        %2564 = vmatmul.mubr.bf16.gmra.mrb[0].mxu0 %v2406
        %v2565 = vpop.f32.mrb[0].mxu0
        %v2566 = vadd.f32 0.0, %v2565
        %v2567 = vpop.f32.mrb[0].mxu0
        %v2568 = vpop.f32.mrb[0].mxu0
        %v2569 = vadd.f32 0.0, %v2568
        %v2570 = vpop.f32.mrb[0].mxu0
        %2571 = vmatprep.mubr.bf16.mxu0 0
        %2572 = vmatmul.mubr.bf16.gmra.mrb[0].mxu0 %v2415
        %v2573 = vpop.f32.mrb[0].mxu0
        %v2574 = vadd.f32 0.0, %v2573
        %v2575 = vpop.f32.mrb[0].mxu0
        %v2576 = vpop.f32.mrb[0].mxu0
        %v2577 = vadd.f32 0.0, %v2576
        %v2578 = vpop.f32.mrb[0].mxu0
        %2579 = vmatprep.mubr.bf16.mxu0 0
        %2580 = vmatmul.mubr.bf16.gmra.mrb[0].mxu0 %v2424
        %v2581 = vpop.f32.mrb[0].mxu0
        %v2582 = vadd.f32 0.0, %v2581
        %v2583 = vpop.f32.mrb[0].mxu0
        %v2584 = vpop.f32.mrb[0].mxu0
        %v2585 = vadd.f32 0.0, %v2584
        %v2586 = vpop.f32.mrb[0].mxu0
        %2587 = vmatprep.mubr.bf16.mxu0 0
        %2588 = vmatmul.mubr.bf16.gmra.mrb[0].mxu0 %v2433
        %v2589 = vpop.f32.mrb[0].mxu0
        %v2590 = vadd.f32 0.0, %v2589
        %v2591 = vpop.f32.mrb[0].mxu0
        %v2592 = vpop.f32.mrb[0].mxu0
        %v2593 = vadd.f32 0.0, %v2592
        %v2594 = vpop.f32.mrb[0].mxu0
        %2595 = vmatprep.mubr.bf16.mxu0 0
        %2596 = vmatmul.mubr.bf16.gmra.mrb[0].mxu0 %v2442
        %v2597 = vpop.f32.mrb[0].mxu0
        %v2598 = vadd.f32 0.0, %v2597
        %v2599 = vpop.f32.mrb[0].mxu0
        %v2600 = vpop.f32.mrb[0].mxu0
        %v2601 = vadd.f32 0.0, %v2600
        %v2602 = vpop.f32.mrb[0].mxu0
        %2603 = vmatprep.mubr.bf16.mxu0 0
        %2604 = vmatmul.mubr.bf16.gmra.mrb[0].mxu0 %v2451
        %v2605 = vpop.f32.mrb[0].mxu0
        %v2606 = vadd.f32 0.0, %v2605
        %v2607 = vpop.f32.mrb[0].mxu0
        %v2608 = vpop.f32.mrb[0].mxu0
        %v2609 = vadd.f32 0.0, %v2608
        %v2610 = vpop.f32.mrb[0].mxu0
        %2611 = vmatprep.mubr.bf16.mxu0 0
        %2612 = vmatmul.mubr.bf16.gmra.mrb[0].mxu0 %v2460
        %v2613 = vpop.f32.mrb[0].mxu0
        %v2614 = vadd.f32 0.0, %v2613
        %v2615 = vpop.f32.mrb[0].mxu0
        %v2616 = vpop.f32.mrb[0].mxu0
        %v2617 = vadd.f32 0.0, %v2616
        %v2618 = vpop.f32.mrb[0].mxu0
        %2619 = vmatprep.mubr.bf16.mxu0 0
        %2620 = vmatmul.mubr.bf16.gmra.mrb[0].mxu0 %v2465
        %v2621 = vpop.f32.mrb[0].mxu0
        %v2622 = vadd.f32 0.0, %v2621
        %v2623 = vpop.f32.mrb[0].mxu0
        %v2624 = vpop.f32.mrb[0].mxu0
        %v2625 = vadd.f32 0.0, %v2624
        %v2626 = vpop.f32.mrb[0].mxu0
        %2627 = vdwg.mxu0
        %v2644 = vunpack.c.l.b16 %v2320
        %v2645 = vunpack.c.l.b16 %v2321
        %v2646 = vunpack.c.l.b16 %v2322
        %v2647 = vunpack.c.l.b16 %v2323
        %v2648 = vunpack.c.l.b16 %v2324
        %v2649 = vunpack.c.l.b16 %v2325
        %v2650 = vunpack.c.l.b16 %v2326
        %v2651 = vunpack.c.l.b16 %v2327
        %v2652 = vunpack.c.l.b16 %v2328
        %v2653 = vunpack.c.l.b16 %v2329
        %v2654 = vunpack.c.l.b16 %v2330
        %v2655 = vunpack.c.l.b16 %v2331
        %v2656 = vunpack.c.l.b16 %v2332
        %v2657 = vunpack.c.l.b16 %v2333
        %v2658 = vunpack.c.l.b16 %v2334
        %v2659 = vunpack.c.l.b16 %v2335
        %v2660 = vpack.c.b16 %v2645, %v2644
        %v2661 = vpack.c.b16 %v2647, %v2646
        %v2662 = vpack.c.b16 %v2649, %v2648
        %v2663 = vpack.c.b16 %v2651, %v2650
        %v2664 = vpack.c.b16 %v2653, %v2652
        %v2665 = vpack.c.b16 %v2655, %v2654
        %v2666 = vpack.c.b16 %v2657, %v2656
        %v2667 = vpack.c.b16 %v2659, %v2658
        %2676 = vmatprep.subr.bf16.mxu0 0
        %2677 = vmatpush1.bf16.msra.mxu0 %v2660
        %2678 = vmatprep.subr.bf16.mxu0 0
        %2679 = vmatpush1.bf16.msra.mxu0 %v2661
        %2680 = vmatprep.subr.bf16.mxu0 0
        %2681 = vmatpush1.bf16.msra.mxu0 %v2662
        %2682 = vmatprep.subr.bf16.mxu0 0
        %2683 = vmatpush1.bf16.msra.mxu0 %v2663
        %2684 = vmatprep.subr.bf16.mxu0 0
        %2685 = vmatpush1.bf16.msra.mxu0 %v2664
        %2686 = vmatprep.subr.bf16.mxu0 0
        %2687 = vmatpush1.bf16.msra.mxu0 %v2665
        %2688 = vmatprep.subr.bf16.mxu0 0
        %2689 = vmatpush1.bf16.msra.mxu0 %v2666
        %2690 = vmatprep.subr.bf16.mxu0 0
        %2691 = vmatpush1.bf16.msra.mxu0 %v2667
        %2692 = vmatprep.subr.bf16.mxu0 0
        %2693 = vmatpush1.bf16.msra.mxu0 0
        %2694 = vmatprep.subr.bf16.mxu0 0
        %2695 = vmatpush1.bf16.msra.mxu0 0
        %2696 = vmatprep.subr.bf16.mxu0 0
        %2697 = vmatpush1.bf16.msra.mxu0 0
        %2698 = vmatprep.subr.bf16.mxu0 0
        %2699 = vmatpush1.bf16.msra.mxu0 0
        %2700 = vmatprep.subr.bf16.mxu0 0
        %2701 = vmatpush1.bf16.msra.mxu0 0
        %2702 = vmatprep.subr.bf16.mxu0 0
        %2703 = vmatpush1.bf16.msra.mxu0 0
        %2704 = vmatprep.subr.bf16.mxu0 0
        %2705 = vmatpush1.bf16.msra.mxu0 0
        %2706 = vmatprep.subr.bf16.mxu0 0
        %2707 = vmatpush1.bf16.msra.mxu0 0
        %2708 = vmatprep.mubr.bf16.mxu0 0
        %2709 = vmatmul.mubr.bf16.gmra.mrb[0].mxu0 %v2370
        %v2710 = vpop.f32.mrb[0].mxu0
        %v2711 = vadd.f32 %v2558, %v2710
        %v2712 = vpop.f32.mrb[0].mxu0
        %v2713 = vpop.f32.mrb[0].mxu0
        %v2714 = vadd.f32 %v2561, %v2713
        %v2715 = vpop.f32.mrb[0].mxu0
        %2716 = vmatprep.mubr.bf16.mxu0 0
        %2717 = vmatmul.mubr.bf16.gmra.mrb[0].mxu0 %v2371
        %v2718 = vpop.f32.mrb[0].mxu0
        %v2719 = vadd.f32 %v2566, %v2718
        %v2720 = vpop.f32.mrb[0].mxu0
        %v2721 = vpop.f32.mrb[0].mxu0
        %v2722 = vadd.f32 %v2569, %v2721
        %v2723 = vpop.f32.mrb[0].mxu0
        %2724 = vmatprep.mubr.bf16.mxu0 0
        %2725 = vmatmul.mubr.bf16.gmra.mrb[0].mxu0 %v2372
        %v2726 = vpop.f32.mrb[0].mxu0
        %v2727 = vadd.f32 %v2574, %v2726
        %v2728 = vpop.f32.mrb[0].mxu0
        %v2729 = vpop.f32.mrb[0].mxu0
        %v2730 = vadd.f32 %v2577, %v2729
        %v2731 = vpop.f32.mrb[0].mxu0
        %2732 = vmatprep.mubr.bf16.mxu0 0
        %2733 = vmatmul.mubr.bf16.gmra.mrb[0].mxu0 %v2373
        %v2734 = vpop.f32.mrb[0].mxu0
        %v2735 = vadd.f32 %v2582, %v2734
        %v2736 = vpop.f32.mrb[0].mxu0
        %v2737 = vpop.f32.mrb[0].mxu0
        %v2738 = vadd.f32 %v2585, %v2737
        %v2739 = vpop.f32.mrb[0].mxu0
        %2740 = vmatprep.mubr.bf16.mxu0 0
        %2741 = vmatmul.mubr.bf16.gmra.mrb[0].mxu0 %v2374
        %v2742 = vpop.f32.mrb[0].mxu0
        %v2743 = vadd.f32 %v2590, %v2742
        %v2744 = vpop.f32.mrb[0].mxu0
        %v2745 = vpop.f32.mrb[0].mxu0
        %v2746 = vadd.f32 %v2593, %v2745
        %v2747 = vpop.f32.mrb[0].mxu0
        %2748 = vmatprep.mubr.bf16.mxu0 0
        %2749 = vmatmul.mubr.bf16.gmra.mrb[0].mxu0 %v2375
        %v2750 = vpop.f32.mrb[0].mxu0
        %v2751 = vadd.f32 %v2598, %v2750
        %v2752 = vpop.f32.mrb[0].mxu0
        %v2753 = vpop.f32.mrb[0].mxu0
        %v2754 = vadd.f32 %v2601, %v2753
        %v2755 = vpop.f32.mrb[0].mxu0
        %2756 = vmatprep.mubr.bf16.mxu0 0
        %2757 = vmatmul.mubr.bf16.gmra.mrb[0].mxu0 %v2376
        %v2758 = vpop.f32.mrb[0].mxu0
        %v2759 = vadd.f32 %v2606, %v2758
        %v2760 = vpop.f32.mrb[0].mxu0
        %v2761 = vpop.f32.mrb[0].mxu0
        %v2762 = vadd.f32 %v2609, %v2761
        %v2763 = vpop.f32.mrb[0].mxu0
        %2764 = vmatprep.mubr.bf16.mxu0 0
        %2765 = vmatmul.mubr.bf16.gmra.mrb[0].mxu0 %v2377
        %v2766 = vpop.f32.mrb[0].mxu0
        %v2767 = vadd.f32 %v2614, %v2766
        %v2768 = vpop.f32.mrb[0].mxu0
        %v2769 = vpop.f32.mrb[0].mxu0
        %v2770 = vadd.f32 %v2617, %v2769
        %v2771 = vpop.f32.mrb[0].mxu0
        %2772 = vmatprep.mubr.bf16.mxu0 0
        %2773 = vmatmul.mubr.bf16.gmra.mrb[0].mxu0 %v2378
        %v2774 = vpop.f32.mrb[0].mxu0
        %v2775 = vadd.f32 %v2622, %v2774
        %v2776 = vpop.f32.mrb[0].mxu0
        %v2777 = vpop.f32.mrb[0].mxu0
        %v2778 = vadd.f32 %v2625, %v2777
        %v2779 = vpop.f32.mrb[0].mxu0
        %2780 = vdwg.mxu0
        %vm2791 = vcmask 1044480
        %v2792 = vrot.slane %v2370, 3
        %v2793 = vrot.slane %v2371, 3
        %v2794 = vsel %vm2791, %v2792, %v2793
        %v2795 = vrot.slane %v2372, 3
        %v2796 = vsel %vm2791, %v2793, %v2795
        %v2797 = vrot.slane %v2373, 3
        %v2798 = vsel %vm2791, %v2795, %v2797
        %v2799 = vrot.slane %v2374, 3
        %v2800 = vsel %vm2791, %v2797, %v2799
        %v2801 = vrot.slane %v2375, 3
        %v2802 = vsel %vm2791, %v2799, %v2801
        %v2803 = vrot.slane %v2376, 3
        %v2804 = vsel %vm2791, %v2801, %v2803
        %v2805 = vrot.slane %v2377, 3
        %v2806 = vsel %vm2791, %v2803, %v2805
        %v2807 = vrot.slane %v2378, 3
        %v2808 = vsel %vm2791, %v2805, %v2807
        %v2809 = vrot.slane %v2379, 3
        %v2810 = vsel %vm2791, %v2807, %v2809
        %v2836 = vunpack.c.l.b16 %v2352
        %v2837 = vunpack.c.l.b16 %v2353
        %v2838 = vunpack.c.l.b16 %v2354
        %v2839 = vunpack.c.l.b16 %v2355
        %v2840 = vunpack.c.l.b16 %v2356
        %v2841 = vunpack.c.l.b16 %v2357
        %v2842 = vunpack.c.l.b16 %v2358
        %v2843 = vunpack.c.l.b16 %v2359
        %v2844 = vunpack.c.l.b16 %v2360
        %v2845 = vunpack.c.l.b16 %v2361
        %v2846 = vunpack.c.l.b16 %v2362
        %v2847 = vunpack.c.l.b16 %v2363
        %v2848 = vunpack.c.l.b16 %v2364
        %v2849 = vunpack.c.l.b16 %v2365
        %v2850 = vunpack.c.l.b16 %v2366
        %v2851 = vunpack.c.l.b16 %v2367
        %v2852 = vpack.c.b16 %v2837, %v2836
        %v2853 = vpack.c.b16 %v2839, %v2838
        %v2854 = vpack.c.b16 %v2841, %v2840
        %v2855 = vpack.c.b16 %v2843, %v2842
        %v2856 = vpack.c.b16 %v2845, %v2844
        %v2857 = vpack.c.b16 %v2847, %v2846
        %v2858 = vpack.c.b16 %v2849, %v2848
        %v2859 = vpack.c.b16 %v2851, %v2850
        %2868 = vmatprep.subr.bf16.mxu0 0
        %2869 = vmatpush1.bf16.msra.mxu0 %v2852
        %2870 = vmatprep.subr.bf16.mxu0 0
        %2871 = vmatpush1.bf16.msra.mxu0 %v2853
        %2872 = vmatprep.subr.bf16.mxu0 0
        %2873 = vmatpush1.bf16.msra.mxu0 %v2854
        %2874 = vmatprep.subr.bf16.mxu0 0
        %2875 = vmatpush1.bf16.msra.mxu0 %v2855
        %2876 = vmatprep.subr.bf16.mxu0 0
        %2877 = vmatpush1.bf16.msra.mxu0 %v2856
        %2878 = vmatprep.subr.bf16.mxu0 0
        %2879 = vmatpush1.bf16.msra.mxu0 %v2857
        %2880 = vmatprep.subr.bf16.mxu0 0
        %2881 = vmatpush1.bf16.msra.mxu0 %v2858
        %2882 = vmatprep.subr.bf16.mxu0 0
        %2883 = vmatpush1.bf16.msra.mxu0 %v2859
        %2884 = vmatprep.subr.bf16.mxu0 0
        %2885 = vmatpush1.bf16.msra.mxu0 0
        %2886 = vmatprep.subr.bf16.mxu0 0
        %2887 = vmatpush1.bf16.msra.mxu0 0
        %2888 = vmatprep.subr.bf16.mxu0 0
        %2889 = vmatpush1.bf16.msra.mxu0 0
        %2890 = vmatprep.subr.bf16.mxu0 0
        %2891 = vmatpush1.bf16.msra.mxu0 0
        %2892 = vmatprep.subr.bf16.mxu0 0
        %2893 = vmatpush1.bf16.msra.mxu0 0
        %2894 = vmatprep.subr.bf16.mxu0 0
        %2895 = vmatpush1.bf16.msra.mxu0 0
        %2896 = vmatprep.subr.bf16.mxu0 0
        %2897 = vmatpush1.bf16.msra.mxu0 0
        %2898 = vmatprep.subr.bf16.mxu0 0
        %2899 = vmatpush1.bf16.msra.mxu0 0
        %2900 = vmatprep.mubr.bf16.mxu0 0
        %2901 = vmatmul.mubr.bf16.gmra.mrb[0].mxu0 %v2794
        %v2902 = vpop.f32.mrb[0].mxu0
        %v2903 = vadd.f32 0.0, %v2902
        %v2904 = vpop.f32.mrb[0].mxu0
        %v2905 = vpop.f32.mrb[0].mxu0
        %v2906 = vadd.f32 0.0, %v2905
        %v2907 = vpop.f32.mrb[0].mxu0
        %2908 = vmatprep.mubr.bf16.mxu0 0
        %2909 = vmatmul.mubr.bf16.gmra.mrb[0].mxu0 %v2796
        %v2910 = vpop.f32.mrb[0].mxu0
        %v2911 = vadd.f32 0.0, %v2910
        %v2912 = vpop.f32.mrb[0].mxu0
        %v2913 = vpop.f32.mrb[0].mxu0
        %v2914 = vadd.f32 0.0, %v2913
        %v2915 = vpop.f32.mrb[0].mxu0
        %2916 = vmatprep.mubr.bf16.mxu0 0
        %2917 = vmatmul.mubr.bf16.gmra.mrb[0].mxu0 %v2798
        %v2918 = vpop.f32.mrb[0].mxu0
        %v2919 = vadd.f32 0.0, %v2918
        %v2920 = vpop.f32.mrb[0].mxu0
        %v2921 = vpop.f32.mrb[0].mxu0
        %v2922 = vadd.f32 0.0, %v2921
        %v2923 = vpop.f32.mrb[0].mxu0
        %2924 = vmatprep.mubr.bf16.mxu0 0
        %2925 = vmatmul.mubr.bf16.gmra.mrb[0].mxu0 %v2800
        %v2926 = vpop.f32.mrb[0].mxu0
        %v2927 = vadd.f32 0.0, %v2926
        %v2928 = vpop.f32.mrb[0].mxu0
        %v2929 = vpop.f32.mrb[0].mxu0
        %v2930 = vadd.f32 0.0, %v2929
        %v2931 = vpop.f32.mrb[0].mxu0
        %2932 = vmatprep.mubr.bf16.mxu0 0
        %2933 = vmatmul.mubr.bf16.gmra.mrb[0].mxu0 %v2802
        %v2934 = vpop.f32.mrb[0].mxu0
        %v2935 = vadd.f32 0.0, %v2934
        %v2936 = vpop.f32.mrb[0].mxu0
        %v2937 = vpop.f32.mrb[0].mxu0
        %v2938 = vadd.f32 0.0, %v2937
        %v2939 = vpop.f32.mrb[0].mxu0
        %2940 = vmatprep.mubr.bf16.mxu0 0
        %2941 = vmatmul.mubr.bf16.gmra.mrb[0].mxu0 %v2804
        %v2942 = vpop.f32.mrb[0].mxu0
        %v2943 = vadd.f32 0.0, %v2942
        %v2944 = vpop.f32.mrb[0].mxu0
        %v2945 = vpop.f32.mrb[0].mxu0
        %v2946 = vadd.f32 0.0, %v2945
        %v2947 = vpop.f32.mrb[0].mxu0
        %2948 = vmatprep.mubr.bf16.mxu0 0
        %2949 = vmatmul.mubr.bf16.gmra.mrb[0].mxu0 %v2806
        %v2950 = vpop.f32.mrb[0].mxu0
        %v2951 = vadd.f32 0.0, %v2950
        %v2952 = vpop.f32.mrb[0].mxu0
        %v2953 = vpop.f32.mrb[0].mxu0
        %v2954 = vadd.f32 0.0, %v2953
        %v2955 = vpop.f32.mrb[0].mxu0
        %2956 = vmatprep.mubr.bf16.mxu0 0
        %2957 = vmatmul.mubr.bf16.gmra.mrb[0].mxu0 %v2808
        %v2958 = vpop.f32.mrb[0].mxu0
        %v2959 = vadd.f32 0.0, %v2958
        %v2960 = vpop.f32.mrb[0].mxu0
        %v2961 = vpop.f32.mrb[0].mxu0
        %v2962 = vadd.f32 0.0, %v2961
        %v2963 = vpop.f32.mrb[0].mxu0
        %2964 = vmatprep.mubr.bf16.mxu0 0
        %2965 = vmatmul.mubr.bf16.gmra.mrb[0].mxu0 %v2810
        %v2966 = vpop.f32.mrb[0].mxu0
        %v2967 = vadd.f32 0.0, %v2966
        %v2968 = vpop.f32.mrb[0].mxu0
        %v2969 = vpop.f32.mrb[0].mxu0
        %v2970 = vadd.f32 0.0, %v2969
        %v2971 = vpop.f32.mrb[0].mxu0
        %2972 = vdwg.mxu0
        %v2973 = vadd.f32 %v2711, %v2903
        %v2974 = vadd.f32 %v2714, %v2906
        %v2975 = vadd.f32 %v2719, %v2911
        %v2976 = vadd.f32 %v2722, %v2914
        %v2977 = vadd.f32 %v2727, %v2919
        %v2978 = vadd.f32 %v2730, %v2922
        %v2979 = vadd.f32 %v2735, %v2927
        %v2980 = vadd.f32 %v2738, %v2930
        %v2981 = vadd.f32 %v2743, %v2935
        %v2982 = vadd.f32 %v2746, %v2938
        %v2983 = vadd.f32 %v2751, %v2943
        %v2984 = vadd.f32 %v2754, %v2946
        %v2985 = vadd.f32 %v2759, %v2951
        %v2986 = vadd.f32 %v2762, %v2954
        %v2987 = vadd.f32 %v2767, %v2959
        %v2988 = vadd.f32 %v2770, %v2962
        %v2989 = vadd.f32 %v2775, %v2967
        %v2990 = vadd.f32 %v2778, %v2970
        %v2992 = vlaneseq
        %v2993 = vshrl.u32 %v2992, 7
        %v2994 = vsub.s32 0, %v2993
        %v2995 = vrot.slane %v2369, %v2994
        %v2997 = vadd.f32 %v2973, %v2995
        %v2998 = vadd.f32 %v2974, %v2995
        %v2999 = vadd.f32 %v2975, %v2995
        %v3000 = vadd.f32 %v2976, %v2995
        %v3001 = vadd.f32 %v2977, %v2995
        %v3002 = vadd.f32 %v2978, %v2995
        %v3003 = vadd.f32 %v2979, %v2995
        %v3004 = vadd.f32 %v2980, %v2995
        %v3005 = vadd.f32 %v2981, %v2995
        %v3006 = vadd.f32 %v2982, %v2995
        %v3007 = vadd.f32 %v2983, %v2995
        %v3008 = vadd.f32 %v2984, %v2995
        %v3009 = vadd.f32 %v2985, %v2995
        %v3010 = vadd.f32 %v2986, %v2995
        %v3011 = vadd.f32 %v2987, %v2995
        %v3012 = vadd.f32 %v2988, %v2995
        %v3013 = vadd.f32 %v2989, %v2995
        %v3014 = vadd.f32 %v2990, %v2995
        %vm3015 = vcmp.ge.f32.partialorder %v2997, 0.0
        %vm3016 = vcmp.ge.f32.partialorder %v2998, 0.0
        %vm3017 = vcmp.ge.f32.partialorder %v2999, 0.0
        %vm3018 = vcmp.ge.f32.partialorder %v3000, 0.0
        %vm3019 = vcmp.ge.f32.partialorder %v3001, 0.0
        %vm3020 = vcmp.ge.f32.partialorder %v3002, 0.0
        %vm3021 = vcmp.ge.f32.partialorder %v3003, 0.0
        %vm3022 = vcmp.ge.f32.partialorder %v3004, 0.0
        %vm3023 = vcmp.ge.f32.partialorder %v3005, 0.0
        %vm3024 = vcmp.ge.f32.partialorder %v3006, 0.0
        %vm3025 = vcmp.ge.f32.partialorder %v3007, 0.0
        %vm3026 = vcmp.ge.f32.partialorder %v3008, 0.0
        %vm3027 = vcmp.ge.f32.partialorder %v3009, 0.0
        %vm3028 = vcmp.ge.f32.partialorder %v3010, 0.0
        %vm3029 = vcmp.ge.f32.partialorder %v3011, 0.0
        %vm3030 = vcmp.ge.f32.partialorder %v3012, 0.0
        %vm3031 = vcmp.ge.f32.partialorder %v3013, 0.0
        %vm3032 = vcmp.ge.f32.partialorder %v3014, 0.0
        %v3033 = vmul.f32 %v2997, 0.1
        %v3034 = vmul.f32 %v2998, 0.1
        %v3035 = vmul.f32 %v2999, 0.1
        %v3036 = vmul.f32 %v3000, 0.1
        %v3037 = vmul.f32 %v3001, 0.1
        %v3038 = vmul.f32 %v3002, 0.1
        %v3039 = vmul.f32 %v3003, 0.1
        %v3040 = vmul.f32 %v3004, 0.1
        %v3041 = vmul.f32 %v3005, 0.1
        %v3042 = vmul.f32 %v3006, 0.1
        %v3043 = vmul.f32 %v3007, 0.1
        %v3044 = vmul.f32 %v3008, 0.1
        %v3045 = vmul.f32 %v3009, 0.1
        %v3046 = vmul.f32 %v3010, 0.1
        %v3047 = vmul.f32 %v3011, 0.1
        %v3048 = vmul.f32 %v3012, 0.1
        %v3049 = vmul.f32 %v3013, 0.1
        %v3050 = vmul.f32 %v3014, 0.1
        %v3051 = vsel %vm3015, %v2997, %v3033
        %v3052 = vsel %vm3016, %v2998, %v3034
        %v3053 = vsel %vm3017, %v2999, %v3035
        %v3054 = vsel %vm3018, %v3000, %v3036
        %v3055 = vsel %vm3019, %v3001, %v3037
        %v3056 = vsel %vm3020, %v3002, %v3038
        %v3057 = vsel %vm3021, %v3003, %v3039
        %v3058 = vsel %vm3022, %v3004, %v3040
        %v3059 = vsel %vm3023, %v3005, %v3041
        %v3060 = vsel %vm3024, %v3006, %v3042
        %v3061 = vsel %vm3025, %v3007, %v3043
        %v3062 = vsel %vm3026, %v3008, %v3044
        %v3063 = vsel %vm3027, %v3009, %v3045
        %v3064 = vsel %vm3028, %v3010, %v3046
        %v3065 = vsel %vm3029, %v3011, %v3047
        %v3066 = vsel %vm3030, %v3012, %v3048
        %v3067 = vsel %vm3031, %v3013, %v3049
        %v3068 = vsel %vm3032, %v3014, %v3050
        %vm3069 = vcmask 1042432
        %v3070 = vrot.slane %v421, 5
        %v3071 = vrot.slane %v422, 5
        %v3072 = vsel %vm3069, %v3070, %v3071
        %v3073 = vrot.slane %v423, 5
        %v3074 = vsel %vm3069, %v3071, %v3073
        %v3075 = vrot.slane %v424, 5
        %v3076 = vsel %vm3069, %v3073, %v3075
        %v3077 = vrot.slane %v425, 5
        %v3078 = vsel %vm3069, %v3075, %v3077
        %v3079 = vrot.slane %v426, 5
        %v3080 = vsel %vm3069, %v3077, %v3079
        %v3081 = vrot.slane %v427, 5
        %v3082 = vsel %vm3069, %v3079, %v3081
        %v3083 = vrot.slane %v428, 5
        %v3084 = vsel %vm3069, %v3081, %v3083
        %v3085 = vrot.slane %v429, 5
        %v3086 = vsel %vm3069, %v3083, %v3085
        %v3087 = vrot.slane %v430, 5
        %v3088 = vsel %vm3069, %v3085, %v3087
        %v3089 = vrot.slane %v431, 5
        %v3090 = vsel %vm3069, %v3087, %v3089
        %v3091 = vrot.slane %v432, 5
        %v3092 = vsel %vm3069, %v3089, %v3091
        %v3093 = vrot.slane %v433, 5
        %v3094 = vsel %vm3069, %v3091, %v3093
        %v3095 = vrot.slane %v434, 5
        %v3096 = vsel %vm3069, %v3093, %v3095
        %v3097 = vrot.slane %v435, 5
        %v3098 = vsel %vm3069, %v3095, %v3097
        %v3099 = vrot.slane %v436, 5
        %v3100 = vsel %vm3069, %v3097, %v3099
        %v3101 = vrot.slane %v437, 5
        %v3102 = vsel %vm3069, %v3099, %v3101
        %v3103 = vrot.slane %v438, 5
        %v3104 = vsel %vm3069, %v3101, %v3103
        %v3105 = vrot.slane %v439, 5
        %v3106 = vsel %vm3069, %v3103, %v3105
        %v3125 = vmul.f32 %v3051, %v3072
        %v3126 = vmul.f32 %v3052, %v3074
        %v3127 = vmul.f32 %v3053, %v3076
        %v3128 = vmul.f32 %v3054, %v3078
        %v3129 = vmul.f32 %v3055, %v3080
        %v3130 = vmul.f32 %v3056, %v3082
        %v3131 = vmul.f32 %v3057, %v3084
        %v3132 = vmul.f32 %v3058, %v3086
        %v3133 = vmul.f32 %v3059, %v3088
        %v3134 = vmul.f32 %v3060, %v3090
        %v3135 = vmul.f32 %v3061, %v3092
        %v3136 = vmul.f32 %v3062, %v3094
        %v3137 = vmul.f32 %v3063, %v3096
        %v3138 = vmul.f32 %v3064, %v3098
        %v3139 = vmul.f32 %v3065, %v3100
        %v3140 = vmul.f32 %v3066, %v3102
        %v3141 = vmul.f32 %v3067, %v3104
        %v3142 = vmul.f32 %v3068, %v3106
        %s3143 = scalar_lea.vmem [#allocation7], 192
        %v3144 = vld [vmem:[%s3143] sm:$0xf]
        %v3145 = vld [vmem:[%s3143 + $0x4] sm:$0xf]
        %v3146 = vld [vmem:[%s3143 + $0x8] sm:$0xf]
        %v3147 = vld [vmem:[%s3143 + $0xc] sm:$0xf]
        %v3148 = vld [vmem:[%s3143 + $0x10] sm:$0xf]
        %v3149 = vld [vmem:[%s3143 + $0x14] sm:$0xf]
        %v3150 = vld [vmem:[%s3143 + $0x18] sm:$0xf]
        %v3151 = vld [vmem:[%s3143 + $0x1c] sm:$0xf]
        %v3152 = vld [vmem:[%s3143 + $0x20] sm:$0xf]
        %v3153 = vld [vmem:[%s3143 + $0x24] sm:$0xf]
        %v3154 = vld [vmem:[%s3143 + $0x28] sm:$0xf]
        %v3155 = vld [vmem:[%s3143 + $0x2c] sm:$0xf]
        %v3156 = vld [vmem:[%s3143 + $0x30] sm:$0xf]
        %v3157 = vld [vmem:[%s3143 + $0x34] sm:$0xf]
        %v3158 = vld [vmem:[%s3143 + $0x38] sm:$0xf]
        %v3159 = vld [vmem:[%s3143 + $0x3c] sm:$0xf]
        %v3160 = vld [vmem:[%s3143 + $0x40] sm:$0xf]
        %v3161 = vld [vmem:[%s3143 + $0x44] sm:$0xf]
        %v3162 = vld [vmem:[%s3143 + $0x48] sm:$0xf]
        %v3163 = vld [vmem:[%s3143 + $0x4c] sm:$0xf]
        %v3164 = vld [vmem:[%s3143 + $0x50] sm:$0xf]
        %v3165 = vld [vmem:[%s3143 + $0x54] sm:$0xf]
        %v3166 = vld [vmem:[%s3143 + $0x58] sm:$0xf]
        %v3167 = vld [vmem:[%s3143 + $0x5c] sm:$0xf]
        %v3168 = vld [vmem:[%s3143 + $0x60] sm:$0xf]
        %v3169 = vld [vmem:[%s3143 + $0x64] sm:$0xf]
        %v3170 = vld [vmem:[%s3143 + $0x68] sm:$0xf]
        %v3171 = vld [vmem:[%s3143 + $0x6c] sm:$0xf]
        %v3172 = vld [vmem:[%s3143 + $0x70] sm:$0xf]
        %v3173 = vld [vmem:[%s3143 + $0x74] sm:$0xf]
        %v3174 = vld [vmem:[%s3143 + $0x78] sm:$0xf]
        %v3175 = vld [vmem:[%s3143 + $0x7c] sm:$0xf]
        %v3176 = vld [vmem:[%s3143 + $0x80] sm:$0xf]
        %v3177 = vld [vmem:[%s3143 + $0x84] sm:$0xf]
        %v3178 = vld [vmem:[%s3143 + $0x88] sm:$0xf]
        %v3179 = vld [vmem:[%s3143 + $0x8c] sm:$0xf]
        %v3180 = vld [vmem:[%s3143 + $0x90] sm:$0xf]
        %v3181 = vld [vmem:[%s3143 + $0x94] sm:$0xf]
        %v3182 = vld [vmem:[%s3143 + $0x98] sm:$0xf]
        %v3183 = vld [vmem:[%s3143 + $0x9c] sm:$0xf]
        %v3184 = vld [vmem:[%s3143 + $0xa0] sm:$0xf]
        %v3185 = vld [vmem:[%s3143 + $0xa4] sm:$0xf]
        %v3186 = vld [vmem:[%s3143 + $0xa8] sm:$0xf]
        %v3187 = vld [vmem:[%s3143 + $0xac] sm:$0xf]
        %v3188 = vld [vmem:[%s3143 + $0xb0] sm:$0xf]
        %v3189 = vld [vmem:[%s3143 + $0xb4] sm:$0xf]
        %v3190 = vld [vmem:[%s3143 + $0xb8] sm:$0xf]
        %v3191 = vld [vmem:[%s3143 + $0xbc] sm:$0xf]
        %s3192 = scalar_lea.vmem %s4, 1
        %v3193 = vld [vmem:[%s3192] sm:$0x1]
        %v3194 = vpack.c.bf16 %v3126, %v3125
        %v3195 = vpack.c.bf16 %v3128, %v3127
        %v3196 = vpack.c.bf16 %v3130, %v3129
        %v3197 = vpack.c.bf16 %v3132, %v3131
        %v3198 = vpack.c.bf16 %v3134, %v3133
        %v3199 = vpack.c.bf16 %v3136, %v3135
        %v3200 = vpack.c.bf16 %v3138, %v3137
        %v3201 = vpack.c.bf16 %v3140, %v3139
        %v3202 = vpack.c.bf16 %v3142, %v3141
        %v3204 = vshrl.u32 %v3194, 16
        %v3206 = vshll.u32 %v3194, 16
        %v3208 = vrot.slane %v3206, 1
        %v3209 = vor.u32 %v3204, %v3208
        %v3211 = vshll.u32 %v3195, 16
        %v3213 = vrot.slane %v3211, 1
        %v3214 = vsel %vm575, %v3209, %v3213
        %v3215 = vshrl.u32 %v3195, 16
        %v3217 = vor.u32 %v3215, %v3213
        %v3219 = vshll.u32 %v3196, 16
        %v3221 = vrot.slane %v3219, 1
        %v3222 = vsel %vm575, %v3217, %v3221
        %v3223 = vshrl.u32 %v3196, 16
        %v3225 = vor.u32 %v3223, %v3221
        %v3227 = vshll.u32 %v3197, 16
        %v3229 = vrot.slane %v3227, 1
        %v3230 = vsel %vm575, %v3225, %v3229
        %v3231 = vshrl.u32 %v3197, 16
        %v3233 = vor.u32 %v3231, %v3229
        %v3235 = vshll.u32 %v3198, 16
        %v3237 = vrot.slane %v3235, 1
        %v3238 = vsel %vm575, %v3233, %v3237
        %v3239 = vshrl.u32 %v3198, 16
        %v3241 = vor.u32 %v3239, %v3237
        %v3243 = vshll.u32 %v3199, 16
        %v3245 = vrot.slane %v3243, 1
        %v3246 = vsel %vm575, %v3241, %v3245
        %v3247 = vshrl.u32 %v3199, 16
        %v3249 = vor.u32 %v3247, %v3245
        %v3251 = vshll.u32 %v3200, 16
        %v3253 = vrot.slane %v3251, 1
        %v3254 = vsel %vm575, %v3249, %v3253
        %v3255 = vshrl.u32 %v3200, 16
        %v3257 = vor.u32 %v3255, %v3253
        %v3259 = vshll.u32 %v3201, 16
        %v3261 = vrot.slane %v3259, 1
        %v3262 = vsel %vm575, %v3257, %v3261
        %v3263 = vshrl.u32 %v3201, 16
        %v3265 = vor.u32 %v3263, %v3261
        %v3267 = vshll.u32 %v3202, 16
        %v3269 = vrot.slane %v3267, 1
        %v3270 = vsel %vm575, %v3265, %v3269
        %v3271 = vshrl.u32 %v3202, 16
        %v3273 = vor.u32 %v3271, %v3269
        %v3299 = vunpack.c.l.b16 %v3160
        %v3300 = vunpack.c.l.b16 %v3161
        %v3301 = vunpack.c.l.b16 %v3162
        %v3302 = vunpack.c.l.b16 %v3163
        %v3303 = vunpack.c.l.b16 %v3164
        %v3304 = vunpack.c.l.b16 %v3165
        %v3305 = vunpack.c.l.b16 %v3166
        %v3306 = vunpack.c.l.b16 %v3167
        %v3307 = vunpack.c.l.b16 %v3168
        %v3308 = vunpack.c.l.b16 %v3169
        %v3309 = vunpack.c.l.b16 %v3170
        %v3310 = vunpack.c.l.b16 %v3171
        %v3311 = vunpack.c.l.b16 %v3172
        %v3312 = vunpack.c.l.b16 %v3173
        %v3313 = vunpack.c.l.b16 %v3174
        %v3314 = vunpack.c.l.b16 %v3175
        %v3315 = vpack.c.b16 %v3300, %v3299
        %v3316 = vpack.c.b16 %v3302, %v3301
        %v3317 = vpack.c.b16 %v3304, %v3303
        %v3318 = vpack.c.b16 %v3306, %v3305
        %v3319 = vpack.c.b16 %v3308, %v3307
        %v3320 = vpack.c.b16 %v3310, %v3309
        %v3321 = vpack.c.b16 %v3312, %v3311
        %v3322 = vpack.c.b16 %v3314, %v3313
        %3331 = vmatprep.subr.bf16.mxu0 0
        %3332 = vmatpush1.bf16.msra.mxu0 %v3315
        %3333 = vmatprep.subr.bf16.mxu0 0
        %3334 = vmatpush1.bf16.msra.mxu0 %v3316
        %3335 = vmatprep.subr.bf16.mxu0 0
        %3336 = vmatpush1.bf16.msra.mxu0 %v3317
        %3337 = vmatprep.subr.bf16.mxu0 0
        %3338 = vmatpush1.bf16.msra.mxu0 %v3318
        %3339 = vmatprep.subr.bf16.mxu0 0
        %3340 = vmatpush1.bf16.msra.mxu0 %v3319
        %3341 = vmatprep.subr.bf16.mxu0 0
        %3342 = vmatpush1.bf16.msra.mxu0 %v3320
        %3343 = vmatprep.subr.bf16.mxu0 0
        %3344 = vmatpush1.bf16.msra.mxu0 %v3321
        %3345 = vmatprep.subr.bf16.mxu0 0
        %3346 = vmatpush1.bf16.msra.mxu0 %v3322
        %3347 = vmatprep.subr.bf16.mxu0 0
        %3348 = vmatpush1.bf16.msra.mxu0 0
        %3349 = vmatprep.subr.bf16.mxu0 0
        %3350 = vmatpush1.bf16.msra.mxu0 0
        %3351 = vmatprep.subr.bf16.mxu0 0
        %3352 = vmatpush1.bf16.msra.mxu0 0
        %3353 = vmatprep.subr.bf16.mxu0 0
        %3354 = vmatpush1.bf16.msra.mxu0 0
        %3355 = vmatprep.subr.bf16.mxu0 0
        %3356 = vmatpush1.bf16.msra.mxu0 0
        %3357 = vmatprep.subr.bf16.mxu0 0
        %3358 = vmatpush1.bf16.msra.mxu0 0
        %3359 = vmatprep.subr.bf16.mxu0 0
        %3360 = vmatpush1.bf16.msra.mxu0 0
        %3361 = vmatprep.subr.bf16.mxu0 0
        %3362 = vmatpush1.bf16.msra.mxu0 0
        %3363 = vmatprep.mubr.bf16.mxu0 0
        %3364 = vmatmul.mubr.bf16.gmra.mrb[0].mxu0 %v3214
        %v3365 = vpop.f32.mrb[0].mxu0
        %v3366 = vadd.f32 0.0, %v3365
        %v3367 = vpop.f32.mrb[0].mxu0
        %v3368 = vpop.f32.mrb[0].mxu0
        %v3369 = vadd.f32 0.0, %v3368
        %v3370 = vpop.f32.mrb[0].mxu0
        %3371 = vmatprep.mubr.bf16.mxu0 0
        %3372 = vmatmul.mubr.bf16.gmra.mrb[0].mxu0 %v3222
        %v3373 = vpop.f32.mrb[0].mxu0
        %v3374 = vadd.f32 0.0, %v3373
        %v3375 = vpop.f32.mrb[0].mxu0
        %v3376 = vpop.f32.mrb[0].mxu0
        %v3377 = vadd.f32 0.0, %v3376
        %v3378 = vpop.f32.mrb[0].mxu0
        %3379 = vmatprep.mubr.bf16.mxu0 0
        %3380 = vmatmul.mubr.bf16.gmra.mrb[0].mxu0 %v3230
        %v3381 = vpop.f32.mrb[0].mxu0
        %v3382 = vadd.f32 0.0, %v3381
        %v3383 = vpop.f32.mrb[0].mxu0
        %v3384 = vpop.f32.mrb[0].mxu0
        %v3385 = vadd.f32 0.0, %v3384
        %v3386 = vpop.f32.mrb[0].mxu0
        %3387 = vmatprep.mubr.bf16.mxu0 0
        %3388 = vmatmul.mubr.bf16.gmra.mrb[0].mxu0 %v3238
        %v3389 = vpop.f32.mrb[0].mxu0
        %v3390 = vadd.f32 0.0, %v3389
        %v3391 = vpop.f32.mrb[0].mxu0
        %v3392 = vpop.f32.mrb[0].mxu0
        %v3393 = vadd.f32 0.0, %v3392
        %v3394 = vpop.f32.mrb[0].mxu0
        %3395 = vmatprep.mubr.bf16.mxu0 0
        %3396 = vmatmul.mubr.bf16.gmra.mrb[0].mxu0 %v3246
        %v3397 = vpop.f32.mrb[0].mxu0
        %v3398 = vadd.f32 0.0, %v3397
        %v3399 = vpop.f32.mrb[0].mxu0
        %v3400 = vpop.f32.mrb[0].mxu0
        %v3401 = vadd.f32 0.0, %v3400
        %v3402 = vpop.f32.mrb[0].mxu0
        %3403 = vmatprep.mubr.bf16.mxu0 0
        %3404 = vmatmul.mubr.bf16.gmra.mrb[0].mxu0 %v3254
        %v3405 = vpop.f32.mrb[0].mxu0
        %v3406 = vadd.f32 0.0, %v3405
        %v3407 = vpop.f32.mrb[0].mxu0
        %v3408 = vpop.f32.mrb[0].mxu0
        %v3409 = vadd.f32 0.0, %v3408
        %v3410 = vpop.f32.mrb[0].mxu0
        %3411 = vmatprep.mubr.bf16.mxu0 0
        %3412 = vmatmul.mubr.bf16.gmra.mrb[0].mxu0 %v3262
        %v3413 = vpop.f32.mrb[0].mxu0
        %v3414 = vadd.f32 0.0, %v3413
        %v3415 = vpop.f32.mrb[0].mxu0
        %v3416 = vpop.f32.mrb[0].mxu0
        %v3417 = vadd.f32 0.0, %v3416
        %v3418 = vpop.f32.mrb[0].mxu0
        %3419 = vmatprep.mubr.bf16.mxu0 0
        %3420 = vmatmul.mubr.bf16.gmra.mrb[0].mxu0 %v3270
        %v3421 = vpop.f32.mrb[0].mxu0
        %v3422 = vadd.f32 0.0, %v3421
        %v3423 = vpop.f32.mrb[0].mxu0
        %v3424 = vpop.f32.mrb[0].mxu0
        %v3425 = vadd.f32 0.0, %v3424
        %v3426 = vpop.f32.mrb[0].mxu0
        %3427 = vmatprep.mubr.bf16.mxu0 0
        %3428 = vmatmul.mubr.bf16.gmra.mrb[0].mxu0 %v3273
        %v3429 = vpop.f32.mrb[0].mxu0
        %v3430 = vadd.f32 0.0, %v3429
        %v3431 = vpop.f32.mrb[0].mxu0
        %v3432 = vpop.f32.mrb[0].mxu0
        %v3433 = vadd.f32 0.0, %v3432
        %v3434 = vpop.f32.mrb[0].mxu0
        %3435 = vdwg.mxu0
        %v3452 = vunpack.c.l.b16 %v3144
        %v3453 = vunpack.c.l.b16 %v3145
        %v3454 = vunpack.c.l.b16 %v3146
        %v3455 = vunpack.c.l.b16 %v3147
        %v3456 = vunpack.c.l.b16 %v3148
        %v3457 = vunpack.c.l.b16 %v3149
        %v3458 = vunpack.c.l.b16 %v3150
        %v3459 = vunpack.c.l.b16 %v3151
        %v3460 = vunpack.c.l.b16 %v3152
        %v3461 = vunpack.c.l.b16 %v3153
        %v3462 = vunpack.c.l.b16 %v3154
        %v3463 = vunpack.c.l.b16 %v3155
        %v3464 = vunpack.c.l.b16 %v3156
        %v3465 = vunpack.c.l.b16 %v3157
        %v3466 = vunpack.c.l.b16 %v3158
        %v3467 = vunpack.c.l.b16 %v3159
        %v3468 = vpack.c.b16 %v3453, %v3452
        %v3469 = vpack.c.b16 %v3455, %v3454
        %v3470 = vpack.c.b16 %v3457, %v3456
        %v3471 = vpack.c.b16 %v3459, %v3458
        %v3472 = vpack.c.b16 %v3461, %v3460
        %v3473 = vpack.c.b16 %v3463, %v3462
        %v3474 = vpack.c.b16 %v3465, %v3464
        %v3475 = vpack.c.b16 %v3467, %v3466
        %3484 = vmatprep.subr.bf16.mxu0 0
        %3485 = vmatpush1.bf16.msra.mxu0 %v3468
        %3486 = vmatprep.subr.bf16.mxu0 0
        %3487 = vmatpush1.bf16.msra.mxu0 %v3469
        %3488 = vmatprep.subr.bf16.mxu0 0
        %3489 = vmatpush1.bf16.msra.mxu0 %v3470
        %3490 = vmatprep.subr.bf16.mxu0 0
        %3491 = vmatpush1.bf16.msra.mxu0 %v3471
        %3492 = vmatprep.subr.bf16.mxu0 0
        %3493 = vmatpush1.bf16.msra.mxu0 %v3472
        %3494 = vmatprep.subr.bf16.mxu0 0
        %3495 = vmatpush1.bf16.msra.mxu0 %v3473
        %3496 = vmatprep.subr.bf16.mxu0 0
        %3497 = vmatpush1.bf16.msra.mxu0 %v3474
        %3498 = vmatprep.subr.bf16.mxu0 0
        %3499 = vmatpush1.bf16.msra.mxu0 %v3475
        %3500 = vmatprep.subr.bf16.mxu0 0
        %3501 = vmatpush1.bf16.msra.mxu0 0
        %3502 = vmatprep.subr.bf16.mxu0 0
        %3503 = vmatpush1.bf16.msra.mxu0 0
        %3504 = vmatprep.subr.bf16.mxu0 0
        %3505 = vmatpush1.bf16.msra.mxu0 0
        %3506 = vmatprep.subr.bf16.mxu0 0
        %3507 = vmatpush1.bf16.msra.mxu0 0
        %3508 = vmatprep.subr.bf16.mxu0 0
        %3509 = vmatpush1.bf16.msra.mxu0 0
        %3510 = vmatprep.subr.bf16.mxu0 0
        %3511 = vmatpush1.bf16.msra.mxu0 0
        %3512 = vmatprep.subr.bf16.mxu0 0
        %3513 = vmatpush1.bf16.msra.mxu0 0
        %3514 = vmatprep.subr.bf16.mxu0 0
        %3515 = vmatpush1.bf16.msra.mxu0 0
        %3516 = vmatprep.mubr.bf16.mxu0 0
        %3517 = vmatmul.mubr.bf16.gmra.mrb[0].mxu0 %v3194
        %v3518 = vpop.f32.mrb[0].mxu0
        %v3519 = vadd.f32 %v3366, %v3518
        %v3520 = vpop.f32.mrb[0].mxu0
        %v3521 = vpop.f32.mrb[0].mxu0
        %v3522 = vadd.f32 %v3369, %v3521
        %v3523 = vpop.f32.mrb[0].mxu0
        %3524 = vmatprep.mubr.bf16.mxu0 0
        %3525 = vmatmul.mubr.bf16.gmra.mrb[0].mxu0 %v3195
        %v3526 = vpop.f32.mrb[0].mxu0
        %v3527 = vadd.f32 %v3374, %v3526
        %v3528 = vpop.f32.mrb[0].mxu0
        %v3529 = vpop.f32.mrb[0].mxu0
        %v3530 = vadd.f32 %v3377, %v3529
        %v3531 = vpop.f32.mrb[0].mxu0
        %3532 = vmatprep.mubr.bf16.mxu0 0
        %3533 = vmatmul.mubr.bf16.gmra.mrb[0].mxu0 %v3196
        %v3534 = vpop.f32.mrb[0].mxu0
        %v3535 = vadd.f32 %v3382, %v3534
        %v3536 = vpop.f32.mrb[0].mxu0
        %v3537 = vpop.f32.mrb[0].mxu0
        %v3538 = vadd.f32 %v3385, %v3537
        %v3539 = vpop.f32.mrb[0].mxu0
        %3540 = vmatprep.mubr.bf16.mxu0 0
        %3541 = vmatmul.mubr.bf16.gmra.mrb[0].mxu0 %v3197
        %v3542 = vpop.f32.mrb[0].mxu0
        %v3543 = vadd.f32 %v3390, %v3542
        %v3544 = vpop.f32.mrb[0].mxu0
        %v3545 = vpop.f32.mrb[0].mxu0
        %v3546 = vadd.f32 %v3393, %v3545
        %v3547 = vpop.f32.mrb[0].mxu0
        %3548 = vmatprep.mubr.bf16.mxu0 0
        %3549 = vmatmul.mubr.bf16.gmra.mrb[0].mxu0 %v3198
        %v3550 = vpop.f32.mrb[0].mxu0
        %v3551 = vadd.f32 %v3398, %v3550
        %v3552 = vpop.f32.mrb[0].mxu0
        %v3553 = vpop.f32.mrb[0].mxu0
        %v3554 = vadd.f32 %v3401, %v3553
        %v3555 = vpop.f32.mrb[0].mxu0
        %3556 = vmatprep.mubr.bf16.mxu0 0
        %3557 = vmatmul.mubr.bf16.gmra.mrb[0].mxu0 %v3199
        %v3558 = vpop.f32.mrb[0].mxu0
        %v3559 = vadd.f32 %v3406, %v3558
        %v3560 = vpop.f32.mrb[0].mxu0
        %v3561 = vpop.f32.mrb[0].mxu0
        %v3562 = vadd.f32 %v3409, %v3561
        %v3563 = vpop.f32.mrb[0].mxu0
        %3564 = vmatprep.mubr.bf16.mxu0 0
        %3565 = vmatmul.mubr.bf16.gmra.mrb[0].mxu0 %v3200
        %v3566 = vpop.f32.mrb[0].mxu0
        %v3567 = vadd.f32 %v3414, %v3566
        %v3568 = vpop.f32.mrb[0].mxu0
        %v3569 = vpop.f32.mrb[0].mxu0
        %v3570 = vadd.f32 %v3417, %v3569
        %v3571 = vpop.f32.mrb[0].mxu0
        %3572 = vmatprep.mubr.bf16.mxu0 0
        %3573 = vmatmul.mubr.bf16.gmra.mrb[0].mxu0 %v3201
        %v3574 = vpop.f32.mrb[0].mxu0
        %v3575 = vadd.f32 %v3422, %v3574
        %v3576 = vpop.f32.mrb[0].mxu0
        %v3577 = vpop.f32.mrb[0].mxu0
        %v3578 = vadd.f32 %v3425, %v3577
        %v3579 = vpop.f32.mrb[0].mxu0
        %3580 = vmatprep.mubr.bf16.mxu0 0
        %3581 = vmatmul.mubr.bf16.gmra.mrb[0].mxu0 %v3202
        %v3582 = vpop.f32.mrb[0].mxu0
        %v3583 = vadd.f32 %v3430, %v3582
        %v3584 = vpop.f32.mrb[0].mxu0
        %v3585 = vpop.f32.mrb[0].mxu0
        %v3586 = vadd.f32 %v3433, %v3585
        %v3587 = vpop.f32.mrb[0].mxu0
        %3588 = vdwg.mxu0
        %v3598 = vrot.slane %v3194, 1
        %v3599 = vrot.slane %v3195, 1
        %v3600 = vsel %vm995, %v3598, %v3599
        %v3601 = vrot.slane %v3196, 1
        %v3602 = vsel %vm995, %v3599, %v3601
        %v3603 = vrot.slane %v3197, 1
        %v3604 = vsel %vm995, %v3601, %v3603
        %v3605 = vrot.slane %v3198, 1
        %v3606 = vsel %vm995, %v3603, %v3605
        %v3607 = vrot.slane %v3199, 1
        %v3608 = vsel %vm995, %v3605, %v3607
        %v3609 = vrot.slane %v3200, 1
        %v3610 = vsel %vm995, %v3607, %v3609
        %v3611 = vrot.slane %v3201, 1
        %v3612 = vsel %vm995, %v3609, %v3611
        %v3613 = vrot.slane %v3202, 1
        %v3614 = vsel %vm995, %v3611, %v3613
        %v3640 = vunpack.c.l.b16 %v3176
        %v3641 = vunpack.c.l.b16 %v3177
        %v3642 = vunpack.c.l.b16 %v3178
        %v3643 = vunpack.c.l.b16 %v3179
        %v3644 = vunpack.c.l.b16 %v3180
        %v3645 = vunpack.c.l.b16 %v3181
        %v3646 = vunpack.c.l.b16 %v3182
        %v3647 = vunpack.c.l.b16 %v3183
        %v3648 = vunpack.c.l.b16 %v3184
        %v3649 = vunpack.c.l.b16 %v3185
        %v3650 = vunpack.c.l.b16 %v3186
        %v3651 = vunpack.c.l.b16 %v3187
        %v3652 = vunpack.c.l.b16 %v3188
        %v3653 = vunpack.c.l.b16 %v3189
        %v3654 = vunpack.c.l.b16 %v3190
        %v3655 = vunpack.c.l.b16 %v3191
        %v3656 = vpack.c.b16 %v3641, %v3640
        %v3657 = vpack.c.b16 %v3643, %v3642
        %v3658 = vpack.c.b16 %v3645, %v3644
        %v3659 = vpack.c.b16 %v3647, %v3646
        %v3660 = vpack.c.b16 %v3649, %v3648
        %v3661 = vpack.c.b16 %v3651, %v3650
        %v3662 = vpack.c.b16 %v3653, %v3652
        %v3663 = vpack.c.b16 %v3655, %v3654
        %3672 = vmatprep.subr.bf16.mxu0 0
        %3673 = vmatpush1.bf16.msra.mxu0 %v3656
        %3674 = vmatprep.subr.bf16.mxu0 0
        %3675 = vmatpush1.bf16.msra.mxu0 %v3657
        %3676 = vmatprep.subr.bf16.mxu0 0
        %3677 = vmatpush1.bf16.msra.mxu0 %v3658
        %3678 = vmatprep.subr.bf16.mxu0 0
        %3679 = vmatpush1.bf16.msra.mxu0 %v3659
        %3680 = vmatprep.subr.bf16.mxu0 0
        %3681 = vmatpush1.bf16.msra.mxu0 %v3660
        %3682 = vmatprep.subr.bf16.mxu0 0
        %3683 = vmatpush1.bf16.msra.mxu0 %v3661
        %3684 = vmatprep.subr.bf16.mxu0 0
        %3685 = vmatpush1.bf16.msra.mxu0 %v3662
        %3686 = vmatprep.subr.bf16.mxu0 0
        %3687 = vmatpush1.bf16.msra.mxu0 %v3663
        %3688 = vmatprep.subr.bf16.mxu0 0
        %3689 = vmatpush1.bf16.msra.mxu0 0
        %3690 = vmatprep.subr.bf16.mxu0 0
        %3691 = vmatpush1.bf16.msra.mxu0 0
        %3692 = vmatprep.subr.bf16.mxu0 0
        %3693 = vmatpush1.bf16.msra.mxu0 0
        %3694 = vmatprep.subr.bf16.mxu0 0
        %3695 = vmatpush1.bf16.msra.mxu0 0
        %3696 = vmatprep.subr.bf16.mxu0 0
        %3697 = vmatpush1.bf16.msra.mxu0 0
        %3698 = vmatprep.subr.bf16.mxu0 0
        %3699 = vmatpush1.bf16.msra.mxu0 0
        %3700 = vmatprep.subr.bf16.mxu0 0
        %3701 = vmatpush1.bf16.msra.mxu0 0
        %3702 = vmatprep.subr.bf16.mxu0 0
        %3703 = vmatpush1.bf16.msra.mxu0 0
        %3704 = vmatprep.mubr.bf16.mxu0 0
        %3705 = vmatmul.mubr.bf16.gmra.mrb[0].mxu0 %v3600
        %v3706 = vpop.f32.mrb[0].mxu0
        %v3707 = vadd.f32 0.0, %v3706
        %v3708 = vpop.f32.mrb[0].mxu0
        %v3709 = vpop.f32.mrb[0].mxu0
        %v3710 = vadd.f32 0.0, %v3709
        %v3711 = vpop.f32.mrb[0].mxu0
        %3712 = vmatprep.mubr.bf16.mxu0 0
        %3713 = vmatmul.mubr.bf16.gmra.mrb[0].mxu0 %v3602
        %v3714 = vpop.f32.mrb[0].mxu0
        %v3715 = vadd.f32 0.0, %v3714
        %v3716 = vpop.f32.mrb[0].mxu0
        %v3717 = vpop.f32.mrb[0].mxu0
        %v3718 = vadd.f32 0.0, %v3717
        %v3719 = vpop.f32.mrb[0].mxu0
        %3720 = vmatprep.mubr.bf16.mxu0 0
        %3721 = vmatmul.mubr.bf16.gmra.mrb[0].mxu0 %v3604
        %v3722 = vpop.f32.mrb[0].mxu0
        %v3723 = vadd.f32 0.0, %v3722
        %v3724 = vpop.f32.mrb[0].mxu0
        %v3725 = vpop.f32.mrb[0].mxu0
        %v3726 = vadd.f32 0.0, %v3725
        %v3727 = vpop.f32.mrb[0].mxu0
        %3728 = vmatprep.mubr.bf16.mxu0 0
        %3729 = vmatmul.mubr.bf16.gmra.mrb[0].mxu0 %v3606
        %v3730 = vpop.f32.mrb[0].mxu0
        %v3731 = vadd.f32 0.0, %v3730
        %v3732 = vpop.f32.mrb[0].mxu0
        %v3733 = vpop.f32.mrb[0].mxu0
        %v3734 = vadd.f32 0.0, %v3733
        %v3735 = vpop.f32.mrb[0].mxu0
        %3736 = vmatprep.mubr.bf16.mxu0 0
        %3737 = vmatmul.mubr.bf16.gmra.mrb[0].mxu0 %v3608
        %v3738 = vpop.f32.mrb[0].mxu0
        %v3739 = vadd.f32 0.0, %v3738
        %v3740 = vpop.f32.mrb[0].mxu0
        %v3741 = vpop.f32.mrb[0].mxu0
        %v3742 = vadd.f32 0.0, %v3741
        %v3743 = vpop.f32.mrb[0].mxu0
        %3744 = vmatprep.mubr.bf16.mxu0 0
        %3745 = vmatmul.mubr.bf16.gmra.mrb[0].mxu0 %v3610
        %v3746 = vpop.f32.mrb[0].mxu0
        %v3747 = vadd.f32 0.0, %v3746
        %v3748 = vpop.f32.mrb[0].mxu0
        %v3749 = vpop.f32.mrb[0].mxu0
        %v3750 = vadd.f32 0.0, %v3749
        %v3751 = vpop.f32.mrb[0].mxu0
        %3752 = vmatprep.mubr.bf16.mxu0 0
        %3753 = vmatmul.mubr.bf16.gmra.mrb[0].mxu0 %v3612
        %v3754 = vpop.f32.mrb[0].mxu0
        %v3755 = vadd.f32 0.0, %v3754
        %v3756 = vpop.f32.mrb[0].mxu0
        %v3757 = vpop.f32.mrb[0].mxu0
        %v3758 = vadd.f32 0.0, %v3757
        %v3759 = vpop.f32.mrb[0].mxu0
        %3760 = vmatprep.mubr.bf16.mxu0 0
        %3761 = vmatmul.mubr.bf16.gmra.mrb[0].mxu0 %v3614
        %v3762 = vpop.f32.mrb[0].mxu0
        %v3763 = vadd.f32 0.0, %v3762
        %v3764 = vpop.f32.mrb[0].mxu0
        %v3765 = vpop.f32.mrb[0].mxu0
        %v3766 = vadd.f32 0.0, %v3765
        %v3767 = vpop.f32.mrb[0].mxu0
        %3768 = vmatprep.mubr.bf16.mxu0 0
        %3769 = vmatmul.mubr.bf16.gmra.mrb[0].mxu0 %v3613
        %v3770 = vpop.f32.mrb[0].mxu0
        %v3771 = vadd.f32 0.0, %v3770
        %v3772 = vpop.f32.mrb[0].mxu0
        %v3773 = vpop.f32.mrb[0].mxu0
        %v3774 = vadd.f32 0.0, %v3773
        %v3775 = vpop.f32.mrb[0].mxu0
        %3776 = vdwg.mxu0
        %v3777 = vadd.f32 %v3519, %v3707
        %v3778 = vadd.f32 %v3522, %v3710
        %v3779 = vadd.f32 %v3527, %v3715
        %v3780 = vadd.f32 %v3530, %v3718
        %v3781 = vadd.f32 %v3535, %v3723
        %v3782 = vadd.f32 %v3538, %v3726
        %v3783 = vadd.f32 %v3543, %v3731
        %v3784 = vadd.f32 %v3546, %v3734
        %v3785 = vadd.f32 %v3551, %v3739
        %v3786 = vadd.f32 %v3554, %v3742
        %v3787 = vadd.f32 %v3559, %v3747
        %v3788 = vadd.f32 %v3562, %v3750
        %v3789 = vadd.f32 %v3567, %v3755
        %v3790 = vadd.f32 %v3570, %v3758
        %v3791 = vadd.f32 %v3575, %v3763
        %v3792 = vadd.f32 %v3578, %v3766
        %v3793 = vadd.f32 %v3583, %v3771
        %v3794 = vadd.f32 %v3586, %v3774
        %v3796 = vlaneseq
        %v3797 = vshrl.u32 %v3796, 7
        %v3798 = vsub.s32 0, %v3797
        %v3799 = vrot.slane %v3193, %v3798
        %v3801 = vadd.f32 %v3777, %v3799
        %v3802 = vadd.f32 %v3778, %v3799
        %v3803 = vadd.f32 %v3779, %v3799
        %v3804 = vadd.f32 %v3780, %v3799
        %v3805 = vadd.f32 %v3781, %v3799
        %v3806 = vadd.f32 %v3782, %v3799
        %v3807 = vadd.f32 %v3783, %v3799
        %v3808 = vadd.f32 %v3784, %v3799
        %v3809 = vadd.f32 %v3785, %v3799
        %v3810 = vadd.f32 %v3786, %v3799
        %v3811 = vadd.f32 %v3787, %v3799
        %v3812 = vadd.f32 %v3788, %v3799
        %v3813 = vadd.f32 %v3789, %v3799
        %v3814 = vadd.f32 %v3790, %v3799
        %v3815 = vadd.f32 %v3791, %v3799
        %v3816 = vadd.f32 %v3792, %v3799
        %v3817 = vadd.f32 %v3793, %v3799
        %v3818 = vadd.f32 %v3794, %v3799
        %vm3837 = vcmask 1043456
        %v3838 = vrot.slane %v2168, 4
        %v3839 = vrot.slane %v2169, 4
        %v3840 = vsel %vm3837, %v3838, %v3839
        %v3841 = vrot.slane %v2170, 4
        %v3842 = vsel %vm3837, %v3839, %v3841
        %v3843 = vrot.slane %v2171, 4
        %v3844 = vsel %vm3837, %v3841, %v3843
        %v3845 = vrot.slane %v2172, 4
        %v3846 = vsel %vm3837, %v3843, %v3845
        %v3847 = vrot.slane %v2173, 4
        %v3848 = vsel %vm3837, %v3845, %v3847
        %v3849 = vrot.slane %v2174, 4
        %v3850 = vsel %vm3837, %v3847, %v3849
        %v3851 = vrot.slane %v2175, 4
        %v3852 = vsel %vm3837, %v3849, %v3851
        %v3853 = vrot.slane %v2176, 4
        %v3854 = vsel %vm3837, %v3851, %v3853
        %v3855 = vrot.slane %v2177, 4
        %v3856 = vsel %vm3837, %v3853, %v3855
        %v3857 = vrot.slane %v2178, 4
        %v3858 = vsel %vm3837, %v3855, %v3857
        %v3859 = vrot.slane %v2179, 4
        %v3860 = vsel %vm3837, %v3857, %v3859
        %v3861 = vrot.slane %v2180, 4
        %v3862 = vsel %vm3837, %v3859, %v3861
        %v3863 = vrot.slane %v2181, 4
        %v3864 = vsel %vm3837, %v3861, %v3863
        %v3865 = vrot.slane %v2182, 4
        %v3866 = vsel %vm3837, %v3863, %v3865
        %v3867 = vrot.slane %v2183, 4
        %v3868 = vsel %vm3837, %v3865, %v3867
        %v3869 = vrot.slane %v2184, 4
        %v3870 = vsel %vm3837, %v3867, %v3869
        %v3871 = vrot.slane %v2185, 4
        %v3872 = vsel %vm3837, %v3869, %v3871
        %v3891 = vadd.f32 %v3801, %v3840
        %v3892 = vadd.f32 %v3802, %v3842
        %v3893 = vadd.f32 %v3803, %v3844
        %v3894 = vadd.f32 %v3804, %v3846
        %v3895 = vadd.f32 %v3805, %v3848
        %v3896 = vadd.f32 %v3806, %v3850
        %v3897 = vadd.f32 %v3807, %v3852
        %v3898 = vadd.f32 %v3808, %v3854
        %v3899 = vadd.f32 %v3809, %v3856
        %v3900 = vadd.f32 %v3810, %v3858
        %v3901 = vadd.f32 %v3811, %v3860
        %v3902 = vadd.f32 %v3812, %v3862
        %v3903 = vadd.f32 %v3813, %v3864
        %v3904 = vadd.f32 %v3814, %v3866
        %v3905 = vadd.f32 %v3815, %v3868
        %v3906 = vadd.f32 %v3816, %v3870
        %v3907 = vadd.f32 %v3817, %v3872
        %v3908 = vadd.f32 %v3818, %v3871
        %vm3909 = vcmp.ge.f32.partialorder %v3891, 0.0
        %vm3910 = vcmp.ge.f32.partialorder %v3892, 0.0
        %vm3911 = vcmp.ge.f32.partialorder %v3893, 0.0
        %vm3912 = vcmp.ge.f32.partialorder %v3894, 0.0
        %vm3913 = vcmp.ge.f32.partialorder %v3895, 0.0
        %vm3914 = vcmp.ge.f32.partialorder %v3896, 0.0
        %vm3915 = vcmp.ge.f32.partialorder %v3897, 0.0
        %vm3916 = vcmp.ge.f32.partialorder %v3898, 0.0
        %vm3917 = vcmp.ge.f32.partialorder %v3899, 0.0
        %vm3918 = vcmp.ge.f32.partialorder %v3900, 0.0
        %vm3919 = vcmp.ge.f32.partialorder %v3901, 0.0
        %vm3920 = vcmp.ge.f32.partialorder %v3902, 0.0
        %vm3921 = vcmp.ge.f32.partialorder %v3903, 0.0
        %vm3922 = vcmp.ge.f32.partialorder %v3904, 0.0
        %vm3923 = vcmp.ge.f32.partialorder %v3905, 0.0
        %vm3924 = vcmp.ge.f32.partialorder %v3906, 0.0
        %vm3925 = vcmp.ge.f32.partialorder %v3907, 0.0
        %vm3926 = vcmp.ge.f32.partialorder %v3908, 0.0
        %v3927 = vmul.f32 %v3891, 0.1
        %v3928 = vmul.f32 %v3892, 0.1
        %v3929 = vmul.f32 %v3893, 0.1
        %v3930 = vmul.f32 %v3894, 0.1
        %v3931 = vmul.f32 %v3895, 0.1
        %v3932 = vmul.f32 %v3896, 0.1
        %v3933 = vmul.f32 %v3897, 0.1
        %v3934 = vmul.f32 %v3898, 0.1
        %v3935 = vmul.f32 %v3899, 0.1
        %v3936 = vmul.f32 %v3900, 0.1
        %v3937 = vmul.f32 %v3901, 0.1
        %v3938 = vmul.f32 %v3902, 0.1
        %v3939 = vmul.f32 %v3903, 0.1
        %v3940 = vmul.f32 %v3904, 0.1
        %v3941 = vmul.f32 %v3905, 0.1
        %v3942 = vmul.f32 %v3906, 0.1
        %v3943 = vmul.f32 %v3907, 0.1
        %v3944 = vmul.f32 %v3908, 0.1
        %v3945 = vsel %vm3909, %v3891, %v3927
        %v3946 = vsel %vm3910, %v3892, %v3928
        %v3947 = vsel %vm3911, %v3893, %v3929
        %v3948 = vsel %vm3912, %v3894, %v3930
        %v3949 = vsel %vm3913, %v3895, %v3931
        %v3950 = vsel %vm3914, %v3896, %v3932
        %v3951 = vsel %vm3915, %v3897, %v3933
        %v3952 = vsel %vm3916, %v3898, %v3934
        %v3953 = vsel %vm3917, %v3899, %v3935
        %v3954 = vsel %vm3918, %v3900, %v3936
        %v3955 = vsel %vm3919, %v3901, %v3937
        %v3956 = vsel %vm3920, %v3902, %v3938
        %v3957 = vsel %vm3921, %v3903, %v3939
        %v3958 = vsel %vm3922, %v3904, %v3940
        %v3959 = vsel %vm3923, %v3905, %v3941
        %v3960 = vsel %vm3924, %v3906, %v3942
        %v3961 = vsel %vm3925, %v3907, %v3943
        %v3962 = vsel %vm3926, %v3908, %v3944
        %vm3963 = vcmask 1041408
        %v3964 = vrot.slane %v421, 6
        %v3965 = vrot.slane %v422, 6
        %v3966 = vsel %vm3963, %v3964, %v3965
        %v3967 = vrot.slane %v423, 6
        %v3968 = vsel %vm3963, %v3965, %v3967
        %v3969 = vrot.slane %v424, 6
        %v3970 = vsel %vm3963, %v3967, %v3969
        %v3971 = vrot.slane %v425, 6
        %v3972 = vsel %vm3963, %v3969, %v3971
        %v3973 = vrot.slane %v426, 6
        %v3974 = vsel %vm3963, %v3971, %v3973
        %v3975 = vrot.slane %v427, 6
        %v3976 = vsel %vm3963, %v3973, %v3975
        %v3977 = vrot.slane %v428, 6
        %v3978 = vsel %vm3963, %v3975, %v3977
        %v3979 = vrot.slane %v429, 6
        %v3980 = vsel %vm3963, %v3977, %v3979
        %v3981 = vrot.slane %v430, 6
        %v3982 = vsel %vm3963, %v3979, %v3981
        %v3983 = vrot.slane %v431, 6
        %v3984 = vsel %vm3963, %v3981, %v3983
        %v3985 = vrot.slane %v432, 6
        %v3986 = vsel %vm3963, %v3983, %v3985
        %v3987 = vrot.slane %v433, 6
        %v3988 = vsel %vm3963, %v3985, %v3987
        %v3989 = vrot.slane %v434, 6
        %v3990 = vsel %vm3963, %v3987, %v3989
        %v3991 = vrot.slane %v435, 6
        %v3992 = vsel %vm3963, %v3989, %v3991
        %v3993 = vrot.slane %v436, 6
        %v3994 = vsel %vm3963, %v3991, %v3993
        %v3995 = vrot.slane %v437, 6
        %v3996 = vsel %vm3963, %v3993, %v3995
        %v3997 = vrot.slane %v438, 6
        %v3998 = vsel %vm3963, %v3995, %v3997
        %v3999 = vrot.slane %v439, 6
        %v4000 = vsel %vm3963, %v3997, %v3999
        %v4019 = vmul.f32 %v3945, %v3966
        %v4020 = vmul.f32 %v3946, %v3968
        %v4021 = vmul.f32 %v3947, %v3970
        %v4022 = vmul.f32 %v3948, %v3972
        %v4023 = vmul.f32 %v3949, %v3974
        %v4024 = vmul.f32 %v3950, %v3976
        %v4025 = vmul.f32 %v3951, %v3978
        %v4026 = vmul.f32 %v3952, %v3980
        %v4027 = vmul.f32 %v3953, %v3982
        %v4028 = vmul.f32 %v3954, %v3984
        %v4029 = vmul.f32 %v3955, %v3986
        %v4030 = vmul.f32 %v3956, %v3988
        %v4031 = vmul.f32 %v3957, %v3990
        %v4032 = vmul.f32 %v3958, %v3992
        %v4033 = vmul.f32 %v3959, %v3994
        %v4034 = vmul.f32 %v3960, %v3996
        %v4035 = vmul.f32 %v3961, %v3998
        %v4036 = vmul.f32 %v3962, %v4000
        %s4037 = scalar_lea.vmem [#allocation4], 384
        %v4038 = vld [vmem:[%s4037] sm:$0xf]
        %v4039 = vld [vmem:[%s4037 + $0x4] sm:$0xf]
        %v4040 = vld [vmem:[%s4037 + $0x8] sm:$0xf]
        %v4041 = vld [vmem:[%s4037 + $0xc] sm:$0xf]
        %v4042 = vld [vmem:[%s4037 + $0x10] sm:$0xf]
        %v4043 = vld [vmem:[%s4037 + $0x14] sm:$0xf]
        %v4044 = vld [vmem:[%s4037 + $0x18] sm:$0xf]
        %v4045 = vld [vmem:[%s4037 + $0x1c] sm:$0xf]
        %v4046 = vld [vmem:[%s4037 + $0x20] sm:$0xf]
        %v4047 = vld [vmem:[%s4037 + $0x24] sm:$0xf]
        %v4048 = vld [vmem:[%s4037 + $0x28] sm:$0xf]
        %v4049 = vld [vmem:[%s4037 + $0x2c] sm:$0xf]
        %v4050 = vld [vmem:[%s4037 + $0x30] sm:$0xf]
        %v4051 = vld [vmem:[%s4037 + $0x34] sm:$0xf]
        %v4052 = vld [vmem:[%s4037 + $0x38] sm:$0xf]
        %v4053 = vld [vmem:[%s4037 + $0x3c] sm:$0xf]
        %v4054 = vld [vmem:[%s4037 + $0x40] sm:$0xf]
        %v4055 = vld [vmem:[%s4037 + $0x44] sm:$0xf]
        %v4056 = vld [vmem:[%s4037 + $0x48] sm:$0xf]
        %v4057 = vld [vmem:[%s4037 + $0x4c] sm:$0xf]
        %v4058 = vld [vmem:[%s4037 + $0x50] sm:$0xf]
        %v4059 = vld [vmem:[%s4037 + $0x54] sm:$0xf]
        %v4060 = vld [vmem:[%s4037 + $0x58] sm:$0xf]
        %v4061 = vld [vmem:[%s4037 + $0x5c] sm:$0xf]
        %v4062 = vld [vmem:[%s4037 + $0x60] sm:$0xf]
        %v4063 = vld [vmem:[%s4037 + $0x64] sm:$0xf]
        %v4064 = vld [vmem:[%s4037 + $0x68] sm:$0xf]
        %v4065 = vld [vmem:[%s4037 + $0x6c] sm:$0xf]
        %v4066 = vld [vmem:[%s4037 + $0x70] sm:$0xf]
        %v4067 = vld [vmem:[%s4037 + $0x74] sm:$0xf]
        %v4068 = vld [vmem:[%s4037 + $0x78] sm:$0xf]
        %v4069 = vld [vmem:[%s4037 + $0x7c] sm:$0xf]
        %v4070 = vld [vmem:[%s4037 + $0x80] sm:$0xf]
        %v4071 = vld [vmem:[%s4037 + $0x84] sm:$0xf]
        %v4072 = vld [vmem:[%s4037 + $0x88] sm:$0xf]
        %v4073 = vld [vmem:[%s4037 + $0x8c] sm:$0xf]
        %v4074 = vld [vmem:[%s4037 + $0x90] sm:$0xf]
        %v4075 = vld [vmem:[%s4037 + $0x94] sm:$0xf]
        %v4076 = vld [vmem:[%s4037 + $0x98] sm:$0xf]
        %v4077 = vld [vmem:[%s4037 + $0x9c] sm:$0xf]
        %v4078 = vld [vmem:[%s4037 + $0xa0] sm:$0xf]
        %v4079 = vld [vmem:[%s4037 + $0xa4] sm:$0xf]
        %v4080 = vld [vmem:[%s4037 + $0xa8] sm:$0xf]
        %v4081 = vld [vmem:[%s4037 + $0xac] sm:$0xf]
        %v4082 = vld [vmem:[%s4037 + $0xb0] sm:$0xf]
        %v4083 = vld [vmem:[%s4037 + $0xb4] sm:$0xf]
        %v4084 = vld [vmem:[%s4037 + $0xb8] sm:$0xf]
        %v4085 = vld [vmem:[%s4037 + $0xbc] sm:$0xf]
        %s4086 = scalar_lea.vmem %s2, 2
        %v4087 = vld [vmem:[%s4086] sm:$0x1]
        %v4088 = vpack.c.bf16 %v4020, %v4019
        %v4089 = vpack.c.bf16 %v4022, %v4021
        %v4090 = vpack.c.bf16 %v4024, %v4023
        %v4091 = vpack.c.bf16 %v4026, %v4025
        %v4092 = vpack.c.bf16 %v4028, %v4027
        %v4093 = vpack.c.bf16 %v4030, %v4029
        %v4094 = vpack.c.bf16 %v4032, %v4031
        %v4095 = vpack.c.bf16 %v4034, %v4033
        %v4096 = vpack.c.bf16 %v4036, %v4035
        %vm4097 = vsmask.f32 5376
        %v4099 = vshrl.u32 %v4088, 16
        %v4101 = vrot.slane %v4099, 2
        %v4102 = vshll.u32 %v4088, 16
        %v4104 = vrot.slane %v4102, 3
        %v4105 = vor.u32 %v4101, %v4104
        %v4107 = vshrl.u32 %v4089, 16
        %v4109 = vrot.slane %v4107, 2
        %v4110 = vshll.u32 %v4089, 16
        %v4112 = vrot.slane %v4110, 3
        %v4113 = vor.u32 %v4109, %v4112
        %v4114 = vsel %vm4097, %v4105, %v4113
        %v4116 = vshrl.u32 %v4090, 16
        %v4118 = vrot.slane %v4116, 2
        %v4119 = vshll.u32 %v4090, 16
        %v4121 = vrot.slane %v4119, 3
        %v4122 = vor.u32 %v4118, %v4121
        %v4123 = vsel %vm4097, %v4113, %v4122
        %v4125 = vshrl.u32 %v4091, 16
        %v4127 = vrot.slane %v4125, 2
        %v4128 = vshll.u32 %v4091, 16
        %v4130 = vrot.slane %v4128, 3
        %v4131 = vor.u32 %v4127, %v4130
        %v4132 = vsel %vm4097, %v4122, %v4131
        %v4134 = vshrl.u32 %v4092, 16
        %v4136 = vrot.slane %v4134, 2
        %v4137 = vshll.u32 %v4092, 16
        %v4139 = vrot.slane %v4137, 3
        %v4140 = vor.u32 %v4136, %v4139
        %v4141 = vsel %vm4097, %v4131, %v4140
        %v4143 = vshrl.u32 %v4093, 16
        %v4145 = vrot.slane %v4143, 2
        %v4146 = vshll.u32 %v4093, 16
        %v4148 = vrot.slane %v4146, 3
        %v4149 = vor.u32 %v4145, %v4148
        %v4150 = vsel %vm4097, %v4140, %v4149
        %v4152 = vshrl.u32 %v4094, 16
        %v4154 = vrot.slane %v4152, 2
        %v4155 = vshll.u32 %v4094, 16
        %v4157 = vrot.slane %v4155, 3
        %v4158 = vor.u32 %v4154, %v4157
        %v4159 = vsel %vm4097, %v4149, %v4158
        %v4161 = vshrl.u32 %v4095, 16
        %v4163 = vrot.slane %v4161, 2
        %v4164 = vshll.u32 %v4095, 16
        %v4166 = vrot.slane %v4164, 3
        %v4167 = vor.u32 %v4163, %v4166
        %v4168 = vsel %vm4097, %v4158, %v4167
        %v4170 = vshrl.u32 %v4096, 16
        %v4172 = vrot.slane %v4170, 2
        %v4173 = vshll.u32 %v4096, 16
        %v4175 = vrot.slane %v4173, 3
        %v4176 = vor.u32 %v4172, %v4175
        %v4177 = vsel %vm4097, %v4167, %v4176
        %v4203 = vunpack.c.l.b16 %v4054
        %v4204 = vunpack.c.l.b16 %v4055
        %v4205 = vunpack.c.l.b16 %v4056
        %v4206 = vunpack.c.l.b16 %v4057
        %v4207 = vunpack.c.l.b16 %v4058
        %v4208 = vunpack.c.l.b16 %v4059
        %v4209 = vunpack.c.l.b16 %v4060
        %v4210 = vunpack.c.l.b16 %v4061
        %v4211 = vunpack.c.l.b16 %v4062
        %v4212 = vunpack.c.l.b16 %v4063
        %v4213 = vunpack.c.l.b16 %v4064
        %v4214 = vunpack.c.l.b16 %v4065
        %v4215 = vunpack.c.l.b16 %v4066
        %v4216 = vunpack.c.l.b16 %v4067
        %v4217 = vunpack.c.l.b16 %v4068
        %v4218 = vunpack.c.l.b16 %v4069
        %v4219 = vpack.c.b16 %v4204, %v4203
        %v4220 = vpack.c.b16 %v4206, %v4205
        %v4221 = vpack.c.b16 %v4208, %v4207
        %v4222 = vpack.c.b16 %v4210, %v4209
        %v4223 = vpack.c.b16 %v4212, %v4211
        %v4224 = vpack.c.b16 %v4214, %v4213
        %v4225 = vpack.c.b16 %v4216, %v4215
        %v4226 = vpack.c.b16 %v4218, %v4217
        %4235 = vmatprep.subr.bf16.mxu0 0
        %4236 = vmatpush1.bf16.msra.mxu0 %v4219
        %4237 = vmatprep.subr.bf16.mxu0 0
        %4238 = vmatpush1.bf16.msra.mxu0 %v4220
        %4239 = vmatprep.subr.bf16.mxu0 0
        %4240 = vmatpush1.bf16.msra.mxu0 %v4221
        %4241 = vmatprep.subr.bf16.mxu0 0
        %4242 = vmatpush1.bf16.msra.mxu0 %v4222
        %4243 = vmatprep.subr.bf16.mxu0 0
        %4244 = vmatpush1.bf16.msra.mxu0 %v4223
        %4245 = vmatprep.subr.bf16.mxu0 0
        %4246 = vmatpush1.bf16.msra.mxu0 %v4224
        %4247 = vmatprep.subr.bf16.mxu0 0
        %4248 = vmatpush1.bf16.msra.mxu0 %v4225
        %4249 = vmatprep.subr.bf16.mxu0 0
        %4250 = vmatpush1.bf16.msra.mxu0 %v4226
        %4251 = vmatprep.subr.bf16.mxu0 0
        %4252 = vmatpush1.bf16.msra.mxu0 0
        %4253 = vmatprep.subr.bf16.mxu0 0
        %4254 = vmatpush1.bf16.msra.mxu0 0
        %4255 = vmatprep.subr.bf16.mxu0 0
        %4256 = vmatpush1.bf16.msra.mxu0 0
        %4257 = vmatprep.subr.bf16.mxu0 0
        %4258 = vmatpush1.bf16.msra.mxu0 0
        %4259 = vmatprep.subr.bf16.mxu0 0
        %4260 = vmatpush1.bf16.msra.mxu0 0
        %4261 = vmatprep.subr.bf16.mxu0 0
        %4262 = vmatpush1.bf16.msra.mxu0 0
        %4263 = vmatprep.subr.bf16.mxu0 0
        %4264 = vmatpush1.bf16.msra.mxu0 0
        %4265 = vmatprep.subr.bf16.mxu0 0
        %4266 = vmatpush1.bf16.msra.mxu0 0
        %4267 = vmatprep.mubr.bf16.mxu0 0
        %4268 = vmatmul.mubr.bf16.gmra.mrb[0].mxu0 %v4114
        %v4269 = vpop.f32.mrb[0].mxu0
        %v4270 = vadd.f32 0.0, %v4269
        %v4271 = vpop.f32.mrb[0].mxu0
        %v4272 = vpop.f32.mrb[0].mxu0
        %v4273 = vadd.f32 0.0, %v4272
        %v4274 = vpop.f32.mrb[0].mxu0
        %4275 = vmatprep.mubr.bf16.mxu0 0
        %4276 = vmatmul.mubr.bf16.gmra.mrb[0].mxu0 %v4123
        %v4277 = vpop.f32.mrb[0].mxu0
        %v4278 = vadd.f32 0.0, %v4277
        %v4279 = vpop.f32.mrb[0].mxu0
        %v4280 = vpop.f32.mrb[0].mxu0
        %v4281 = vadd.f32 0.0, %v4280
        %v4282 = vpop.f32.mrb[0].mxu0
        %4283 = vmatprep.mubr.bf16.mxu0 0
        %4284 = vmatmul.mubr.bf16.gmra.mrb[0].mxu0 %v4132
        %v4285 = vpop.f32.mrb[0].mxu0
        %v4286 = vadd.f32 0.0, %v4285
        %v4287 = vpop.f32.mrb[0].mxu0
        %v4288 = vpop.f32.mrb[0].mxu0
        %v4289 = vadd.f32 0.0, %v4288
        %v4290 = vpop.f32.mrb[0].mxu0
        %4291 = vmatprep.mubr.bf16.mxu0 0
        %4292 = vmatmul.mubr.bf16.gmra.mrb[0].mxu0 %v4141
        %v4293 = vpop.f32.mrb[0].mxu0
        %v4294 = vadd.f32 0.0, %v4293
        %v4295 = vpop.f32.mrb[0].mxu0
        %v4296 = vpop.f32.mrb[0].mxu0
        %v4297 = vadd.f32 0.0, %v4296
        %v4298 = vpop.f32.mrb[0].mxu0
        %4299 = vmatprep.mubr.bf16.mxu0 0
        %4300 = vmatmul.mubr.bf16.gmra.mrb[0].mxu0 %v4150
        %v4301 = vpop.f32.mrb[0].mxu0
        %v4302 = vadd.f32 0.0, %v4301
        %v4303 = vpop.f32.mrb[0].mxu0
        %v4304 = vpop.f32.mrb[0].mxu0
        %v4305 = vadd.f32 0.0, %v4304
        %v4306 = vpop.f32.mrb[0].mxu0
        %4307 = vmatprep.mubr.bf16.mxu0 0
        %4308 = vmatmul.mubr.bf16.gmra.mrb[0].mxu0 %v4159
        %v4309 = vpop.f32.mrb[0].mxu0
        %v4310 = vadd.f32 0.0, %v4309
        %v4311 = vpop.f32.mrb[0].mxu0
        %v4312 = vpop.f32.mrb[0].mxu0
        %v4313 = vadd.f32 0.0, %v4312
        %v4314 = vpop.f32.mrb[0].mxu0
        %4315 = vmatprep.mubr.bf16.mxu0 0
        %4316 = vmatmul.mubr.bf16.gmra.mrb[0].mxu0 %v4168
        %v4317 = vpop.f32.mrb[0].mxu0
        %v4318 = vadd.f32 0.0, %v4317
        %v4319 = vpop.f32.mrb[0].mxu0
        %v4320 = vpop.f32.mrb[0].mxu0
        %v4321 = vadd.f32 0.0, %v4320
        %v4322 = vpop.f32.mrb[0].mxu0
        %4323 = vmatprep.mubr.bf16.mxu0 0
        %4324 = vmatmul.mubr.bf16.gmra.mrb[0].mxu0 %v4177
        %v4325 = vpop.f32.mrb[0].mxu0
        %v4326 = vadd.f32 0.0, %v4325
        %v4327 = vpop.f32.mrb[0].mxu0
        %v4328 = vpop.f32.mrb[0].mxu0
        %v4329 = vadd.f32 0.0, %v4328
        %v4330 = vpop.f32.mrb[0].mxu0
        %4331 = vmatprep.mubr.bf16.mxu0 0
        %4332 = vmatmul.mubr.bf16.gmra.mrb[0].mxu0 %v4176
        %v4333 = vpop.f32.mrb[0].mxu0
        %v4334 = vadd.f32 0.0, %v4333
        %v4335 = vpop.f32.mrb[0].mxu0
        %v4336 = vpop.f32.mrb[0].mxu0
        %v4337 = vpop.f32.mrb[0].mxu0
        %4338 = vdwg.mxu0
        %v4355 = vunpack.c.l.b16 %v4038
        %v4356 = vunpack.c.l.b16 %v4039
        %v4357 = vunpack.c.l.b16 %v4040
        %v4358 = vunpack.c.l.b16 %v4041
        %v4359 = vunpack.c.l.b16 %v4042
        %v4360 = vunpack.c.l.b16 %v4043
        %v4361 = vunpack.c.l.b16 %v4044
        %v4362 = vunpack.c.l.b16 %v4045
        %v4363 = vunpack.c.l.b16 %v4046
        %v4364 = vunpack.c.l.b16 %v4047
        %v4365 = vunpack.c.l.b16 %v4048
        %v4366 = vunpack.c.l.b16 %v4049
        %v4367 = vunpack.c.l.b16 %v4050
        %v4368 = vunpack.c.l.b16 %v4051
        %v4369 = vunpack.c.l.b16 %v4052
        %v4370 = vunpack.c.l.b16 %v4053
        %v4371 = vpack.c.b16 %v4356, %v4355
        %v4372 = vpack.c.b16 %v4358, %v4357
        %v4373 = vpack.c.b16 %v4360, %v4359
        %v4374 = vpack.c.b16 %v4362, %v4361
        %v4375 = vpack.c.b16 %v4364, %v4363
        %v4376 = vpack.c.b16 %v4366, %v4365
        %v4377 = vpack.c.b16 %v4368, %v4367
        %v4378 = vpack.c.b16 %v4370, %v4369
        %4387 = vmatprep.subr.bf16.mxu0 0
        %4388 = vmatpush1.bf16.msra.mxu0 %v4371
        %4389 = vmatprep.subr.bf16.mxu0 0
        %4390 = vmatpush1.bf16.msra.mxu0 %v4372
        %4391 = vmatprep.subr.bf16.mxu0 0
        %4392 = vmatpush1.bf16.msra.mxu0 %v4373
        %4393 = vmatprep.subr.bf16.mxu0 0
        %4394 = vmatpush1.bf16.msra.mxu0 %v4374
        %4395 = vmatprep.subr.bf16.mxu0 0
        %4396 = vmatpush1.bf16.msra.mxu0 %v4375
        %4397 = vmatprep.subr.bf16.mxu0 0
        %4398 = vmatpush1.bf16.msra.mxu0 %v4376
        %4399 = vmatprep.subr.bf16.mxu0 0
        %4400 = vmatpush1.bf16.msra.mxu0 %v4377
        %4401 = vmatprep.subr.bf16.mxu0 0
        %4402 = vmatpush1.bf16.msra.mxu0 %v4378
        %4403 = vmatprep.subr.bf16.mxu0 0
        %4404 = vmatpush1.bf16.msra.mxu0 0
        %4405 = vmatprep.subr.bf16.mxu0 0
        %4406 = vmatpush1.bf16.msra.mxu0 0
        %4407 = vmatprep.subr.bf16.mxu0 0
        %4408 = vmatpush1.bf16.msra.mxu0 0
        %4409 = vmatprep.subr.bf16.mxu0 0
        %4410 = vmatpush1.bf16.msra.mxu0 0
        %4411 = vmatprep.subr.bf16.mxu0 0
        %4412 = vmatpush1.bf16.msra.mxu0 0
        %4413 = vmatprep.subr.bf16.mxu0 0
        %4414 = vmatpush1.bf16.msra.mxu0 0
        %4415 = vmatprep.subr.bf16.mxu0 0
        %4416 = vmatpush1.bf16.msra.mxu0 0
        %4417 = vmatprep.subr.bf16.mxu0 0
        %4418 = vmatpush1.bf16.msra.mxu0 0
        %4419 = vmatprep.mubr.bf16.mxu0 0
        %4420 = vmatmul.mubr.bf16.gmra.mrb[0].mxu0 %v4088
        %v4421 = vpop.f32.mrb[0].mxu0
        %v4422 = vadd.f32 %v4270, %v4421
        %v4423 = vpop.f32.mrb[0].mxu0
        %v4424 = vpop.f32.mrb[0].mxu0
        %v4425 = vadd.f32 %v4273, %v4424
        %v4426 = vpop.f32.mrb[0].mxu0
        %4427 = vmatprep.mubr.bf16.mxu0 0
        %4428 = vmatmul.mubr.bf16.gmra.mrb[0].mxu0 %v4089
        %v4429 = vpop.f32.mrb[0].mxu0
        %v4430 = vadd.f32 %v4278, %v4429
        %v4431 = vpop.f32.mrb[0].mxu0
        %v4432 = vpop.f32.mrb[0].mxu0
        %v4433 = vadd.f32 %v4281, %v4432
        %v4434 = vpop.f32.mrb[0].mxu0
        %4435 = vmatprep.mubr.bf16.mxu0 0
        %4436 = vmatmul.mubr.bf16.gmra.mrb[0].mxu0 %v4090
        %v4437 = vpop.f32.mrb[0].mxu0
        %v4438 = vadd.f32 %v4286, %v4437
        %v4439 = vpop.f32.mrb[0].mxu0
        %v4440 = vpop.f32.mrb[0].mxu0
        %v4441 = vadd.f32 %v4289, %v4440
        %v4442 = vpop.f32.mrb[0].mxu0
        %4443 = vmatprep.mubr.bf16.mxu0 0
        %4444 = vmatmul.mubr.bf16.gmra.mrb[0].mxu0 %v4091
        %v4445 = vpop.f32.mrb[0].mxu0
        %v4446 = vadd.f32 %v4294, %v4445
        %v4447 = vpop.f32.mrb[0].mxu0
        %v4448 = vpop.f32.mrb[0].mxu0
        %v4449 = vadd.f32 %v4297, %v4448
        %v4450 = vpop.f32.mrb[0].mxu0
        %4451 = vmatprep.mubr.bf16.mxu0 0
        %4452 = vmatmul.mubr.bf16.gmra.mrb[0].mxu0 %v4092
        %v4453 = vpop.f32.mrb[0].mxu0
        %v4454 = vadd.f32 %v4302, %v4453
        %v4455 = vpop.f32.mrb[0].mxu0
        %v4456 = vpop.f32.mrb[0].mxu0
        %v4457 = vadd.f32 %v4305, %v4456
        %v4458 = vpop.f32.mrb[0].mxu0
        %4459 = vmatprep.mubr.bf16.mxu0 0
        %4460 = vmatmul.mubr.bf16.gmra.mrb[0].mxu0 %v4093
        %v4461 = vpop.f32.mrb[0].mxu0
        %v4462 = vadd.f32 %v4310, %v4461
        %v4463 = vpop.f32.mrb[0].mxu0
        %v4464 = vpop.f32.mrb[0].mxu0
        %v4465 = vadd.f32 %v4313, %v4464
        %v4466 = vpop.f32.mrb[0].mxu0
        %4467 = vmatprep.mubr.bf16.mxu0 0
        %4468 = vmatmul.mubr.bf16.gmra.mrb[0].mxu0 %v4094
        %v4469 = vpop.f32.mrb[0].mxu0
        %v4470 = vadd.f32 %v4318, %v4469
        %v4471 = vpop.f32.mrb[0].mxu0
        %v4472 = vpop.f32.mrb[0].mxu0
        %v4473 = vadd.f32 %v4321, %v4472
        %v4474 = vpop.f32.mrb[0].mxu0
        %4475 = vmatprep.mubr.bf16.mxu0 0
        %4476 = vmatmul.mubr.bf16.gmra.mrb[0].mxu0 %v4095
        %v4477 = vpop.f32.mrb[0].mxu0
        %v4478 = vadd.f32 %v4326, %v4477
        %v4479 = vpop.f32.mrb[0].mxu0
        %v4480 = vpop.f32.mrb[0].mxu0
        %v4481 = vadd.f32 %v4329, %v4480
        %v4482 = vpop.f32.mrb[0].mxu0
        %4483 = vmatprep.mubr.bf16.mxu0 0
        %4484 = vmatmul.mubr.bf16.gmra.mrb[0].mxu0 %v4096
        %v4485 = vpop.f32.mrb[0].mxu0
        %v4486 = vadd.f32 %v4334, %v4485
        %v4487 = vpop.f32.mrb[0].mxu0
        %v4488 = vpop.f32.mrb[0].mxu0
        %v4489 = vpop.f32.mrb[0].mxu0
        %4490 = vdwg.mxu0
        %vm4500 = vcmask 1042432
        %v4501 = vrot.slane %v4088, 5
        %v4502 = vrot.slane %v4089, 5
        %v4503 = vsel %vm4500, %v4501, %v4502
        %v4504 = vrot.slane %v4090, 5
        %v4505 = vsel %vm4500, %v4502, %v4504
        %v4506 = vrot.slane %v4091, 5
        %v4507 = vsel %vm4500, %v4504, %v4506
        %v4508 = vrot.slane %v4092, 5
        %v4509 = vsel %vm4500, %v4506, %v4508
        %v4510 = vrot.slane %v4093, 5
        %v4511 = vsel %vm4500, %v4508, %v4510
        %v4512 = vrot.slane %v4094, 5
        %v4513 = vsel %vm4500, %v4510, %v4512
        %v4514 = vrot.slane %v4095, 5
        %v4515 = vsel %vm4500, %v4512, %v4514
        %v4516 = vrot.slane %v4096, 5
        %v4517 = vsel %vm4500, %v4514, %v4516
        %v4543 = vunpack.c.l.b16 %v4070
        %v4544 = vunpack.c.l.b16 %v4071
        %v4545 = vunpack.c.l.b16 %v4072
        %v4546 = vunpack.c.l.b16 %v4073
        %v4547 = vunpack.c.l.b16 %v4074
        %v4548 = vunpack.c.l.b16 %v4075
        %v4549 = vunpack.c.l.b16 %v4076
        %v4550 = vunpack.c.l.b16 %v4077
        %v4551 = vunpack.c.l.b16 %v4078
        %v4552 = vunpack.c.l.b16 %v4079
        %v4553 = vunpack.c.l.b16 %v4080
        %v4554 = vunpack.c.l.b16 %v4081
        %v4555 = vunpack.c.l.b16 %v4082
        %v4556 = vunpack.c.l.b16 %v4083
        %v4557 = vunpack.c.l.b16 %v4084
        %v4558 = vunpack.c.l.b16 %v4085
        %v4559 = vpack.c.b16 %v4544, %v4543
        %v4560 = vpack.c.b16 %v4546, %v4545
        %v4561 = vpack.c.b16 %v4548, %v4547
        %v4562 = vpack.c.b16 %v4550, %v4549
        %v4563 = vpack.c.b16 %v4552, %v4551
        %v4564 = vpack.c.b16 %v4554, %v4553
        %v4565 = vpack.c.b16 %v4556, %v4555
        %v4566 = vpack.c.b16 %v4558, %v4557
        %4575 = vmatprep.subr.bf16.mxu0 0
        %4576 = vmatpush1.bf16.msra.mxu0 %v4559
        %4577 = vmatprep.subr.bf16.mxu0 0
        %4578 = vmatpush1.bf16.msra.mxu0 %v4560
        %4579 = vmatprep.subr.bf16.mxu0 0
        %4580 = vmatpush1.bf16.msra.mxu0 %v4561
        %4581 = vmatprep.subr.bf16.mxu0 0
        %4582 = vmatpush1.bf16.msra.mxu0 %v4562
        %4583 = vmatprep.subr.bf16.mxu0 0
        %4584 = vmatpush1.bf16.msra.mxu0 %v4563
        %4585 = vmatprep.subr.bf16.mxu0 0
        %4586 = vmatpush1.bf16.msra.mxu0 %v4564
        %4587 = vmatprep.subr.bf16.mxu0 0
        %4588 = vmatpush1.bf16.msra.mxu0 %v4565
        %4589 = vmatprep.subr.bf16.mxu0 0
        %4590 = vmatpush1.bf16.msra.mxu0 %v4566
        %4591 = vmatprep.subr.bf16.mxu0 0
        %4592 = vmatpush1.bf16.msra.mxu0 0
        %4593 = vmatprep.subr.bf16.mxu0 0
        %4594 = vmatpush1.bf16.msra.mxu0 0
        %4595 = vmatprep.subr.bf16.mxu0 0
        %4596 = vmatpush1.bf16.msra.mxu0 0
        %4597 = vmatprep.subr.bf16.mxu0 0
        %4598 = vmatpush1.bf16.msra.mxu0 0
        %4599 = vmatprep.subr.bf16.mxu0 0
        %4600 = vmatpush1.bf16.msra.mxu0 0
        %4601 = vmatprep.subr.bf16.mxu0 0
        %4602 = vmatpush1.bf16.msra.mxu0 0
        %4603 = vmatprep.subr.bf16.mxu0 0
        %4604 = vmatpush1.bf16.msra.mxu0 0
        %4605 = vmatprep.subr.bf16.mxu0 0
        %4606 = vmatpush1.bf16.msra.mxu0 0
        %4607 = vmatprep.mubr.bf16.mxu0 0
        %4608 = vmatmul.mubr.bf16.gmra.mrb[0].mxu0 %v4503
        %v4609 = vpop.f32.mrb[0].mxu0
        %v4610 = vadd.f32 0.0, %v4609
        %v4611 = vpop.f32.mrb[0].mxu0
        %v4612 = vpop.f32.mrb[0].mxu0
        %v4613 = vadd.f32 0.0, %v4612
        %v4614 = vpop.f32.mrb[0].mxu0
        %4615 = vmatprep.mubr.bf16.mxu0 0
        %4616 = vmatmul.mubr.bf16.gmra.mrb[0].mxu0 %v4505
        %v4617 = vpop.f32.mrb[0].mxu0
        %v4618 = vadd.f32 0.0, %v4617
        %v4619 = vpop.f32.mrb[0].mxu0
        %v4620 = vpop.f32.mrb[0].mxu0
        %v4621 = vadd.f32 0.0, %v4620
        %v4622 = vpop.f32.mrb[0].mxu0
        %4623 = vmatprep.mubr.bf16.mxu0 0
        %4624 = vmatmul.mubr.bf16.gmra.mrb[0].mxu0 %v4507
        %v4625 = vpop.f32.mrb[0].mxu0
        %v4626 = vadd.f32 0.0, %v4625
        %v4627 = vpop.f32.mrb[0].mxu0
        %v4628 = vpop.f32.mrb[0].mxu0
        %v4629 = vadd.f32 0.0, %v4628
        %v4630 = vpop.f32.mrb[0].mxu0
        %4631 = vmatprep.mubr.bf16.mxu0 0
        %4632 = vmatmul.mubr.bf16.gmra.mrb[0].mxu0 %v4509
        %v4633 = vpop.f32.mrb[0].mxu0
        %v4634 = vadd.f32 0.0, %v4633
        %v4635 = vpop.f32.mrb[0].mxu0
        %v4636 = vpop.f32.mrb[0].mxu0
        %v4637 = vadd.f32 0.0, %v4636
        %v4638 = vpop.f32.mrb[0].mxu0
        %4639 = vmatprep.mubr.bf16.mxu0 0
        %4640 = vmatmul.mubr.bf16.gmra.mrb[0].mxu0 %v4511
        %v4641 = vpop.f32.mrb[0].mxu0
        %v4642 = vadd.f32 0.0, %v4641
        %v4643 = vpop.f32.mrb[0].mxu0
        %v4644 = vpop.f32.mrb[0].mxu0
        %v4645 = vadd.f32 0.0, %v4644
        %v4646 = vpop.f32.mrb[0].mxu0
        %4647 = vmatprep.mubr.bf16.mxu0 0
        %4648 = vmatmul.mubr.bf16.gmra.mrb[0].mxu0 %v4513
        %v4649 = vpop.f32.mrb[0].mxu0
        %v4650 = vadd.f32 0.0, %v4649
        %v4651 = vpop.f32.mrb[0].mxu0
        %v4652 = vpop.f32.mrb[0].mxu0
        %v4653 = vadd.f32 0.0, %v4652
        %v4654 = vpop.f32.mrb[0].mxu0
        %4655 = vmatprep.mubr.bf16.mxu0 0
        %4656 = vmatmul.mubr.bf16.gmra.mrb[0].mxu0 %v4515
        %v4657 = vpop.f32.mrb[0].mxu0
        %v4658 = vadd.f32 0.0, %v4657
        %v4659 = vpop.f32.mrb[0].mxu0
        %v4660 = vpop.f32.mrb[0].mxu0
        %v4661 = vadd.f32 0.0, %v4660
        %v4662 = vpop.f32.mrb[0].mxu0
        %4663 = vmatprep.mubr.bf16.mxu0 0
        %4664 = vmatmul.mubr.bf16.gmra.mrb[0].mxu0 %v4517
        %v4665 = vpop.f32.mrb[0].mxu0
        %v4666 = vadd.f32 0.0, %v4665
        %v4667 = vpop.f32.mrb[0].mxu0
        %v4668 = vpop.f32.mrb[0].mxu0
        %v4669 = vadd.f32 0.0, %v4668
        %v4670 = vpop.f32.mrb[0].mxu0
        %4671 = vmatprep.mubr.bf16.mxu0 0
        %4672 = vmatmul.mubr.bf16.gmra.mrb[0].mxu0 %v4516
        %v4673 = vpop.f32.mrb[0].mxu0
        %v4674 = vadd.f32 0.0, %v4673
        %v4675 = vpop.f32.mrb[0].mxu0
        %v4676 = vpop.f32.mrb[0].mxu0
        %v4677 = vpop.f32.mrb[0].mxu0
        %4678 = vdwg.mxu0
        %v4679 = vadd.f32 %v4422, %v4610
        %v4680 = vadd.f32 %v4425, %v4613
        %v4681 = vadd.f32 %v4430, %v4618
        %v4682 = vadd.f32 %v4433, %v4621
        %v4683 = vadd.f32 %v4438, %v4626
        %v4684 = vadd.f32 %v4441, %v4629
        %v4685 = vadd.f32 %v4446, %v4634
        %v4686 = vadd.f32 %v4449, %v4637
        %v4687 = vadd.f32 %v4454, %v4642
        %v4688 = vadd.f32 %v4457, %v4645
        %v4689 = vadd.f32 %v4462, %v4650
        %v4690 = vadd.f32 %v4465, %v4653
        %v4691 = vadd.f32 %v4470, %v4658
        %v4692 = vadd.f32 %v4473, %v4661
        %v4693 = vadd.f32 %v4478, %v4666
        %v4694 = vadd.f32 %v4481, %v4669
        %v4695 = vadd.f32 %v4486, %v4674
        %v4697 = vlaneseq
        %v4698 = vshrl.u32 %v4697, 7
        %v4699 = vsub.s32 0, %v4698
        %v4700 = vrot.slane %v4087, %v4699
        %v4702 = vadd.f32 %v4679, %v4700
        %v4703 = vadd.f32 %v4680, %v4700
        %v4704 = vadd.f32 %v4681, %v4700
        %v4705 = vadd.f32 %v4682, %v4700
        %v4706 = vadd.f32 %v4683, %v4700
        %v4707 = vadd.f32 %v4684, %v4700
        %v4708 = vadd.f32 %v4685, %v4700
        %v4709 = vadd.f32 %v4686, %v4700
        %v4710 = vadd.f32 %v4687, %v4700
        %v4711 = vadd.f32 %v4688, %v4700
        %v4712 = vadd.f32 %v4689, %v4700
        %v4713 = vadd.f32 %v4690, %v4700
        %v4714 = vadd.f32 %v4691, %v4700
        %v4715 = vadd.f32 %v4692, %v4700
        %v4716 = vadd.f32 %v4693, %v4700
        %v4717 = vadd.f32 %v4694, %v4700
        %v4718 = vadd.f32 %v4695, %v4700
        %vm4719 = vcmp.ge.f32.partialorder %v4702, 0.0
        %vm4720 = vcmp.ge.f32.partialorder %v4703, 0.0
        %vm4721 = vcmp.ge.f32.partialorder %v4704, 0.0
        %vm4722 = vcmp.ge.f32.partialorder %v4705, 0.0
        %vm4723 = vcmp.ge.f32.partialorder %v4706, 0.0
        %vm4724 = vcmp.ge.f32.partialorder %v4707, 0.0
        %vm4725 = vcmp.ge.f32.partialorder %v4708, 0.0
        %vm4726 = vcmp.ge.f32.partialorder %v4709, 0.0
        %vm4727 = vcmp.ge.f32.partialorder %v4710, 0.0
        %vm4728 = vcmp.ge.f32.partialorder %v4711, 0.0
        %vm4729 = vcmp.ge.f32.partialorder %v4712, 0.0
        %vm4730 = vcmp.ge.f32.partialorder %v4713, 0.0
        %vm4731 = vcmp.ge.f32.partialorder %v4714, 0.0
        %vm4732 = vcmp.ge.f32.partialorder %v4715, 0.0
        %vm4733 = vcmp.ge.f32.partialorder %v4716, 0.0
        %vm4734 = vcmp.ge.f32.partialorder %v4717, 0.0
        %vm4735 = vcmp.ge.f32.partialorder %v4718, 0.0
        %v4736 = vmul.f32 %v4702, 0.1
        %v4737 = vmul.f32 %v4703, 0.1
        %v4738 = vmul.f32 %v4704, 0.1
        %v4739 = vmul.f32 %v4705, 0.1
        %v4740 = vmul.f32 %v4706, 0.1
        %v4741 = vmul.f32 %v4707, 0.1
        %v4742 = vmul.f32 %v4708, 0.1
        %v4743 = vmul.f32 %v4709, 0.1
        %v4744 = vmul.f32 %v4710, 0.1
        %v4745 = vmul.f32 %v4711, 0.1
        %v4746 = vmul.f32 %v4712, 0.1
        %v4747 = vmul.f32 %v4713, 0.1
        %v4748 = vmul.f32 %v4714, 0.1
        %v4749 = vmul.f32 %v4715, 0.1
        %v4750 = vmul.f32 %v4716, 0.1
        %v4751 = vmul.f32 %v4717, 0.1
        %v4752 = vmul.f32 %v4718, 0.1
        %v4753 = vsel %vm4719, %v4702, %v4736
        %v4754 = vsel %vm4720, %v4703, %v4737
        %v4755 = vsel %vm4721, %v4704, %v4738
        %v4756 = vsel %vm4722, %v4705, %v4739
        %v4757 = vsel %vm4723, %v4706, %v4740
        %v4758 = vsel %vm4724, %v4707, %v4741
        %v4759 = vsel %vm4725, %v4708, %v4742
        %v4760 = vsel %vm4726, %v4709, %v4743
        %v4761 = vsel %vm4727, %v4710, %v4744
        %v4762 = vsel %vm4728, %v4711, %v4745
        %v4763 = vsel %vm4729, %v4712, %v4746
        %v4764 = vsel %vm4730, %v4713, %v4747
        %v4765 = vsel %vm4731, %v4714, %v4748
        %v4766 = vsel %vm4732, %v4715, %v4749
        %v4767 = vsel %vm4733, %v4716, %v4750
        %v4768 = vsel %vm4734, %v4717, %v4751
        %v4769 = vsel %vm4735, %v4718, %v4752
        %vm4770 = vcmask 1044480
        %v4771 = vrot.slane %v422, 3
        %v4772 = vrot.slane %v423, 3
        %v4773 = vsel %vm4770, %v4771, %v4772
        %v4774 = vrot.slane %v424, 3
        %v4775 = vsel %vm4770, %v4772, %v4774
        %v4776 = vrot.slane %v425, 3
        %v4777 = vsel %vm4770, %v4774, %v4776
        %v4778 = vrot.slane %v426, 3
        %v4779 = vsel %vm4770, %v4776, %v4778
        %v4780 = vrot.slane %v427, 3
        %v4781 = vsel %vm4770, %v4778, %v4780
        %v4782 = vrot.slane %v428, 3
        %v4783 = vsel %vm4770, %v4780, %v4782
        %v4784 = vrot.slane %v429, 3
        %v4785 = vsel %vm4770, %v4782, %v4784
        %v4786 = vrot.slane %v430, 3
        %v4787 = vsel %vm4770, %v4784, %v4786
        %v4788 = vrot.slane %v431, 3
        %v4789 = vsel %vm4770, %v4786, %v4788
        %v4790 = vrot.slane %v432, 3
        %v4791 = vsel %vm4770, %v4788, %v4790
        %v4792 = vrot.slane %v433, 3
        %v4793 = vsel %vm4770, %v4790, %v4792
        %v4794 = vrot.slane %v434, 3
        %v4795 = vsel %vm4770, %v4792, %v4794
        %v4796 = vrot.slane %v435, 3
        %v4797 = vsel %vm4770, %v4794, %v4796
        %v4798 = vrot.slane %v436, 3
        %v4799 = vsel %vm4770, %v4796, %v4798
        %v4800 = vrot.slane %v437, 3
        %v4801 = vsel %vm4770, %v4798, %v4800
        %v4802 = vrot.slane %v438, 3
        %v4803 = vsel %vm4770, %v4800, %v4802
        %v4821 = vmul.f32 %v4753, %v4773
        %v4822 = vmul.f32 %v4754, %v4775
        %v4823 = vmul.f32 %v4755, %v4777
        %v4824 = vmul.f32 %v4756, %v4779
        %v4825 = vmul.f32 %v4757, %v4781
        %v4826 = vmul.f32 %v4758, %v4783
        %v4827 = vmul.f32 %v4759, %v4785
        %v4828 = vmul.f32 %v4760, %v4787
        %v4829 = vmul.f32 %v4761, %v4789
        %v4830 = vmul.f32 %v4762, %v4791
        %v4831 = vmul.f32 %v4763, %v4793
        %v4832 = vmul.f32 %v4764, %v4795
        %v4833 = vmul.f32 %v4765, %v4797
        %v4834 = vmul.f32 %v4766, %v4799
        %v4835 = vmul.f32 %v4767, %v4801
        %v4836 = vmul.f32 %v4768, %v4803
        %v4837 = vmul.f32 %v4769, %v4802
        %s4838 = scalar_lea.vmem [#allocation7], 384
        %v4839 = vld [vmem:[%s4838] sm:$0xf]
        %v4840 = vld [vmem:[%s4838 + $0x4] sm:$0xf]
        %v4841 = vld [vmem:[%s4838 + $0x8] sm:$0xf]
        %v4842 = vld [vmem:[%s4838 + $0xc] sm:$0xf]
        %v4843 = vld [vmem:[%s4838 + $0x10] sm:$0xf]
        %v4844 = vld [vmem:[%s4838 + $0x14] sm:$0xf]
        %v4845 = vld [vmem:[%s4838 + $0x18] sm:$0xf]
        %v4846 = vld [vmem:[%s4838 + $0x1c] sm:$0xf]
        %v4847 = vld [vmem:[%s4838 + $0x20] sm:$0xf]
        %v4848 = vld [vmem:[%s4838 + $0x24] sm:$0xf]
        %v4849 = vld [vmem:[%s4838 + $0x28] sm:$0xf]
        %v4850 = vld [vmem:[%s4838 + $0x2c] sm:$0xf]
        %v4851 = vld [vmem:[%s4838 + $0x30] sm:$0xf]
        %v4852 = vld [vmem:[%s4838 + $0x34] sm:$0xf]
        %v4853 = vld [vmem:[%s4838 + $0x38] sm:$0xf]
        %v4854 = vld [vmem:[%s4838 + $0x3c] sm:$0xf]
        %v4855 = vld [vmem:[%s4838 + $0x40] sm:$0xf]
        %v4856 = vld [vmem:[%s4838 + $0x44] sm:$0xf]
        %v4857 = vld [vmem:[%s4838 + $0x48] sm:$0xf]
        %v4858 = vld [vmem:[%s4838 + $0x4c] sm:$0xf]
        %v4859 = vld [vmem:[%s4838 + $0x50] sm:$0xf]
        %v4860 = vld [vmem:[%s4838 + $0x54] sm:$0xf]
        %v4861 = vld [vmem:[%s4838 + $0x58] sm:$0xf]
        %v4862 = vld [vmem:[%s4838 + $0x5c] sm:$0xf]
        %v4863 = vld [vmem:[%s4838 + $0x60] sm:$0xf]
        %v4864 = vld [vmem:[%s4838 + $0x64] sm:$0xf]
        %v4865 = vld [vmem:[%s4838 + $0x68] sm:$0xf]
        %v4866 = vld [vmem:[%s4838 + $0x6c] sm:$0xf]
        %v4867 = vld [vmem:[%s4838 + $0x70] sm:$0xf]
        %v4868 = vld [vmem:[%s4838 + $0x74] sm:$0xf]
        %v4869 = vld [vmem:[%s4838 + $0x78] sm:$0xf]
        %v4870 = vld [vmem:[%s4838 + $0x7c] sm:$0xf]
        %v4871 = vld [vmem:[%s4838 + $0x80] sm:$0xf]
        %v4872 = vld [vmem:[%s4838 + $0x84] sm:$0xf]
        %v4873 = vld [vmem:[%s4838 + $0x88] sm:$0xf]
        %v4874 = vld [vmem:[%s4838 + $0x8c] sm:$0xf]
        %v4875 = vld [vmem:[%s4838 + $0x90] sm:$0xf]
        %v4876 = vld [vmem:[%s4838 + $0x94] sm:$0xf]
        %v4877 = vld [vmem:[%s4838 + $0x98] sm:$0xf]
        %v4878 = vld [vmem:[%s4838 + $0x9c] sm:$0xf]
        %v4879 = vld [vmem:[%s4838 + $0xa0] sm:$0xf]
        %v4880 = vld [vmem:[%s4838 + $0xa4] sm:$0xf]
        %v4881 = vld [vmem:[%s4838 + $0xa8] sm:$0xf]
        %v4882 = vld [vmem:[%s4838 + $0xac] sm:$0xf]
        %v4883 = vld [vmem:[%s4838 + $0xb0] sm:$0xf]
        %v4884 = vld [vmem:[%s4838 + $0xb4] sm:$0xf]
        %v4885 = vld [vmem:[%s4838 + $0xb8] sm:$0xf]
        %v4886 = vld [vmem:[%s4838 + $0xbc] sm:$0xf]
        %s4887 = scalar_lea.vmem %s4, 2
        %v4888 = vld [vmem:[%s4887] sm:$0x1]
        %v4889 = vpack.c.bf16 %v4822, %v4821
        %v4890 = vpack.c.bf16 %v4824, %v4823
        %v4891 = vpack.c.bf16 %v4826, %v4825
        %v4892 = vpack.c.bf16 %v4828, %v4827
        %v4893 = vpack.c.bf16 %v4830, %v4829
        %v4894 = vpack.c.bf16 %v4832, %v4831
        %v4895 = vpack.c.bf16 %v4834, %v4833
        %v4896 = vpack.c.bf16 %v4836, %v4835
        %v4897 = vpack.c.bf16 %v4837, %v4837
        %v4899 = vshrl.u32 %v4889, 16
        %v4901 = vshll.u32 %v4889, 16
        %v4903 = vrot.slane %v4901, 1
        %v4904 = vor.u32 %v4899, %v4903
        %v4906 = vshll.u32 %v4890, 16
        %v4908 = vrot.slane %v4906, 1
        %v4909 = vsel %vm575, %v4904, %v4908
        %v4910 = vshrl.u32 %v4890, 16
        %v4912 = vor.u32 %v4910, %v4908
        %v4914 = vshll.u32 %v4891, 16
        %v4916 = vrot.slane %v4914, 1
        %v4917 = vsel %vm575, %v4912, %v4916
        %v4918 = vshrl.u32 %v4891, 16
        %v4920 = vor.u32 %v4918, %v4916
        %v4922 = vshll.u32 %v4892, 16
        %v4924 = vrot.slane %v4922, 1
        %v4925 = vsel %vm575, %v4920, %v4924
        %v4926 = vshrl.u32 %v4892, 16
        %v4928 = vor.u32 %v4926, %v4924
        %v4930 = vshll.u32 %v4893, 16
        %v4932 = vrot.slane %v4930, 1
        %v4933 = vsel %vm575, %v4928, %v4932
        %v4934 = vshrl.u32 %v4893, 16
        %v4936 = vor.u32 %v4934, %v4932
        %v4938 = vshll.u32 %v4894, 16
        %v4940 = vrot.slane %v4938, 1
        %v4941 = vsel %vm575, %v4936, %v4940
        %v4942 = vshrl.u32 %v4894, 16
        %v4944 = vor.u32 %v4942, %v4940
        %v4946 = vshll.u32 %v4895, 16
        %v4948 = vrot.slane %v4946, 1
        %v4949 = vsel %vm575, %v4944, %v4948
        %v4950 = vshrl.u32 %v4895, 16
        %v4952 = vor.u32 %v4950, %v4948
        %v4954 = vshll.u32 %v4896, 16
        %v4956 = vrot.slane %v4954, 1
        %v4957 = vsel %vm575, %v4952, %v4956
        %v4958 = vshrl.u32 %v4896, 16
        %v4960 = vor.u32 %v4958, %v4956
        %v4962 = vshll.u32 %v4897, 16
        %v4964 = vrot.slane %v4962, 1
        %v4965 = vsel %vm575, %v4960, %v4964
        %v4990 = vunpack.c.l.b16 %v4855
        %v4991 = vunpack.c.l.b16 %v4856
        %v4992 = vunpack.c.l.b16 %v4857
        %v4993 = vunpack.c.l.b16 %v4858
        %v4994 = vunpack.c.l.b16 %v4859
        %v4995 = vunpack.c.l.b16 %v4860
        %v4996 = vunpack.c.l.b16 %v4861
        %v4997 = vunpack.c.l.b16 %v4862
        %v4998 = vunpack.c.l.b16 %v4863
        %v4999 = vunpack.c.l.b16 %v4864
        %v5000 = vunpack.c.l.b16 %v4865
        %v5001 = vunpack.c.l.b16 %v4866
        %v5002 = vunpack.c.l.b16 %v4867
        %v5003 = vunpack.c.l.b16 %v4868
        %v5004 = vunpack.c.l.b16 %v4869
        %v5005 = vunpack.c.l.b16 %v4870
        %v5006 = vpack.c.b16 %v4991, %v4990
        %v5007 = vpack.c.b16 %v4993, %v4992
        %v5008 = vpack.c.b16 %v4995, %v4994
        %v5009 = vpack.c.b16 %v4997, %v4996
        %v5010 = vpack.c.b16 %v4999, %v4998
        %v5011 = vpack.c.b16 %v5001, %v5000
        %v5012 = vpack.c.b16 %v5003, %v5002
        %v5013 = vpack.c.b16 %v5005, %v5004
        %5022 = vmatprep.subr.bf16.mxu0 0
        %5023 = vmatpush1.bf16.msra.mxu0 %v5006
        %5024 = vmatprep.subr.bf16.mxu0 0
        %5025 = vmatpush1.bf16.msra.mxu0 %v5007
        %5026 = vmatprep.subr.bf16.mxu0 0
        %5027 = vmatpush1.bf16.msra.mxu0 %v5008
        %5028 = vmatprep.subr.bf16.mxu0 0
        %5029 = vmatpush1.bf16.msra.mxu0 %v5009
        %5030 = vmatprep.subr.bf16.mxu0 0
        %5031 = vmatpush1.bf16.msra.mxu0 %v5010
        %5032 = vmatprep.subr.bf16.mxu0 0
        %5033 = vmatpush1.bf16.msra.mxu0 %v5011
        %5034 = vmatprep.subr.bf16.mxu0 0
        %5035 = vmatpush1.bf16.msra.mxu0 %v5012
        %5036 = vmatprep.subr.bf16.mxu0 0
        %5037 = vmatpush1.bf16.msra.mxu0 %v5013
        %5038 = vmatprep.subr.bf16.mxu0 0
        %5039 = vmatpush1.bf16.msra.mxu0 0
        %5040 = vmatprep.subr.bf16.mxu0 0
        %5041 = vmatpush1.bf16.msra.mxu0 0
        %5042 = vmatprep.subr.bf16.mxu0 0
        %5043 = vmatpush1.bf16.msra.mxu0 0
        %5044 = vmatprep.subr.bf16.mxu0 0
        %5045 = vmatpush1.bf16.msra.mxu0 0
        %5046 = vmatprep.subr.bf16.mxu0 0
        %5047 = vmatpush1.bf16.msra.mxu0 0
        %5048 = vmatprep.subr.bf16.mxu0 0
        %5049 = vmatpush1.bf16.msra.mxu0 0
        %5050 = vmatprep.subr.bf16.mxu0 0
        %5051 = vmatpush1.bf16.msra.mxu0 0
        %5052 = vmatprep.subr.bf16.mxu0 0
        %5053 = vmatpush1.bf16.msra.mxu0 0
        %5054 = vmatprep.mubr.bf16.mxu0 0
        %5055 = vmatmul.mubr.bf16.gmra.mrb[0].mxu0 %v4909
        %v5056 = vpop.f32.mrb[0].mxu0
        %v5057 = vadd.f32 0.0, %v5056
        %v5058 = vpop.f32.mrb[0].mxu0
        %v5059 = vpop.f32.mrb[0].mxu0
        %v5060 = vadd.f32 0.0, %v5059
        %v5061 = vpop.f32.mrb[0].mxu0
        %5062 = vmatprep.mubr.bf16.mxu0 0
        %5063 = vmatmul.mubr.bf16.gmra.mrb[0].mxu0 %v4917
        %v5064 = vpop.f32.mrb[0].mxu0
        %v5065 = vadd.f32 0.0, %v5064
        %v5066 = vpop.f32.mrb[0].mxu0
        %v5067 = vpop.f32.mrb[0].mxu0
        %v5068 = vadd.f32 0.0, %v5067
        %v5069 = vpop.f32.mrb[0].mxu0
        %5070 = vmatprep.mubr.bf16.mxu0 0
        %5071 = vmatmul.mubr.bf16.gmra.mrb[0].mxu0 %v4925
        %v5072 = vpop.f32.mrb[0].mxu0
        %v5073 = vadd.f32 0.0, %v5072
        %v5074 = vpop.f32.mrb[0].mxu0
        %v5075 = vpop.f32.mrb[0].mxu0
        %v5076 = vadd.f32 0.0, %v5075
        %v5077 = vpop.f32.mrb[0].mxu0
        %5078 = vmatprep.mubr.bf16.mxu0 0
        %5079 = vmatmul.mubr.bf16.gmra.mrb[0].mxu0 %v4933
        %v5080 = vpop.f32.mrb[0].mxu0
        %v5081 = vadd.f32 0.0, %v5080
        %v5082 = vpop.f32.mrb[0].mxu0
        %v5083 = vpop.f32.mrb[0].mxu0
        %v5084 = vadd.f32 0.0, %v5083
        %v5085 = vpop.f32.mrb[0].mxu0
        %5086 = vmatprep.mubr.bf16.mxu0 0
        %5087 = vmatmul.mubr.bf16.gmra.mrb[0].mxu0 %v4941
        %v5088 = vpop.f32.mrb[0].mxu0
        %v5089 = vadd.f32 0.0, %v5088
        %v5090 = vpop.f32.mrb[0].mxu0
        %v5091 = vpop.f32.mrb[0].mxu0
        %v5092 = vadd.f32 0.0, %v5091
        %v5093 = vpop.f32.mrb[0].mxu0
        %5094 = vmatprep.mubr.bf16.mxu0 0
        %5095 = vmatmul.mubr.bf16.gmra.mrb[0].mxu0 %v4949
        %v5096 = vpop.f32.mrb[0].mxu0
        %v5097 = vadd.f32 0.0, %v5096
        %v5098 = vpop.f32.mrb[0].mxu0
        %v5099 = vpop.f32.mrb[0].mxu0
        %v5100 = vadd.f32 0.0, %v5099
        %v5101 = vpop.f32.mrb[0].mxu0
        %5102 = vmatprep.mubr.bf16.mxu0 0
        %5103 = vmatmul.mubr.bf16.gmra.mrb[0].mxu0 %v4957
        %v5104 = vpop.f32.mrb[0].mxu0
        %v5105 = vadd.f32 0.0, %v5104
        %v5106 = vpop.f32.mrb[0].mxu0
        %v5107 = vpop.f32.mrb[0].mxu0
        %v5108 = vadd.f32 0.0, %v5107
        %v5109 = vpop.f32.mrb[0].mxu0
        %5110 = vmatprep.mubr.bf16.mxu0 0
        %5111 = vmatmul.mubr.bf16.gmra.mrb[0].mxu0 %v4965
        %v5112 = vpop.f32.mrb[0].mxu0
        %v5113 = vadd.f32 0.0, %v5112
        %v5114 = vpop.f32.mrb[0].mxu0
        %v5115 = vpop.f32.mrb[0].mxu0
        %v5116 = vadd.f32 0.0, %v5115
        %v5117 = vpop.f32.mrb[0].mxu0
        %5118 = vdwg.mxu0
        %v5135 = vunpack.c.l.b16 %v4839
        %v5136 = vunpack.c.l.b16 %v4840
        %v5137 = vunpack.c.l.b16 %v4841
        %v5138 = vunpack.c.l.b16 %v4842
        %v5139 = vunpack.c.l.b16 %v4843
        %v5140 = vunpack.c.l.b16 %v4844
        %v5141 = vunpack.c.l.b16 %v4845
        %v5142 = vunpack.c.l.b16 %v4846
        %v5143 = vunpack.c.l.b16 %v4847
        %v5144 = vunpack.c.l.b16 %v4848
        %v5145 = vunpack.c.l.b16 %v4849
        %v5146 = vunpack.c.l.b16 %v4850
        %v5147 = vunpack.c.l.b16 %v4851
        %v5148 = vunpack.c.l.b16 %v4852
        %v5149 = vunpack.c.l.b16 %v4853
        %v5150 = vunpack.c.l.b16 %v4854
        %v5151 = vpack.c.b16 %v5136, %v5135
        %v5152 = vpack.c.b16 %v5138, %v5137
        %v5153 = vpack.c.b16 %v5140, %v5139
        %v5154 = vpack.c.b16 %v5142, %v5141
        %v5155 = vpack.c.b16 %v5144, %v5143
        %v5156 = vpack.c.b16 %v5146, %v5145
        %v5157 = vpack.c.b16 %v5148, %v5147
        %v5158 = vpack.c.b16 %v5150, %v5149
        %5167 = vmatprep.subr.bf16.mxu0 0
        %5168 = vmatpush1.bf16.msra.mxu0 %v5151
        %5169 = vmatprep.subr.bf16.mxu0 0
        %5170 = vmatpush1.bf16.msra.mxu0 %v5152
        %5171 = vmatprep.subr.bf16.mxu0 0
        %5172 = vmatpush1.bf16.msra.mxu0 %v5153
        %5173 = vmatprep.subr.bf16.mxu0 0
        %5174 = vmatpush1.bf16.msra.mxu0 %v5154
        %5175 = vmatprep.subr.bf16.mxu0 0
        %5176 = vmatpush1.bf16.msra.mxu0 %v5155
        %5177 = vmatprep.subr.bf16.mxu0 0
        %5178 = vmatpush1.bf16.msra.mxu0 %v5156
        %5179 = vmatprep.subr.bf16.mxu0 0
        %5180 = vmatpush1.bf16.msra.mxu0 %v5157
        %5181 = vmatprep.subr.bf16.mxu0 0
        %5182 = vmatpush1.bf16.msra.mxu0 %v5158
        %5183 = vmatprep.subr.bf16.mxu0 0
        %5184 = vmatpush1.bf16.msra.mxu0 0
        %5185 = vmatprep.subr.bf16.mxu0 0
        %5186 = vmatpush1.bf16.msra.mxu0 0
        %5187 = vmatprep.subr.bf16.mxu0 0
        %5188 = vmatpush1.bf16.msra.mxu0 0
        %5189 = vmatprep.subr.bf16.mxu0 0
        %5190 = vmatpush1.bf16.msra.mxu0 0
        %5191 = vmatprep.subr.bf16.mxu0 0
        %5192 = vmatpush1.bf16.msra.mxu0 0
        %5193 = vmatprep.subr.bf16.mxu0 0
        %5194 = vmatpush1.bf16.msra.mxu0 0
        %5195 = vmatprep.subr.bf16.mxu0 0
        %5196 = vmatpush1.bf16.msra.mxu0 0
        %5197 = vmatprep.subr.bf16.mxu0 0
        %5198 = vmatpush1.bf16.msra.mxu0 0
        %5199 = vmatprep.mubr.bf16.mxu0 0
        %5200 = vmatmul.mubr.bf16.gmra.mrb[0].mxu0 %v4889
        %v5201 = vpop.f32.mrb[0].mxu0
        %v5202 = vadd.f32 %v5057, %v5201
        %v5203 = vpop.f32.mrb[0].mxu0
        %v5204 = vpop.f32.mrb[0].mxu0
        %v5205 = vadd.f32 %v5060, %v5204
        %v5206 = vpop.f32.mrb[0].mxu0
        %5207 = vmatprep.mubr.bf16.mxu0 0
        %5208 = vmatmul.mubr.bf16.gmra.mrb[0].mxu0 %v4890
        %v5209 = vpop.f32.mrb[0].mxu0
        %v5210 = vadd.f32 %v5065, %v5209
        %v5211 = vpop.f32.mrb[0].mxu0
        %v5212 = vpop.f32.mrb[0].mxu0
        %v5213 = vadd.f32 %v5068, %v5212
        %v5214 = vpop.f32.mrb[0].mxu0
        %5215 = vmatprep.mubr.bf16.mxu0 0
        %5216 = vmatmul.mubr.bf16.gmra.mrb[0].mxu0 %v4891
        %v5217 = vpop.f32.mrb[0].mxu0
        %v5218 = vadd.f32 %v5073, %v5217
        %v5219 = vpop.f32.mrb[0].mxu0
        %v5220 = vpop.f32.mrb[0].mxu0
        %v5221 = vadd.f32 %v5076, %v5220
        %v5222 = vpop.f32.mrb[0].mxu0
        %5223 = vmatprep.mubr.bf16.mxu0 0
        %5224 = vmatmul.mubr.bf16.gmra.mrb[0].mxu0 %v4892
        %v5225 = vpop.f32.mrb[0].mxu0
        %v5226 = vadd.f32 %v5081, %v5225
        %v5227 = vpop.f32.mrb[0].mxu0
        %v5228 = vpop.f32.mrb[0].mxu0
        %v5229 = vadd.f32 %v5084, %v5228
        %v5230 = vpop.f32.mrb[0].mxu0
        %5231 = vmatprep.mubr.bf16.mxu0 0
        %5232 = vmatmul.mubr.bf16.gmra.mrb[0].mxu0 %v4893
        %v5233 = vpop.f32.mrb[0].mxu0
        %v5234 = vadd.f32 %v5089, %v5233
        %v5235 = vpop.f32.mrb[0].mxu0
        %v5236 = vpop.f32.mrb[0].mxu0
        %v5237 = vadd.f32 %v5092, %v5236
        %v5238 = vpop.f32.mrb[0].mxu0
        %5239 = vmatprep.mubr.bf16.mxu0 0
        %5240 = vmatmul.mubr.bf16.gmra.mrb[0].mxu0 %v4894
        %v5241 = vpop.f32.mrb[0].mxu0
        %v5242 = vadd.f32 %v5097, %v5241
        %v5243 = vpop.f32.mrb[0].mxu0
        %v5244 = vpop.f32.mrb[0].mxu0
        %v5245 = vadd.f32 %v5100, %v5244
        %v5246 = vpop.f32.mrb[0].mxu0
        %5247 = vmatprep.mubr.bf16.mxu0 0
        %5248 = vmatmul.mubr.bf16.gmra.mrb[0].mxu0 %v4895
        %v5249 = vpop.f32.mrb[0].mxu0
        %v5250 = vadd.f32 %v5105, %v5249
        %v5251 = vpop.f32.mrb[0].mxu0
        %v5252 = vpop.f32.mrb[0].mxu0
        %v5253 = vadd.f32 %v5108, %v5252
        %v5254 = vpop.f32.mrb[0].mxu0
        %5255 = vmatprep.mubr.bf16.mxu0 0
        %5256 = vmatmul.mubr.bf16.gmra.mrb[0].mxu0 %v4896
        %v5257 = vpop.f32.mrb[0].mxu0
        %v5258 = vadd.f32 %v5113, %v5257
        %v5259 = vpop.f32.mrb[0].mxu0
        %v5260 = vpop.f32.mrb[0].mxu0
        %v5261 = vadd.f32 %v5116, %v5260
        %v5262 = vpop.f32.mrb[0].mxu0
        %5263 = vdwg.mxu0
        %v5273 = vrot.slane %v4889, 1
        %v5274 = vrot.slane %v4890, 1
        %v5275 = vsel %vm995, %v5273, %v5274
        %v5276 = vrot.slane %v4891, 1
        %v5277 = vsel %vm995, %v5274, %v5276
        %v5278 = vrot.slane %v4892, 1
        %v5279 = vsel %vm995, %v5276, %v5278
        %v5280 = vrot.slane %v4893, 1
        %v5281 = vsel %vm995, %v5278, %v5280
        %v5282 = vrot.slane %v4894, 1
        %v5283 = vsel %vm995, %v5280, %v5282
        %v5284 = vrot.slane %v4895, 1
        %v5285 = vsel %vm995, %v5282, %v5284
        %v5286 = vrot.slane %v4896, 1
        %v5287 = vsel %vm995, %v5284, %v5286
        %v5288 = vrot.slane %v4897, 1
        %v5289 = vsel %vm995, %v5286, %v5288
        %v5314 = vunpack.c.l.b16 %v4871
        %v5315 = vunpack.c.l.b16 %v4872
        %v5316 = vunpack.c.l.b16 %v4873
        %v5317 = vunpack.c.l.b16 %v4874
        %v5318 = vunpack.c.l.b16 %v4875
        %v5319 = vunpack.c.l.b16 %v4876
        %v5320 = vunpack.c.l.b16 %v4877
        %v5321 = vunpack.c.l.b16 %v4878
        %v5322 = vunpack.c.l.b16 %v4879
        %v5323 = vunpack.c.l.b16 %v4880
        %v5324 = vunpack.c.l.b16 %v4881
        %v5325 = vunpack.c.l.b16 %v4882
        %v5326 = vunpack.c.l.b16 %v4883
        %v5327 = vunpack.c.l.b16 %v4884
        %v5328 = vunpack.c.l.b16 %v4885
        %v5329 = vunpack.c.l.b16 %v4886
        %v5330 = vpack.c.b16 %v5315, %v5314
        %v5331 = vpack.c.b16 %v5317, %v5316
        %v5332 = vpack.c.b16 %v5319, %v5318
        %v5333 = vpack.c.b16 %v5321, %v5320
        %v5334 = vpack.c.b16 %v5323, %v5322
        %v5335 = vpack.c.b16 %v5325, %v5324
        %v5336 = vpack.c.b16 %v5327, %v5326
        %v5337 = vpack.c.b16 %v5329, %v5328
        %5346 = vmatprep.subr.bf16.mxu0 0
        %5347 = vmatpush1.bf16.msra.mxu0 %v5330
        %5348 = vmatprep.subr.bf16.mxu0 0
        %5349 = vmatpush1.bf16.msra.mxu0 %v5331
        %5350 = vmatprep.subr.bf16.mxu0 0
        %5351 = vmatpush1.bf16.msra.mxu0 %v5332
        %5352 = vmatprep.subr.bf16.mxu0 0
        %5353 = vmatpush1.bf16.msra.mxu0 %v5333
        %5354 = vmatprep.subr.bf16.mxu0 0
        %5355 = vmatpush1.bf16.msra.mxu0 %v5334
        %5356 = vmatprep.subr.bf16.mxu0 0
        %5357 = vmatpush1.bf16.msra.mxu0 %v5335
        %5358 = vmatprep.subr.bf16.mxu0 0
        %5359 = vmatpush1.bf16.msra.mxu0 %v5336
        %5360 = vmatprep.subr.bf16.mxu0 0
        %5361 = vmatpush1.bf16.msra.mxu0 %v5337
        %5362 = vmatprep.subr.bf16.mxu0 0
        %5363 = vmatpush1.bf16.msra.mxu0 0
        %5364 = vmatprep.subr.bf16.mxu0 0
        %5365 = vmatpush1.bf16.msra.mxu0 0
        %5366 = vmatprep.subr.bf16.mxu0 0
        %5367 = vmatpush1.bf16.msra.mxu0 0
        %5368 = vmatprep.subr.bf16.mxu0 0
        %5369 = vmatpush1.bf16.msra.mxu0 0
        %5370 = vmatprep.subr.bf16.mxu0 0
        %5371 = vmatpush1.bf16.msra.mxu0 0
        %5372 = vmatprep.subr.bf16.mxu0 0
        %5373 = vmatpush1.bf16.msra.mxu0 0
        %5374 = vmatprep.subr.bf16.mxu0 0
        %5375 = vmatpush1.bf16.msra.mxu0 0
        %5376 = vmatprep.subr.bf16.mxu0 0
        %5377 = vmatpush1.bf16.msra.mxu0 0
        %5378 = vmatprep.mubr.bf16.mxu0 0
        %5379 = vmatmul.mubr.bf16.gmra.mrb[0].mxu0 %v5275
        %v5380 = vpop.f32.mrb[0].mxu0
        %v5381 = vadd.f32 0.0, %v5380
        %v5382 = vpop.f32.mrb[0].mxu0
        %v5383 = vpop.f32.mrb[0].mxu0
        %v5384 = vadd.f32 0.0, %v5383
        %v5385 = vpop.f32.mrb[0].mxu0
        %5386 = vmatprep.mubr.bf16.mxu0 0
        %5387 = vmatmul.mubr.bf16.gmra.mrb[0].mxu0 %v5277
        %v5388 = vpop.f32.mrb[0].mxu0
        %v5389 = vadd.f32 0.0, %v5388
        %v5390 = vpop.f32.mrb[0].mxu0
        %v5391 = vpop.f32.mrb[0].mxu0
        %v5392 = vadd.f32 0.0, %v5391
        %v5393 = vpop.f32.mrb[0].mxu0
        %5394 = vmatprep.mubr.bf16.mxu0 0
        %5395 = vmatmul.mubr.bf16.gmra.mrb[0].mxu0 %v5279
        %v5396 = vpop.f32.mrb[0].mxu0
        %v5397 = vadd.f32 0.0, %v5396
        %v5398 = vpop.f32.mrb[0].mxu0
        %v5399 = vpop.f32.mrb[0].mxu0
        %v5400 = vadd.f32 0.0, %v5399
        %v5401 = vpop.f32.mrb[0].mxu0
        %5402 = vmatprep.mubr.bf16.mxu0 0
        %5403 = vmatmul.mubr.bf16.gmra.mrb[0].mxu0 %v5281
        %v5404 = vpop.f32.mrb[0].mxu0
        %v5405 = vadd.f32 0.0, %v5404
        %v5406 = vpop.f32.mrb[0].mxu0
        %v5407 = vpop.f32.mrb[0].mxu0
        %v5408 = vadd.f32 0.0, %v5407
        %v5409 = vpop.f32.mrb[0].mxu0
        %5410 = vmatprep.mubr.bf16.mxu0 0
        %5411 = vmatmul.mubr.bf16.gmra.mrb[0].mxu0 %v5283
        %v5412 = vpop.f32.mrb[0].mxu0
        %v5413 = vadd.f32 0.0, %v5412
        %v5414 = vpop.f32.mrb[0].mxu0
        %v5415 = vpop.f32.mrb[0].mxu0
        %v5416 = vadd.f32 0.0, %v5415
        %v5417 = vpop.f32.mrb[0].mxu0
        %5418 = vmatprep.mubr.bf16.mxu0 0
        %5419 = vmatmul.mubr.bf16.gmra.mrb[0].mxu0 %v5285
        %v5420 = vpop.f32.mrb[0].mxu0
        %v5421 = vadd.f32 0.0, %v5420
        %v5422 = vpop.f32.mrb[0].mxu0
        %v5423 = vpop.f32.mrb[0].mxu0
        %v5424 = vadd.f32 0.0, %v5423
        %v5425 = vpop.f32.mrb[0].mxu0
        %5426 = vmatprep.mubr.bf16.mxu0 0
        %5427 = vmatmul.mubr.bf16.gmra.mrb[0].mxu0 %v5287
        %v5428 = vpop.f32.mrb[0].mxu0
        %v5429 = vadd.f32 0.0, %v5428
        %v5430 = vpop.f32.mrb[0].mxu0
        %v5431 = vpop.f32.mrb[0].mxu0
        %v5432 = vadd.f32 0.0, %v5431
        %v5433 = vpop.f32.mrb[0].mxu0
        %5434 = vmatprep.mubr.bf16.mxu0 0
        %5435 = vmatmul.mubr.bf16.gmra.mrb[0].mxu0 %v5289
        %v5436 = vpop.f32.mrb[0].mxu0
        %v5437 = vadd.f32 0.0, %v5436
        %v5438 = vpop.f32.mrb[0].mxu0
        %v5439 = vpop.f32.mrb[0].mxu0
        %v5440 = vadd.f32 0.0, %v5439
        %v5441 = vpop.f32.mrb[0].mxu0
        %5442 = vdwg.mxu0
        %v5443 = vadd.f32 %v5202, %v5381
        %v5444 = vadd.f32 %v5205, %v5384
        %v5445 = vadd.f32 %v5210, %v5389
        %v5446 = vadd.f32 %v5213, %v5392
        %v5447 = vadd.f32 %v5218, %v5397
        %v5448 = vadd.f32 %v5221, %v5400
        %v5449 = vadd.f32 %v5226, %v5405
        %v5450 = vadd.f32 %v5229, %v5408
        %v5451 = vadd.f32 %v5234, %v5413
        %v5452 = vadd.f32 %v5237, %v5416
        %v5453 = vadd.f32 %v5242, %v5421
        %v5454 = vadd.f32 %v5245, %v5424
        %v5455 = vadd.f32 %v5250, %v5429
        %v5456 = vadd.f32 %v5253, %v5432
        %v5457 = vadd.f32 %v5258, %v5437
        %v5458 = vadd.f32 %v5261, %v5440
        %v5460 = vlaneseq
        %v5461 = vshrl.u32 %v5460, 7
        %v5462 = vsub.s32 0, %v5461
        %v5463 = vrot.slane %v4888, %v5462
        %v5465 = vadd.f32 %v5443, %v5463
        %v5466 = vadd.f32 %v5444, %v5463
        %v5467 = vadd.f32 %v5445, %v5463
        %v5468 = vadd.f32 %v5446, %v5463
        %v5469 = vadd.f32 %v5447, %v5463
        %v5470 = vadd.f32 %v5448, %v5463
        %v5471 = vadd.f32 %v5449, %v5463
        %v5472 = vadd.f32 %v5450, %v5463
        %v5473 = vadd.f32 %v5451, %v5463
        %v5474 = vadd.f32 %v5452, %v5463
        %v5475 = vadd.f32 %v5453, %v5463
        %v5476 = vadd.f32 %v5454, %v5463
        %v5477 = vadd.f32 %v5455, %v5463
        %v5478 = vadd.f32 %v5456, %v5463
        %v5479 = vadd.f32 %v5457, %v5463
        %v5480 = vadd.f32 %v5458, %v5463
        %v5498 = vrot.slane %v3891, 6
        %v5499 = vrot.slane %v3892, 6
        %v5500 = vsel %vm3963, %v5498, %v5499
        %v5501 = vrot.slane %v3893, 6
        %v5502 = vsel %vm3963, %v5499, %v5501
        %v5503 = vrot.slane %v3894, 6
        %v5504 = vsel %vm3963, %v5501, %v5503
        %v5505 = vrot.slane %v3895, 6
        %v5506 = vsel %vm3963, %v5503, %v5505
        %v5507 = vrot.slane %v3896, 6
        %v5508 = vsel %vm3963, %v5505, %v5507
        %v5509 = vrot.slane %v3897, 6
        %v5510 = vsel %vm3963, %v5507, %v5509
        %v5511 = vrot.slane %v3898, 6
        %v5512 = vsel %vm3963, %v5509, %v5511
        %v5513 = vrot.slane %v3899, 6
        %v5514 = vsel %vm3963, %v5511, %v5513
        %v5515 = vrot.slane %v3900, 6
        %v5516 = vsel %vm3963, %v5513, %v5515
        %v5517 = vrot.slane %v3901, 6
        %v5518 = vsel %vm3963, %v5515, %v5517
        %v5519 = vrot.slane %v3902, 6
        %v5520 = vsel %vm3963, %v5517, %v5519
        %v5521 = vrot.slane %v3903, 6
        %v5522 = vsel %vm3963, %v5519, %v5521
        %v5523 = vrot.slane %v3904, 6
        %v5524 = vsel %vm3963, %v5521, %v5523
        %v5525 = vrot.slane %v3905, 6
        %v5526 = vsel %vm3963, %v5523, %v5525
        %v5527 = vrot.slane %v3906, 6
        %v5528 = vsel %vm3963, %v5525, %v5527
        %v5529 = vrot.slane %v3907, 6
        %v5530 = vsel %vm3963, %v5527, %v5529
        %v5547 = vadd.f32 %v5465, %v5500
        %v5548 = vadd.f32 %v5466, %v5502
        %v5549 = vadd.f32 %v5467, %v5504
        %v5550 = vadd.f32 %v5468, %v5506
        %v5551 = vadd.f32 %v5469, %v5508
        %v5552 = vadd.f32 %v5470, %v5510
        %v5553 = vadd.f32 %v5471, %v5512
        %v5554 = vadd.f32 %v5472, %v5514
        %v5555 = vadd.f32 %v5473, %v5516
        %v5556 = vadd.f32 %v5474, %v5518
        %v5557 = vadd.f32 %v5475, %v5520
        %v5558 = vadd.f32 %v5476, %v5522
        %v5559 = vadd.f32 %v5477, %v5524
        %v5560 = vadd.f32 %v5478, %v5526
        %v5561 = vadd.f32 %v5479, %v5528
        %v5562 = vadd.f32 %v5480, %v5530
        %5563 = vst [vmem:[%s220] sm:$0xff] %v5547
        %5564 = vst [vmem:[%s220 + $0x8] sm:$0xff] %v5548
        %5565 = vst [vmem:[%s220 + $0x10] sm:$0xff] %v5549
        %5566 = vst [vmem:[%s220 + $0x18] sm:$0xff] %v5550
        %5567 = vst [vmem:[%s220 + $0x20] sm:$0xff] %v5551
        %5568 = vst [vmem:[%s220 + $0x28] sm:$0xff] %v5552
        %5569 = vst [vmem:[%s220 + $0x30] sm:$0xff] %v5553
        %5570 = vst [vmem:[%s220 + $0x38] sm:$0xff] %v5554
        %5571 = vst [vmem:[%s220 + $0x40] sm:$0xff] %v5555
        %5572 = vst [vmem:[%s220 + $0x48] sm:$0xff] %v5556
        %5573 = vst [vmem:[%s220 + $0x50] sm:$0xff] %v5557
        %5574 = vst [vmem:[%s220 + $0x58] sm:$0xff] %v5558
        %5575 = vst [vmem:[%s220 + $0x60] sm:$0xff] %v5559
        %5576 = vst [vmem:[%s220 + $0x68] sm:$0xff] %v5560
        %5577 = vst [vmem:[%s220 + $0x70] sm:$0xff] %v5561
        %5578 = vst [vmem:[%s220 + $0x78] sm:$0xff] %v5562
        %s5579 = sand.u32 %s127, 1
        %s5580 = scalar_lea.sflag [#allocation6], %s5579
        %s5581 = sand.u32 %s127, 1
        %s5582 = smul.addr %s5581, 128
        %s5583 = scalar_lea.vmem [#allocation9], %s5582
        // Predicated region
        $region61: #{tpu_custom_call.1} parent=35 // pred_check
          %p5584 = pneg %p137
        $region62: #{tpu_custom_call.1} parent=35 // pred_check_branch
          %5586 = sbr.rel (%p5584) target = $region64
        $region63: #{tpu_custom_call.1} parent=35 // pred_region
          %s5587 = smul.u32 16, %s26
          %s5589 = ssub.s32 2048, 2048
          %5590 = vsyncadd %s5580, %s5589
          %s5591 = smul.addr %s25, 48
          %s5592 = sadd.s32 %s5587, %s5591
          %s5593 = smul.addr %s5592, 128
          %s5594 = scalar_lea.hbm %s5, %s5593
          %s5595 = sshll.u32 %s5583, 4
          %s5596 = int_to_ptr.vmem [resolvable:$true] %s5595
          %5601 = dma.vmem_to_hbm [thread:$0]  %s5596, 2048, %s5594, %s5580, 128, 128, 8
        $region64: #{tpu_custom_call.1} parent=35 // pred_fallthru
          _
      $region36: #{tpu_custom_call.1} parent=5 // pred_fallthru
        _
      %p5602 = scmp.le.s32.totalorder 2, %s16
      // Predicated region
      $region65: #{tpu_custom_call.1} parent=5 // pred_check
        %p5603 = pneg %p5602
      $region66: #{tpu_custom_call.1} parent=5 // pred_check_branch
        %5605 = sbr.rel (%p5603) target = $region68
      $region67: #{tpu_custom_call.1} parent=5 // pred_region
        %s5606 = ssub.s32 %s16, 2
        // Predicated region
        $region69: #{tpu_custom_call.1} parent=67 // pred_check
          %p5607 = pneg %p143
        $region70: #{tpu_custom_call.1} parent=67 // pred_check_branch
          %5609 = sbr.rel (%p5607) target = $region72
        $region71: #{tpu_custom_call.1} parent=67 // pred_region
          %s5610 = sand.u32 %s128, 1
          %s5611 = scalar_lea.sflag [#allocation6], %s5610
          %s5612 = sand.u32 %s128, 1
          %s5613 = smul.addr %s5612, 128
          %s5614 = scalar_lea.vmem [#allocation9], %s5613
          %5615 = dma.done %s5611, 2048
        $region72: #{tpu_custom_call.1} parent=67 // pred_fallthru
          _
      $region68: #{tpu_custom_call.1} parent=5 // pred_fallthru
        _
    $region6: #{tpu_custom_call.1} parent=1 // loop_footer
      %s20 = sadd.s32 1, %s16
    $region7: #{tpu_custom_call.1} parent=1 // loop_footer_branch
      %15 = sbr.rel target = $region3
    $region8: #{tpu_custom_call.1} parent=1 // loop_exit
      _
    %5616 = vsyncpa [#allocation5], 1
    %s5617 = scalar_lea.sflag [#allocation5], 1
    %5618 = vsyncpa %s5617, 1
    %5619 = vsyncpa [#allocation8], 1
    %5620 = vsyncpa [#allocation6], 1
    %s5621 = scalar_lea.sflag [#allocation6], 1
    %5622 = vsyncpa %s5621, 1
  %5623 = vsyncmov [#allocation3]
  %s5624 = vpop.sfrf %5623
  %p5625 = scmp.eq.s32.totalorder %s5624, 0
  %p5626 = pneg %p5625
  %5628 = shalt.err (%p5626)
  %s5629 = scalar_lea.sflag [#allocation3], 1
  %5630 = vsyncmov %s5629
  %s5631 = vpop.sfrf %5630
  %p5632 = scmp.eq.s32.totalorder %s5631, 0
  %p5633 = pneg %p5632
  %5635 = shalt.err (%p5633)

</llo_original>
